<compile_context>
chip_gen: v5e
topology: v5e:2x2
jax: 0.10.0
libtpu: 0.0.40
codegen_flags: <defaults>
</compile_context>

<pallas_src>
import jax
import jax.numpy as jnp
from jax.experimental import pallas as pl
from jax.experimental.pallas import tpu as pltpu

N = 2            # batch
INPUTS = 16      # fc1 in_features
OUTPUTS = 4      # out layer width
L = 128          # fc1 hidden width == conv sequence length
C1, C2 = 3, 9    # conv1 / conv2 output channels
K = 3            # conv kernel size
EPS = 1e-5       # BatchNorm eps (PyTorch default)


def policy_kernel(x_ref, w1_ref, b1_ref,
                  c1w_ref, c1b_ref, c2w_ref, c2b_ref,
                  w2_hbm_ref, b2_ref, w3_hbm_ref, b3_ref,
                  wo_ref, bo_ref,
                  o_ref,
                  w2_vmem, w2_sem, w3_vmem, w3_sem):
    # Kick off both FC weight DMAs (bf16) immediately so they overlap with
    # the fc1 / conv1 / batch-norm / conv2 compute below.
    w2_copy = pltpu.make_async_copy(w2_hbm_ref, w2_vmem, w2_sem)
    w2_copy.start()
    w3_copy = pltpu.make_async_copy(w3_hbm_ref, w3_vmem, w3_sem)
    w3_copy.start()

    # "Same"-conv boundary masks, built once and reused for both shifts.
    pos = jax.lax.broadcasted_iota(jnp.int32, (1, L), 1)
    first = pos == 0
    last = pos == L - 1

    def shift3(x):
        """(x[l-1], x[l], x[l+1]) along lanes with zero padding, per row."""
        xl = jnp.where(first, 0.0, pltpu.roll(x, shift=1, axis=1))
        xr = jnp.where(last, 0.0, pltpu.roll(x, shift=L - 1, axis=1))
        return xl, x, xr

    # fc1 + sigmoid                                   (N, INPUTS) -> (N, 128)
    h = jnp.dot(x_ref[...], w1_ref[...],
                preferred_element_type=jnp.float32) + b1_ref[...]
    h = jax.nn.sigmoid(h)

    # conv1 (1 -> 3, kernel 3, "same") as 3 stacked FMAs over (C1*N, L).
    h6 = jnp.concatenate([h] * C1, axis=0)                     # (C1*N, L)
    hl, hc, hr = shift3(h6)
    c1w = c1w_ref[...]                                          # (C1*N, K)
    c1 = (c1b_ref[...]
          + c1w[:, 0:1] * hl
          + c1w[:, 1:2] * hc
          + c1w[:, 2:3] * hr)                                   # (C1*N, L)

    # act2 applied twice -- exactly as the reference forward does.
    c1 = jax.nn.sigmoid(jax.nn.sigmoid(c1))

    # batch_norm1 (training mode, biased stats) per channel over (batch, L).
    # Fused single pass: mean and E[x^2] together, var = E[x^2] - mean^2.
    inv_cnt = 1.0 / (N * L)
    row_s = jnp.sum(c1, axis=1, keepdims=True)                  # (C1*N, 1)
    row_s2 = jnp.sum(c1 * c1, axis=1, keepdims=True)            # (C1*N, 1)
    mean_rows, rstd_rows = [], []
    for co in range(C1):
        rows = slice(co * N, (co + 1) * N)
        cs = jnp.sum(row_s[rows, :], axis=0, keepdims=True)
        cs2 = jnp.sum(row_s2[rows, :], axis=0, keepdims=True)
        m = cs * inv_cnt
        var = jnp.maximum(cs2 * inv_cnt - m * m, 0.0)
        r = jax.lax.rsqrt(var + EPS)
        mean_rows.append(jnp.broadcast_to(m, (N, 1)))
        rstd_rows.append(jnp.broadcast_to(r, (N, 1)))
    mean_s = jnp.concatenate(mean_rows, axis=0)                 # (C1*N, 1)
    rstd_s = jnp.concatenate(rstd_rows, axis=0)                 # (C1*N, 1)
    c1 = (c1 - mean_s) * rstd_s

    # conv2 (3 -> 9, kernel 3, "same") + sigmoid.  Per output channel: 3
    # stacked tap-FMAs over (C1*N, L), then reduce the 3 input-channel row
    # groups to (N, L).  Outputs are concatenated directly along lanes (the
    # flatten), never restacked on sublanes.
    sl, sc, sr = shift3(c1)                                     # each (C1*N, L)
    c2w = c2w_ref[...]                                          # (C1*N, C2*K)
    f_chans = []
    for co in range(C2):
        b = co * K
        acc6 = (c2w[:, b + 0:b + 1] * sl
                + c2w[:, b + 1:b + 2] * sc
                + c2w[:, b + 2:b + 3] * sr)                     # (C1*N, L)
        acc = (acc6[0 * N:1 * N, :] + acc6[1 * N:2 * N, :]
               + acc6[2 * N:3 * N, :] + c2b_ref[co])            # (N, L)
        f_chans.append(jax.nn.sigmoid(acc))
    # Flatten == nn.Flatten on (N, C2, L): pure lane concat of 128-wide blocks.
    f = jnp.concatenate(f_chans, axis=1).astype(jnp.bfloat16)   # (N, C2*L)

    # fc2 + sigmoid    (N, 1152) @ bf16 (1152, 384), full-depth K, f32 acc.
    w2_copy.wait()
    h2 = jnp.dot(f, w2_vmem[...],
                 preferred_element_type=jnp.float32) + b2_ref[...]
    h2 = jax.nn.sigmoid(h2)

    # batch_norm2 (training mode, biased stats) over the batch, per feature.
    m2 = jnp.mean(h2, axis=0, keepdims=True)
    e2 = jnp.mean(h2 * h2, axis=0, keepdims=True)
    v2 = jnp.maximum(e2 - m2 * m2, 0.0)
    h2 = (h2 - m2) * jax.lax.rsqrt(v2 + EPS)

    # fc3 + sigmoid    (N, 384) @ bf16 (384, 128), f32 acc.
    w3_copy.wait()
    h3 = jnp.dot(h2.astype(jnp.bfloat16), w3_vmem[...],
                 preferred_element_type=jnp.float32) + b3_ref[...]
    h3 = jax.nn.sigmoid(h3)

    # output head (no activation)                      (N, 128) -> (N, OUTPUTS)
    # TODO(synk): lane width 4 -> masked store; only worth padding to 128
    # lanes if the batch ever grows enough for the store to matter.
    o_ref[...] = jnp.dot(h3, wo_ref[...],
                         preferred_element_type=jnp.float32) + bo_ref[...]


def policy_net(x, params):
    """params = (fc1_w, fc1_b, c1w, c1b, c2w, c2b,
                 fc2_w, fc2_b, fc3_w, fc3_b, out_w, out_b).

    fc2_w / fc3_w should already be bf16 (cast once on the host); the
    defensive astype below is a no-op in that case.  Conv weights arrive in
    PyTorch (out, in, k) flat order and are re-laid-out here (host/XLA level,
    ~100 floats) into per-tap lane columns so the kernel does stacked FMAs.
    """
    (fc1_w, fc1_b, c1w, c1b, c2w, c2b,
     fc2_w, fc2_b, fc3_w, fc3_b, out_w, out_b) = params
    fc2_w = fc2_w.astype(jnp.bfloat16)
    fc3_w = fc3_w.astype(jnp.bfloat16)

    # conv1: (C1, K) -> rows repeated N times -> (C1*N, K); bias -> (C1*N, 1).
    c1w_cols = jnp.repeat(c1w.reshape(C1, K), N, axis=0)
    c1b_col = jnp.repeat(c1b.reshape(C1), N).reshape(C1 * N, 1)
    # conv2: (C2, C1, K) -> (C1, C2*K) -> rows repeated N times -> (C1*N, C2*K)
    # with element [ci*N+n, co*K+t] = w[co, ci, t].
    c2w_cols = jnp.repeat(
        jnp.transpose(c2w.reshape(C2, C1, K), (1, 0, 2)).reshape(C1, C2 * K),
        N, axis=0)

    vmem = lambda: pl.BlockSpec(memory_space=pltpu.MemorySpace.VMEM)
    smem = lambda: pl.BlockSpec(memory_space=pltpu.MemorySpace.SMEM)
    in_specs = [
        vmem(),                              # x
        vmem(), vmem(),                      # fc1 w, b
        vmem(), vmem(),                      # conv1 w cols, b col
        vmem(),                              # conv2 w cols
        smem(),                              # conv2 b (scalars)
        pl.BlockSpec(memory_space=pl.ANY),   # fc2 w: stays in HBM, manual DMA
        vmem(),                              # fc2 b
        pl.BlockSpec(memory_space=pl.ANY),   # fc3 w: stays in HBM, manual DMA
        vmem(),                              # fc3 b
        vmem(), vmem(),                      # out w, b
    ]
    cost = pl.CostEstimate(flops=2_000_000, transcendentals=6_700,
                           bytes_accessed=1_000_000)
    return pl.pallas_call(
        policy_kernel,
        out_shape=jax.ShapeDtypeStruct((x.shape[0], OUTPUTS), jnp.float32),
        in_specs=in_specs,
        out_specs=pl.BlockSpec(memory_space=pltpu.MemorySpace.VMEM),
        scratch_shapes=[
            pltpu.VMEM((C2 * L, 3 * L), jnp.bfloat16),   # fc2 weight landing buf
            pltpu.SemaphoreType.DMA(()),                 # its DMA semaphore
            pltpu.VMEM((3 * L, L), jnp.bfloat16),        # fc3 weight landing buf
            pltpu.SemaphoreType.DMA(()),                 # its DMA semaphore
        ],
        cost_estimate=cost,
    )(x, fc1_w, fc1_b, c1w_cols, c1b_col, c2w_cols, c2b,
      fc2_w, fc2_b, fc3_w, fc3_b, out_w, out_b)


if __name__ == "__main__":
    key = jax.random.PRNGKey(0)
    ks = jax.random.split(key, 13)
    s = 0.1

    # Deterministic synthetic parameters (dense weights stored as (in, out)).
    fc1_w = jax.random.normal(ks[0], (INPUTS, L), jnp.float32) * s
    fc1_b = jax.random.normal(ks[1], (1, L), jnp.float32) * s
    c1w = jax.random.normal(ks[2], (C1 * 1 * K,), jnp.float32) * s    # (out,in,k) flat
    c1b = jax.random.normal(ks[3], (C1,), jnp.float32) * s
    c2w = jax.random.normal(ks[4], (C2 * C1 * K,), jnp.float32) * s   # (out,in,k) flat
    c2b = jax.random.normal(ks[5], (C2,), jnp.float32) * s
    # Big FC weights converted to bf16 once here (host level).
    fc2_w = (jax.random.normal(ks[6], (C2 * L, 3 * L), jnp.float32) * s
             ).astype(jnp.bfloat16)
    fc2_b = jax.random.normal(ks[7], (1, 3 * L), jnp.float32) * s
    fc3_w = (jax.random.normal(ks[8], (3 * L, L), jnp.float32) * s
             ).astype(jnp.bfloat16)
    fc3_b = jax.random.normal(ks[9], (1, L), jnp.float32) * s
    out_w = jax.random.normal(ks[10], (L, OUTPUTS), jnp.float32) * s
    out_b = jax.random.normal(ks[11], (1, OUTPUTS), jnp.float32) * s

    x = jax.random.normal(ks[12], (N, INPUTS), jnp.float32)

    params = (fc1_w, fc1_b, c1w, c1b, c2w, c2b,
              fc2_w, fc2_b, fc3_w, fc3_b, out_w, out_b)

    y = policy_net(x, params)
    jax.block_until_ready(y)
    assert y.shape == (N, OUTPUTS) and bool(jnp.all(jnp.isfinite(y)))
    print("KERNEL_OK")
</pallas_src>

<mosaic_0001>
module attributes {stable_mosaic.version = 11 : i64} {
  func.func @policy_kernel(%arg0: memref<2x16xf32, #tpu.memory_space<vmem>>, %arg1: memref<16x128xf32, #tpu.memory_space<vmem>>, %arg2: memref<1x128xf32, #tpu.memory_space<vmem>>, %arg3: memref<6x3xf32, #tpu.memory_space<vmem>>, %arg4: memref<6x1xf32, #tpu.memory_space<vmem>>, %arg5: memref<6x27xf32, #tpu.memory_space<vmem>>, %arg6: memref<9xf32, #tpu.memory_space<smem>>, %arg7: memref<1152x384xbf16, #tpu.memory_space<any>>, %arg8: memref<1x384xf32, #tpu.memory_space<vmem>>, %arg9: memref<384x128xbf16, #tpu.memory_space<any>>, %arg10: memref<1x128xf32, #tpu.memory_space<vmem>>, %arg11: memref<128x4xf32, #tpu.memory_space<vmem>>, %arg12: memref<1x4xf32, #tpu.memory_space<vmem>>, %arg13: memref<2x4xf32, #tpu.memory_space<vmem>>, %arg14: memref<1152x384xbf16, #tpu.memory_space<vmem>>, %arg15: memref<!tpu.dma_semaphore, #tpu.memory_space<semaphore_mem>>, %arg16: memref<384x128xbf16, #tpu.memory_space<vmem>>, %arg17: memref<!tpu.dma_semaphore, #tpu.memory_space<semaphore_mem>>) attributes {dimension_semantics = [], scalar_prefetch = 0 : i64, scratch_operands = 4 : i64, tpu.core_type = #tpu.core_type<tc>} {
    tpu.enqueue_dma source(%arg7 : memref<1152x384xbf16, #tpu.memory_space<any>>) target(%arg14 : memref<1152x384xbf16, #tpu.memory_space<vmem>>) target_semaphore(%arg15 : memref<!tpu.dma_semaphore, #tpu.memory_space<semaphore_mem>>)
    tpu.enqueue_dma source(%arg9 : memref<384x128xbf16, #tpu.memory_space<any>>) target(%arg16 : memref<384x128xbf16, #tpu.memory_space<vmem>>) target_semaphore(%arg17 : memref<!tpu.dma_semaphore, #tpu.memory_space<semaphore_mem>>)
    %0 = tpu.iota {dimensions = array<i32: 1>} : vector<1x128xi32>
    %c0_i32 = arith.constant 0 : i32
    %1 = vector.broadcast %c0_i32 : i32 to vector<1x128xi32>
    %2 = arith.cmpi eq, %0, %1 : vector<1x128xi32>
    %c127_i32 = arith.constant 127 : i32
    %3 = vector.broadcast %c127_i32 : i32 to vector<1x128xi32>
    %4 = arith.cmpi eq, %0, %3 : vector<1x128xi32>
    %c0 = arith.constant 0 : index
    %c0_0 = arith.constant 0 : index
    %5 = vector.load %arg0[%c0, %c0_0] : memref<2x16xf32, #tpu.memory_space<vmem>>, vector<2x16xf32>
    %c0_1 = arith.constant 0 : index
    %c0_2 = arith.constant 0 : index
    %6 = vector.load %arg1[%c0_1, %c0_2] : memref<16x128xf32, #tpu.memory_space<vmem>>, vector<16x128xf32>
    %cst = arith.constant dense<0.000000e+00> : vector<2x128xf32>
    %7 = tpu.matmul %5, %6, %cst {dimension_numbers = #tpu.dot_dimension_numbers<[1], [0], [0], [1], [0, 0, 1, 1], [], []>} : vector<2x16xf32>, vector<16x128xf32>, vector<2x128xf32> -> vector<2x128xf32>
    %c0_3 = arith.constant 0 : index
    %c0_4 = arith.constant 0 : index
    %8 = vector.load %arg2[%c0_3, %c0_4] : memref<1x128xf32, #tpu.memory_space<vmem>>, vector<1x128xf32>
    %9 = vector.broadcast %8 : vector<1x128xf32> to vector<2x128xf32>
    %10 = arith.addf %7, %9 : vector<2x128xf32>
    %11 = arith.negf %10 : vector<2x128xf32>
    %12 = math.exp %11 : vector<2x128xf32>
    %cst_5 = arith.constant 1.000000e+00 : f32
    %13 = vector.broadcast %cst_5 : f32 to vector<2x128xf32>
    %14 = arith.addf %13, %12 : vector<2x128xf32>
    %15 = arith.divf %13, %14 : vector<2x128xf32>
    %16 = tpu.concatenate %15, %15, %15 in 0 : vector<2x128xf32>, vector<2x128xf32>, vector<2x128xf32> -> vector<6x128xf32>
    %c1_i32 = arith.constant 1 : i32
    %17 = tpu.dynamic_rotate %16 by %c1_i32 dim 1 : vector<6x128xf32>, i32 -> vector<6x128xf32>
    %cst_6 = arith.constant 0.000000e+00 : f32
    %18 = vector.shape_cast %2 : vector<1x128xi1> to vector<1x128xi1>
    %19 = vector.broadcast %18 : vector<1x128xi1> to vector<6x128xi1>
    %20 = vector.broadcast %cst_6 : f32 to vector<6x128xf32>
    %21 = arith.select %19, %20, %17 : vector<6x128xi1>, vector<6x128xf32>
    %c127_i32_7 = arith.constant 127 : i32
    %22 = tpu.dynamic_rotate %16 by %c127_i32_7 dim 1 : vector<6x128xf32>, i32 -> vector<6x128xf32>
    %cst_8 = arith.constant 0.000000e+00 : f32
    %23 = vector.shape_cast %4 : vector<1x128xi1> to vector<1x128xi1>
    %24 = vector.broadcast %23 : vector<1x128xi1> to vector<6x128xi1>
    %25 = vector.broadcast %cst_8 : f32 to vector<6x128xf32>
    %26 = arith.select %24, %25, %22 : vector<6x128xi1>, vector<6x128xf32>
    %c0_9 = arith.constant 0 : index
    %c0_10 = arith.constant 0 : index
    %27 = vector.load %arg3[%c0_9, %c0_10] : memref<6x3xf32, #tpu.memory_space<vmem>>, vector<6x3xf32>
    %c0_11 = arith.constant 0 : index
    %c0_12 = arith.constant 0 : index
    %28 = vector.load %arg4[%c0_11, %c0_12] : memref<6x1xf32, #tpu.memory_space<vmem>>, vector<6x1xf32>
    %29 = vector.extract_strided_slice %27 {offsets = [0, 0], sizes = [6, 1], strides = [1, 1]} : vector<6x3xf32> to vector<6x1xf32>
    %30 = vector.broadcast %29 : vector<6x1xf32> to vector<6x128xf32>
    %31 = arith.mulf %30, %21 : vector<6x128xf32>
    %32 = vector.broadcast %28 : vector<6x1xf32> to vector<6x128xf32>
    %33 = arith.addf %32, %31 : vector<6x128xf32>
    %34 = vector.extract_strided_slice %27 {offsets = [0, 1], sizes = [6, 1], strides = [1, 1]} : vector<6x3xf32> to vector<6x1xf32>
    %35 = vector.broadcast %34 : vector<6x1xf32> to vector<6x128xf32>
    %36 = arith.mulf %35, %16 : vector<6x128xf32>
    %37 = arith.addf %33, %36 : vector<6x128xf32>
    %38 = vector.extract_strided_slice %27 {offsets = [0, 2], sizes = [6, 1], strides = [1, 1]} : vector<6x3xf32> to vector<6x1xf32>
    %39 = vector.broadcast %38 : vector<6x1xf32> to vector<6x128xf32>
    %40 = arith.mulf %39, %26 : vector<6x128xf32>
    %41 = arith.addf %37, %40 : vector<6x128xf32>
    %42 = arith.negf %41 : vector<6x128xf32>
    %43 = math.exp %42 : vector<6x128xf32>
    %cst_13 = arith.constant 1.000000e+00 : f32
    %44 = vector.broadcast %cst_13 : f32 to vector<6x128xf32>
    %45 = arith.addf %44, %43 : vector<6x128xf32>
    %46 = arith.divf %44, %45 : vector<6x128xf32>
    %47 = arith.negf %46 : vector<6x128xf32>
    %48 = math.exp %47 : vector<6x128xf32>
    %cst_14 = arith.constant 1.000000e+00 : f32
    %49 = vector.broadcast %cst_14 : f32 to vector<6x128xf32>
    %50 = arith.addf %49, %48 : vector<6x128xf32>
    %51 = arith.divf %49, %50 : vector<6x128xf32>
    %cst_15 = arith.constant dense<0.000000e+00> : vector<6xf32>
    %52 = vector.multi_reduction <add>, %51, %cst_15 [1] : vector<6x128xf32> to vector<6xf32>
    %53 = vector.shape_cast %52 : vector<6xf32> to vector<6x1xf32>
    %54 = arith.mulf %51, %51 : vector<6x128xf32>
    %cst_16 = arith.constant dense<0.000000e+00> : vector<6xf32>
    %55 = vector.multi_reduction <add>, %54, %cst_16 [1] : vector<6x128xf32> to vector<6xf32>
    %56 = vector.shape_cast %55 : vector<6xf32> to vector<6x1xf32>
    %57 = vector.extract_strided_slice %53 {offsets = [0, 0], sizes = [2, 1], strides = [1, 1]} : vector<6x1xf32> to vector<2x1xf32>
    %cst_17 = arith.constant dense<0.000000e+00> : vector<1xf32>
    %58 = vector.multi_reduction <add>, %57, %cst_17 [0] : vector<2x1xf32> to vector<1xf32>
    %59 = vector.shape_cast %58 : vector<1xf32> to vector<1x1xf32>
    %60 = vector.extract_strided_slice %56 {offsets = [0, 0], sizes = [2, 1], strides = [1, 1]} : vector<6x1xf32> to vector<2x1xf32>
    %cst_18 = arith.constant dense<0.000000e+00> : vector<1xf32>
    %61 = vector.multi_reduction <add>, %60, %cst_18 [0] : vector<2x1xf32> to vector<1xf32>
    %62 = vector.shape_cast %61 : vector<1xf32> to vector<1x1xf32>
    %cst_19 = arith.constant 3.906250e-03 : f32
    %63 = vector.broadcast %cst_19 : f32 to vector<1x1xf32>
    %64 = arith.mulf %59, %63 : vector<1x1xf32>
    %cst_20 = arith.constant 3.906250e-03 : f32
    %65 = vector.broadcast %cst_20 : f32 to vector<1x1xf32>
    %66 = arith.mulf %62, %65 : vector<1x1xf32>
    %67 = arith.mulf %64, %64 : vector<1x1xf32>
    %68 = arith.subf %66, %67 : vector<1x1xf32>
    %cst_21 = arith.constant 0.000000e+00 : f32
    %69 = vector.broadcast %cst_21 : f32 to vector<1x1xf32>
    %70 = arith.maximumf %68, %69 : vector<1x1xf32>
    %cst_22 = arith.constant 9.99999974E-6 : f32
    %71 = vector.broadcast %cst_22 : f32 to vector<1x1xf32>
    %72 = arith.addf %70, %71 : vector<1x1xf32>
    %73 = math.rsqrt %72 : vector<1x1xf32>
    %74 = vector.shape_cast %64 : vector<1x1xf32> to vector<1x1xf32>
    %75 = vector.broadcast %74 : vector<1x1xf32> to vector<2x1xf32>
    %76 = vector.shape_cast %73 : vector<1x1xf32> to vector<1x1xf32>
    %77 = vector.broadcast %76 : vector<1x1xf32> to vector<2x1xf32>
    %78 = vector.extract_strided_slice %53 {offsets = [2, 0], sizes = [2, 1], strides = [1, 1]} : vector<6x1xf32> to vector<2x1xf32>
    %cst_23 = arith.constant dense<0.000000e+00> : vector<1xf32>
    %79 = vector.multi_reduction <add>, %78, %cst_23 [0] : vector<2x1xf32> to vector<1xf32>
    %80 = vector.shape_cast %79 : vector<1xf32> to vector<1x1xf32>
    %81 = vector.extract_strided_slice %56 {offsets = [2, 0], sizes = [2, 1], strides = [1, 1]} : vector<6x1xf32> to vector<2x1xf32>
    %cst_24 = arith.constant dense<0.000000e+00> : vector<1xf32>
    %82 = vector.multi_reduction <add>, %81, %cst_24 [0] : vector<2x1xf32> to vector<1xf32>
    %83 = vector.shape_cast %82 : vector<1xf32> to vector<1x1xf32>
    %cst_25 = arith.constant 3.906250e-03 : f32
    %84 = vector.broadcast %cst_25 : f32 to vector<1x1xf32>
    %85 = arith.mulf %80, %84 : vector<1x1xf32>
    %cst_26 = arith.constant 3.906250e-03 : f32
    %86 = vector.broadcast %cst_26 : f32 to vector<1x1xf32>
    %87 = arith.mulf %83, %86 : vector<1x1xf32>
    %88 = arith.mulf %85, %85 : vector<1x1xf32>
    %89 = arith.subf %87, %88 : vector<1x1xf32>
    %cst_27 = arith.constant 0.000000e+00 : f32
    %90 = vector.broadcast %cst_27 : f32 to vector<1x1xf32>
    %91 = arith.maximumf %89, %90 : vector<1x1xf32>
    %cst_28 = arith.constant 9.99999974E-6 : f32
    %92 = vector.broadcast %cst_28 : f32 to vector<1x1xf32>
    %93 = arith.addf %91, %92 : vector<1x1xf32>
    %94 = math.rsqrt %93 : vector<1x1xf32>
    %95 = vector.shape_cast %85 : vector<1x1xf32> to vector<1x1xf32>
    %96 = vector.broadcast %95 : vector<1x1xf32> to vector<2x1xf32>
    %97 = vector.shape_cast %94 : vector<1x1xf32> to vector<1x1xf32>
    %98 = vector.broadcast %97 : vector<1x1xf32> to vector<2x1xf32>
    %99 = vector.extract_strided_slice %53 {offsets = [4, 0], sizes = [2, 1], strides = [1, 1]} : vector<6x1xf32> to vector<2x1xf32>
    %cst_29 = arith.constant dense<0.000000e+00> : vector<1xf32>
    %100 = vector.multi_reduction <add>, %99, %cst_29 [0] : vector<2x1xf32> to vector<1xf32>
    %101 = vector.shape_cast %100 : vector<1xf32> to vector<1x1xf32>
    %102 = vector.extract_strided_slice %56 {offsets = [4, 0], sizes = [2, 1], strides = [1, 1]} : vector<6x1xf32> to vector<2x1xf32>
    %cst_30 = arith.constant dense<0.000000e+00> : vector<1xf32>
    %103 = vector.multi_reduction <add>, %102, %cst_30 [0] : vector<2x1xf32> to vector<1xf32>
    %104 = vector.shape_cast %103 : vector<1xf32> to vector<1x1xf32>
    %cst_31 = arith.constant 3.906250e-03 : f32
    %105 = vector.broadcast %cst_31 : f32 to vector<1x1xf32>
    %106 = arith.mulf %101, %105 : vector<1x1xf32>
    %cst_32 = arith.constant 3.906250e-03 : f32
    %107 = vector.broadcast %cst_32 : f32 to vector<1x1xf32>
    %108 = arith.mulf %104, %107 : vector<1x1xf32>
    %109 = arith.mulf %106, %106 : vector<1x1xf32>
    %110 = arith.subf %108, %109 : vector<1x1xf32>
    %cst_33 = arith.constant 0.000000e+00 : f32
    %111 = vector.broadcast %cst_33 : f32 to vector<1x1xf32>
    %112 = arith.maximumf %110, %111 : vector<1x1xf32>
    %cst_34 = arith.constant 9.99999974E-6 : f32
    %113 = vector.broadcast %cst_34 : f32 to vector<1x1xf32>
    %114 = arith.addf %112, %113 : vector<1x1xf32>
    %115 = math.rsqrt %114 : vector<1x1xf32>
    %116 = vector.shape_cast %106 : vector<1x1xf32> to vector<1x1xf32>
    %117 = vector.broadcast %116 : vector<1x1xf32> to vector<2x1xf32>
    %118 = vector.shape_cast %115 : vector<1x1xf32> to vector<1x1xf32>
    %119 = vector.broadcast %118 : vector<1x1xf32> to vector<2x1xf32>
    %120 = tpu.concatenate %75, %96, %117 in 0 : vector<2x1xf32>, vector<2x1xf32>, vector<2x1xf32> -> vector<6x1xf32>
    %121 = tpu.concatenate %77, %98, %119 in 0 : vector<2x1xf32>, vector<2x1xf32>, vector<2x1xf32> -> vector<6x1xf32>
    %122 = vector.broadcast %120 : vector<6x1xf32> to vector<6x128xf32>
    %123 = arith.subf %51, %122 : vector<6x128xf32>
    %124 = vector.broadcast %121 : vector<6x1xf32> to vector<6x128xf32>
    %125 = arith.mulf %123, %124 : vector<6x128xf32>
    %c1_i32_35 = arith.constant 1 : i32
    %126 = tpu.dynamic_rotate %125 by %c1_i32_35 dim 1 : vector<6x128xf32>, i32 -> vector<6x128xf32>
    %cst_36 = arith.constant 0.000000e+00 : f32
    %127 = vector.shape_cast %2 : vector<1x128xi1> to vector<1x128xi1>
    %128 = vector.broadcast %127 : vector<1x128xi1> to vector<6x128xi1>
    %129 = vector.broadcast %cst_36 : f32 to vector<6x128xf32>
    %130 = arith.select %128, %129, %126 : vector<6x128xi1>, vector<6x128xf32>
    %c127_i32_37 = arith.constant 127 : i32
    %131 = tpu.dynamic_rotate %125 by %c127_i32_37 dim 1 : vector<6x128xf32>, i32 -> vector<6x128xf32>
    %cst_38 = arith.constant 0.000000e+00 : f32
    %132 = vector.shape_cast %4 : vector<1x128xi1> to vector<1x128xi1>
    %133 = vector.broadcast %132 : vector<1x128xi1> to vector<6x128xi1>
    %134 = vector.broadcast %cst_38 : f32 to vector<6x128xf32>
    %135 = arith.select %133, %134, %131 : vector<6x128xi1>, vector<6x128xf32>
    %c0_39 = arith.constant 0 : index
    %c0_40 = arith.constant 0 : index
    %136 = vector.load %arg5[%c0_39, %c0_40] : memref<6x27xf32, #tpu.memory_space<vmem>>, vector<6x27xf32>
    %137 = vector.extract_strided_slice %136 {offsets = [0, 0], sizes = [6, 1], strides = [1, 1]} : vector<6x27xf32> to vector<6x1xf32>
    %138 = vector.broadcast %137 : vector<6x1xf32> to vector<6x128xf32>
    %139 = arith.mulf %138, %130 : vector<6x128xf32>
    %140 = vector.extract_strided_slice %136 {offsets = [0, 1], sizes = [6, 1], strides = [1, 1]} : vector<6x27xf32> to vector<6x1xf32>
    %141 = vector.broadcast %140 : vector<6x1xf32> to vector<6x128xf32>
    %142 = arith.mulf %141, %125 : vector<6x128xf32>
    %143 = arith.addf %139, %142 : vector<6x128xf32>
    %144 = vector.extract_strided_slice %136 {offsets = [0, 2], sizes = [6, 1], strides = [1, 1]} : vector<6x27xf32> to vector<6x1xf32>
    %145 = vector.broadcast %144 : vector<6x1xf32> to vector<6x128xf32>
    %146 = arith.mulf %145, %135 : vector<6x128xf32>
    %147 = arith.addf %143, %146 : vector<6x128xf32>
    %148 = vector.extract_strided_slice %147 {offsets = [0, 0], sizes = [2, 128], strides = [1, 1]} : vector<6x128xf32> to vector<2x128xf32>
    %149 = vector.extract_strided_slice %147 {offsets = [2, 0], sizes = [2, 128], strides = [1, 1]} : vector<6x128xf32> to vector<2x128xf32>
    %150 = arith.addf %148, %149 : vector<2x128xf32>
    %151 = vector.extract_strided_slice %147 {offsets = [4, 0], sizes = [2, 128], strides = [1, 1]} : vector<6x128xf32> to vector<2x128xf32>
    %152 = arith.addf %150, %151 : vector<2x128xf32>
    %c0_41 = arith.constant 0 : index
    %153 = memref.load %arg6[%c0_41] : memref<9xf32, #tpu.memory_space<smem>>
    %154 = vector.broadcast %153 : f32 to vector<2x128xf32>
    %155 = arith.addf %152, %154 : vector<2x128xf32>
    %156 = arith.negf %155 : vector<2x128xf32>
    %157 = math.exp %156 : vector<2x128xf32>
    %cst_42 = arith.constant 1.000000e+00 : f32
    %158 = vector.broadcast %cst_42 : f32 to vector<2x128xf32>
    %159 = arith.addf %158, %157 : vector<2x128xf32>
    %160 = arith.divf %158, %159 : vector<2x128xf32>
    %161 = vector.extract_strided_slice %136 {offsets = [0, 3], sizes = [6, 1], strides = [1, 1]} : vector<6x27xf32> to vector<6x1xf32>
    %162 = vector.broadcast %161 : vector<6x1xf32> to vector<6x128xf32>
    %163 = arith.mulf %162, %130 : vector<6x128xf32>
    %164 = vector.extract_strided_slice %136 {offsets = [0, 4], sizes = [6, 1], strides = [1, 1]} : vector<6x27xf32> to vector<6x1xf32>
    %165 = vector.broadcast %164 : vector<6x1xf32> to vector<6x128xf32>
    %166 = arith.mulf %165, %125 : vector<6x128xf32>
    %167 = arith.addf %163, %166 : vector<6x128xf32>
    %168 = vector.extract_strided_slice %136 {offsets = [0, 5], sizes = [6, 1], strides = [1, 1]} : vector<6x27xf32> to vector<6x1xf32>
    %169 = vector.broadcast %168 : vector<6x1xf32> to vector<6x128xf32>
    %170 = arith.mulf %169, %135 : vector<6x128xf32>
    %171 = arith.addf %167, %170 : vector<6x128xf32>
    %172 = vector.extract_strided_slice %171 {offsets = [0, 0], sizes = [2, 128], strides = [1, 1]} : vector<6x128xf32> to vector<2x128xf32>
    %173 = vector.extract_strided_slice %171 {offsets = [2, 0], sizes = [2, 128], strides = [1, 1]} : vector<6x128xf32> to vector<2x128xf32>
    %174 = arith.addf %172, %173 : vector<2x128xf32>
    %175 = vector.extract_strided_slice %171 {offsets = [4, 0], sizes = [2, 128], strides = [1, 1]} : vector<6x128xf32> to vector<2x128xf32>
    %176 = arith.addf %174, %175 : vector<2x128xf32>
    %c1 = arith.constant 1 : index
    %177 = memref.load %arg6[%c1] : memref<9xf32, #tpu.memory_space<smem>>
    %178 = vector.broadcast %177 : f32 to vector<2x128xf32>
    %179 = arith.addf %176, %178 : vector<2x128xf32>
    %180 = arith.negf %179 : vector<2x128xf32>
    %181 = math.exp %180 : vector<2x128xf32>
    %cst_43 = arith.constant 1.000000e+00 : f32
    %182 = vector.broadcast %cst_43 : f32 to vector<2x128xf32>
    %183 = arith.addf %182, %181 : vector<2x128xf32>
    %184 = arith.divf %182, %183 : vector<2x128xf32>
    %185 = vector.extract_strided_slice %136 {offsets = [0, 6], sizes = [6, 1], strides = [1, 1]} : vector<6x27xf32> to vector<6x1xf32>
    %186 = vector.broadcast %185 : vector<6x1xf32> to vector<6x128xf32>
    %187 = arith.mulf %186, %130 : vector<6x128xf32>
    %188 = vector.extract_strided_slice %136 {offsets = [0, 7], sizes = [6, 1], strides = [1, 1]} : vector<6x27xf32> to vector<6x1xf32>
    %189 = vector.broadcast %188 : vector<6x1xf32> to vector<6x128xf32>
    %190 = arith.mulf %189, %125 : vector<6x128xf32>
    %191 = arith.addf %187, %190 : vector<6x128xf32>
    %192 = vector.extract_strided_slice %136 {offsets = [0, 8], sizes = [6, 1], strides = [1, 1]} : vector<6x27xf32> to vector<6x1xf32>
    %193 = vector.broadcast %192 : vector<6x1xf32> to vector<6x128xf32>
    %194 = arith.mulf %193, %135 : vector<6x128xf32>
    %195 = arith.addf %191, %194 : vector<6x128xf32>
    %196 = vector.extract_strided_slice %195 {offsets = [0, 0], sizes = [2, 128], strides = [1, 1]} : vector<6x128xf32> to vector<2x128xf32>
    %197 = vector.extract_strided_slice %195 {offsets = [2, 0], sizes = [2, 128], strides = [1, 1]} : vector<6x128xf32> to vector<2x128xf32>
    %198 = arith.addf %196, %197 : vector<2x128xf32>
    %199 = vector.extract_strided_slice %195 {offsets = [4, 0], sizes = [2, 128], strides = [1, 1]} : vector<6x128xf32> to vector<2x128xf32>
    %200 = arith.addf %198, %199 : vector<2x128xf32>
    %c2 = arith.constant 2 : index
    %201 = memref.load %arg6[%c2] : memref<9xf32, #tpu.memory_space<smem>>
    %202 = vector.broadcast %201 : f32 to vector<2x128xf32>
    %203 = arith.addf %200, %202 : vector<2x128xf32>
    %204 = arith.negf %203 : vector<2x128xf32>
    %205 = math.exp %204 : vector<2x128xf32>
    %cst_44 = arith.constant 1.000000e+00 : f32
    %206 = vector.broadcast %cst_44 : f32 to vector<2x128xf32>
    %207 = arith.addf %206, %205 : vector<2x128xf32>
    %208 = arith.divf %206, %207 : vector<2x128xf32>
    %209 = vector.extract_strided_slice %136 {offsets = [0, 9], sizes = [6, 1], strides = [1, 1]} : vector<6x27xf32> to vector<6x1xf32>
    %210 = vector.broadcast %209 : vector<6x1xf32> to vector<6x128xf32>
    %211 = arith.mulf %210, %130 : vector<6x128xf32>
    %212 = vector.extract_strided_slice %136 {offsets = [0, 10], sizes = [6, 1], strides = [1, 1]} : vector<6x27xf32> to vector<6x1xf32>
    %213 = vector.broadcast %212 : vector<6x1xf32> to vector<6x128xf32>
    %214 = arith.mulf %213, %125 : vector<6x128xf32>
    %215 = arith.addf %211, %214 : vector<6x128xf32>
    %216 = vector.extract_strided_slice %136 {offsets = [0, 11], sizes = [6, 1], strides = [1, 1]} : vector<6x27xf32> to vector<6x1xf32>
    %217 = vector.broadcast %216 : vector<6x1xf32> to vector<6x128xf32>
    %218 = arith.mulf %217, %135 : vector<6x128xf32>
    %219 = arith.addf %215, %218 : vector<6x128xf32>
    %220 = vector.extract_strided_slice %219 {offsets = [0, 0], sizes = [2, 128], strides = [1, 1]} : vector<6x128xf32> to vector<2x128xf32>
    %221 = vector.extract_strided_slice %219 {offsets = [2, 0], sizes = [2, 128], strides = [1, 1]} : vector<6x128xf32> to vector<2x128xf32>
    %222 = arith.addf %220, %221 : vector<2x128xf32>
    %223 = vector.extract_strided_slice %219 {offsets = [4, 0], sizes = [2, 128], strides = [1, 1]} : vector<6x128xf32> to vector<2x128xf32>
    %224 = arith.addf %222, %223 : vector<2x128xf32>
    %c3 = arith.constant 3 : index
    %225 = memref.load %arg6[%c3] : memref<9xf32, #tpu.memory_space<smem>>
    %226 = vector.broadcast %225 : f32 to vector<2x128xf32>
    %227 = arith.addf %224, %226 : vector<2x128xf32>
    %228 = arith.negf %227 : vector<2x128xf32>
    %229 = math.exp %228 : vector<2x128xf32>
    %cst_45 = arith.constant 1.000000e+00 : f32
    %230 = vector.broadcast %cst_45 : f32 to vector<2x128xf32>
    %231 = arith.addf %230, %229 : vector<2x128xf32>
    %232 = arith.divf %230, %231 : vector<2x128xf32>
    %233 = vector.extract_strided_slice %136 {offsets = [0, 12], sizes = [6, 1], strides = [1, 1]} : vector<6x27xf32> to vector<6x1xf32>
    %234 = vector.broadcast %233 : vector<6x1xf32> to vector<6x128xf32>
    %235 = arith.mulf %234, %130 : vector<6x128xf32>
    %236 = vector.extract_strided_slice %136 {offsets = [0, 13], sizes = [6, 1], strides = [1, 1]} : vector<6x27xf32> to vector<6x1xf32>
    %237 = vector.broadcast %236 : vector<6x1xf32> to vector<6x128xf32>
    %238 = arith.mulf %237, %125 : vector<6x128xf32>
    %239 = arith.addf %235, %238 : vector<6x128xf32>
    %240 = vector.extract_strided_slice %136 {offsets = [0, 14], sizes = [6, 1], strides = [1, 1]} : vector<6x27xf32> to vector<6x1xf32>
    %241 = vector.broadcast %240 : vector<6x1xf32> to vector<6x128xf32>
    %242 = arith.mulf %241, %135 : vector<6x128xf32>
    %243 = arith.addf %239, %242 : vector<6x128xf32>
    %244 = vector.extract_strided_slice %243 {offsets = [0, 0], sizes = [2, 128], strides = [1, 1]} : vector<6x128xf32> to vector<2x128xf32>
    %245 = vector.extract_strided_slice %243 {offsets = [2, 0], sizes = [2, 128], strides = [1, 1]} : vector<6x128xf32> to vector<2x128xf32>
    %246 = arith.addf %244, %245 : vector<2x128xf32>
    %247 = vector.extract_strided_slice %243 {offsets = [4, 0], sizes = [2, 128], strides = [1, 1]} : vector<6x128xf32> to vector<2x128xf32>
    %248 = arith.addf %246, %247 : vector<2x128xf32>
    %c4 = arith.constant 4 : index
    %249 = memref.load %arg6[%c4] : memref<9xf32, #tpu.memory_space<smem>>
    %250 = vector.broadcast %249 : f32 to vector<2x128xf32>
    %251 = arith.addf %248, %250 : vector<2x128xf32>
    %252 = arith.negf %251 : vector<2x128xf32>
    %253 = math.exp %252 : vector<2x128xf32>
    %cst_46 = arith.constant 1.000000e+00 : f32
    %254 = vector.broadcast %cst_46 : f32 to vector<2x128xf32>
    %255 = arith.addf %254, %253 : vector<2x128xf32>
    %256 = arith.divf %254, %255 : vector<2x128xf32>
    %257 = vector.extract_strided_slice %136 {offsets = [0, 15], sizes = [6, 1], strides = [1, 1]} : vector<6x27xf32> to vector<6x1xf32>
    %258 = vector.broadcast %257 : vector<6x1xf32> to vector<6x128xf32>
    %259 = arith.mulf %258, %130 : vector<6x128xf32>
    %260 = vector.extract_strided_slice %136 {offsets = [0, 16], sizes = [6, 1], strides = [1, 1]} : vector<6x27xf32> to vector<6x1xf32>
    %261 = vector.broadcast %260 : vector<6x1xf32> to vector<6x128xf32>
    %262 = arith.mulf %261, %125 : vector<6x128xf32>
    %263 = arith.addf %259, %262 : vector<6x128xf32>
    %264 = vector.extract_strided_slice %136 {offsets = [0, 17], sizes = [6, 1], strides = [1, 1]} : vector<6x27xf32> to vector<6x1xf32>
    %265 = vector.broadcast %264 : vector<6x1xf32> to vector<6x128xf32>
    %266 = arith.mulf %265, %135 : vector<6x128xf32>
    %267 = arith.addf %263, %266 : vector<6x128xf32>
    %268 = vector.extract_strided_slice %267 {offsets = [0, 0], sizes = [2, 128], strides = [1, 1]} : vector<6x128xf32> to vector<2x128xf32>
    %269 = vector.extract_strided_slice %267 {offsets = [2, 0], sizes = [2, 128], strides = [1, 1]} : vector<6x128xf32> to vector<2x128xf32>
    %270 = arith.addf %268, %269 : vector<2x128xf32>
    %271 = vector.extract_strided_slice %267 {offsets = [4, 0], sizes = [2, 128], strides = [1, 1]} : vector<6x128xf32> to vector<2x128xf32>
    %272 = arith.addf %270, %271 : vector<2x128xf32>
    %c5 = arith.constant 5 : index
    %273 = memref.load %arg6[%c5] : memref<9xf32, #tpu.memory_space<smem>>
    %274 = vector.broadcast %273 : f32 to vector<2x128xf32>
    %275 = arith.addf %272, %274 : vector<2x128xf32>
    %276 = arith.negf %275 : vector<2x128xf32>
    %277 = math.exp %276 : vector<2x128xf32>
    %cst_47 = arith.constant 1.000000e+00 : f32
    %278 = vector.broadcast %cst_47 : f32 to vector<2x128xf32>
    %279 = arith.addf %278, %277 : vector<2x128xf32>
    %280 = arith.divf %278, %279 : vector<2x128xf32>
    %281 = vector.extract_strided_slice %136 {offsets = [0, 18], sizes = [6, 1], strides = [1, 1]} : vector<6x27xf32> to vector<6x1xf32>
    %282 = vector.broadcast %281 : vector<6x1xf32> to vector<6x128xf32>
    %283 = arith.mulf %282, %130 : vector<6x128xf32>
    %284 = vector.extract_strided_slice %136 {offsets = [0, 19], sizes = [6, 1], strides = [1, 1]} : vector<6x27xf32> to vector<6x1xf32>
    %285 = vector.broadcast %284 : vector<6x1xf32> to vector<6x128xf32>
    %286 = arith.mulf %285, %125 : vector<6x128xf32>
    %287 = arith.addf %283, %286 : vector<6x128xf32>
    %288 = vector.extract_strided_slice %136 {offsets = [0, 20], sizes = [6, 1], strides = [1, 1]} : vector<6x27xf32> to vector<6x1xf32>
    %289 = vector.broadcast %288 : vector<6x1xf32> to vector<6x128xf32>
    %290 = arith.mulf %289, %135 : vector<6x128xf32>
    %291 = arith.addf %287, %290 : vector<6x128xf32>
    %292 = vector.extract_strided_slice %291 {offsets = [0, 0], sizes = [2, 128], strides = [1, 1]} : vector<6x128xf32> to vector<2x128xf32>
    %293 = vector.extract_strided_slice %291 {offsets = [2, 0], sizes = [2, 128], strides = [1, 1]} : vector<6x128xf32> to vector<2x128xf32>
    %294 = arith.addf %292, %293 : vector<2x128xf32>
    %295 = vector.extract_strided_slice %291 {offsets = [4, 0], sizes = [2, 128], strides = [1, 1]} : vector<6x128xf32> to vector<2x128xf32>
    %296 = arith.addf %294, %295 : vector<2x128xf32>
    %c6 = arith.constant 6 : index
    %297 = memref.load %arg6[%c6] : memref<9xf32, #tpu.memory_space<smem>>
    %298 = vector.broadcast %297 : f32 to vector<2x128xf32>
    %299 = arith.addf %296, %298 : vector<2x128xf32>
    %300 = arith.negf %299 : vector<2x128xf32>
    %301 = math.exp %300 : vector<2x128xf32>
    %cst_48 = arith.constant 1.000000e+00 : f32
    %302 = vector.broadcast %cst_48 : f32 to vector<2x128xf32>
    %303 = arith.addf %302, %301 : vector<2x128xf32>
    %304 = arith.divf %302, %303 : vector<2x128xf32>
    %305 = vector.extract_strided_slice %136 {offsets = [0, 21], sizes = [6, 1], strides = [1, 1]} : vector<6x27xf32> to vector<6x1xf32>
    %306 = vector.broadcast %305 : vector<6x1xf32> to vector<6x128xf32>
    %307 = arith.mulf %306, %130 : vector<6x128xf32>
    %308 = vector.extract_strided_slice %136 {offsets = [0, 22], sizes = [6, 1], strides = [1, 1]} : vector<6x27xf32> to vector<6x1xf32>
    %309 = vector.broadcast %308 : vector<6x1xf32> to vector<6x128xf32>
    %310 = arith.mulf %309, %125 : vector<6x128xf32>
    %311 = arith.addf %307, %310 : vector<6x128xf32>
    %312 = vector.extract_strided_slice %136 {offsets = [0, 23], sizes = [6, 1], strides = [1, 1]} : vector<6x27xf32> to vector<6x1xf32>
    %313 = vector.broadcast %312 : vector<6x1xf32> to vector<6x128xf32>
    %314 = arith.mulf %313, %135 : vector<6x128xf32>
    %315 = arith.addf %311, %314 : vector<6x128xf32>
    %316 = vector.extract_strided_slice %315 {offsets = [0, 0], sizes = [2, 128], strides = [1, 1]} : vector<6x128xf32> to vector<2x128xf32>
    %317 = vector.extract_strided_slice %315 {offsets = [2, 0], sizes = [2, 128], strides = [1, 1]} : vector<6x128xf32> to vector<2x128xf32>
    %318 = arith.addf %316, %317 : vector<2x128xf32>
    %319 = vector.extract_strided_slice %315 {offsets = [4, 0], sizes = [2, 128], strides = [1, 1]} : vector<6x128xf32> to vector<2x128xf32>
    %320 = arith.addf %318, %319 : vector<2x128xf32>
    %c7 = arith.constant 7 : index
    %321 = memref.load %arg6[%c7] : memref<9xf32, #tpu.memory_space<smem>>
    %322 = vector.broadcast %321 : f32 to vector<2x128xf32>
    %323 = arith.addf %320, %322 : vector<2x128xf32>
    %324 = arith.negf %323 : vector<2x128xf32>
    %325 = math.exp %324 : vector<2x128xf32>
    %cst_49 = arith.constant 1.000000e+00 : f32
    %326 = vector.broadcast %cst_49 : f32 to vector<2x128xf32>
    %327 = arith.addf %326, %325 : vector<2x128xf32>
    %328 = arith.divf %326, %327 : vector<2x128xf32>
    %329 = vector.extract_strided_slice %136 {offsets = [0, 24], sizes = [6, 1], strides = [1, 1]} : vector<6x27xf32> to vector<6x1xf32>
    %330 = vector.broadcast %329 : vector<6x1xf32> to vector<6x128xf32>
    %331 = arith.mulf %330, %130 : vector<6x128xf32>
    %332 = vector.extract_strided_slice %136 {offsets = [0, 25], sizes = [6, 1], strides = [1, 1]} : vector<6x27xf32> to vector<6x1xf32>
    %333 = vector.broadcast %332 : vector<6x1xf32> to vector<6x128xf32>
    %334 = arith.mulf %333, %125 : vector<6x128xf32>
    %335 = arith.addf %331, %334 : vector<6x128xf32>
    %336 = vector.extract_strided_slice %136 {offsets = [0, 26], sizes = [6, 1], strides = [1, 1]} : vector<6x27xf32> to vector<6x1xf32>
    %337 = vector.broadcast %336 : vector<6x1xf32> to vector<6x128xf32>
    %338 = arith.mulf %337, %135 : vector<6x128xf32>
    %339 = arith.addf %335, %338 : vector<6x128xf32>
    %340 = vector.extract_strided_slice %339 {offsets = [0, 0], sizes = [2, 128], strides = [1, 1]} : vector<6x128xf32> to vector<2x128xf32>
    %341 = vector.extract_strided_slice %339 {offsets = [2, 0], sizes = [2, 128], strides = [1, 1]} : vector<6x128xf32> to vector<2x128xf32>
    %342 = arith.addf %340, %341 : vector<2x128xf32>
    %343 = vector.extract_strided_slice %339 {offsets = [4, 0], sizes = [2, 128], strides = [1, 1]} : vector<6x128xf32> to vector<2x128xf32>
    %344 = arith.addf %342, %343 : vector<2x128xf32>
    %c8 = arith.constant 8 : index
    %345 = memref.load %arg6[%c8] : memref<9xf32, #tpu.memory_space<smem>>
    %346 = vector.broadcast %345 : f32 to vector<2x128xf32>
    %347 = arith.addf %344, %346 : vector<2x128xf32>
    %348 = arith.negf %347 : vector<2x128xf32>
    %349 = math.exp %348 : vector<2x128xf32>
    %cst_50 = arith.constant 1.000000e+00 : f32
    %350 = vector.broadcast %cst_50 : f32 to vector<2x128xf32>
    %351 = arith.addf %350, %349 : vector<2x128xf32>
    %352 = arith.divf %350, %351 : vector<2x128xf32>
    %353 = tpu.concatenate %160, %184, %208, %232, %256, %280, %304, %328, %352 in 1 : vector<2x128xf32>, vector<2x128xf32>, vector<2x128xf32>, vector<2x128xf32>, vector<2x128xf32>, vector<2x128xf32>, vector<2x128xf32>, vector<2x128xf32>, vector<2x128xf32> -> vector<2x1152xf32>
    %354 = arith.truncf %353 : vector<2x1152xf32> to vector<2x1152xbf16>
    tpu.wait_dma2 semaphore(%arg15 : memref<!tpu.dma_semaphore, #tpu.memory_space<semaphore_mem>>) src(%arg7 : memref<1152x384xbf16, #tpu.memory_space<any>>) dst(%arg14 : memref<1152x384xbf16, #tpu.memory_space<vmem>>)
    %c0_51 = arith.constant 0 : index
    %c0_52 = arith.constant 0 : index
    %355 = vector.load %arg14[%c0_51, %c0_52] : memref<1152x384xbf16, #tpu.memory_space<vmem>>, vector<1152x384xbf16>
    %cst_53 = arith.constant dense<0.000000e+00> : vector<2x384xf32>
    %356 = tpu.matmul %354, %355, %cst_53 {dimension_numbers = #tpu.dot_dimension_numbers<[1], [0], [0], [1], [0, 0, 1, 1], [], []>} : vector<2x1152xbf16>, vector<1152x384xbf16>, vector<2x384xf32> -> vector<2x384xf32>
    %c0_54 = arith.constant 0 : index
    %c0_55 = arith.constant 0 : index
    %357 = vector.load %arg8[%c0_54, %c0_55] : memref<1x384xf32, #tpu.memory_space<vmem>>, vector<1x384xf32>
    %358 = vector.broadcast %357 : vector<1x384xf32> to vector<2x384xf32>
    %359 = arith.addf %356, %358 : vector<2x384xf32>
    %360 = arith.negf %359 : vector<2x384xf32>
    %361 = math.exp %360 : vector<2x384xf32>
    %cst_56 = arith.constant 1.000000e+00 : f32
    %362 = vector.broadcast %cst_56 : f32 to vector<2x384xf32>
    %363 = arith.addf %362, %361 : vector<2x384xf32>
    %364 = arith.divf %362, %363 : vector<2x384xf32>
    %cst_57 = arith.constant dense<0.000000e+00> : vector<384xf32>
    %365 = vector.multi_reduction <add>, %364, %cst_57 [0] : vector<2x384xf32> to vector<384xf32>
    %366 = vector.shape_cast %365 : vector<384xf32> to vector<1x384xf32>
    %cst_58 = arith.constant 2.000000e+00 : f32
    %367 = vector.broadcast %cst_58 : f32 to vector<1x384xf32>
    %368 = arith.divf %366, %367 : vector<1x384xf32>
    %369 = arith.mulf %364, %364 : vector<2x384xf32>
    %cst_59 = arith.constant dense<0.000000e+00> : vector<384xf32>
    %370 = vector.multi_reduction <add>, %369, %cst_59 [0] : vector<2x384xf32> to vector<384xf32>
    %371 = vector.shape_cast %370 : vector<384xf32> to vector<1x384xf32>
    %cst_60 = arith.constant 2.000000e+00 : f32
    %372 = vector.broadcast %cst_60 : f32 to vector<1x384xf32>
    %373 = arith.divf %371, %372 : vector<1x384xf32>
    %374 = arith.mulf %368, %368 : vector<1x384xf32>
    %375 = arith.subf %373, %374 : vector<1x384xf32>
    %cst_61 = arith.constant 0.000000e+00 : f32
    %376 = vector.broadcast %cst_61 : f32 to vector<1x384xf32>
    %377 = arith.maximumf %375, %376 : vector<1x384xf32>
    %378 = vector.broadcast %368 : vector<1x384xf32> to vector<2x384xf32>
    %379 = arith.subf %364, %378 : vector<2x384xf32>
    %cst_62 = arith.constant 9.99999974E-6 : f32
    %380 = vector.broadcast %cst_62 : f32 to vector<1x384xf32>
    %381 = arith.addf %377, %380 : vector<1x384xf32>
    %382 = math.rsqrt %381 : vector<1x384xf32>
    %383 = vector.broadcast %382 : vector<1x384xf32> to vector<2x384xf32>
    %384 = arith.mulf %379, %383 : vector<2x384xf32>
    tpu.wait_dma2 semaphore(%arg17 : memref<!tpu.dma_semaphore, #tpu.memory_space<semaphore_mem>>) src(%arg9 : memref<384x128xbf16, #tpu.memory_space<any>>) dst(%arg16 : memref<384x128xbf16, #tpu.memory_space<vmem>>)
    %385 = arith.truncf %384 : vector<2x384xf32> to vector<2x384xbf16>
    %c0_63 = arith.constant 0 : index
    %c0_64 = arith.constant 0 : index
    %386 = vector.load %arg16[%c0_63, %c0_64] : memref<384x128xbf16, #tpu.memory_space<vmem>>, vector<384x128xbf16>
    %cst_65 = arith.constant dense<0.000000e+00> : vector<2x128xf32>
    %387 = tpu.matmul %385, %386, %cst_65 {dimension_numbers = #tpu.dot_dimension_numbers<[1], [0], [0], [1], [0, 0, 1, 1], [], []>} : vector<2x384xbf16>, vector<384x128xbf16>, vector<2x128xf32> -> vector<2x128xf32>
    %c0_66 = arith.constant 0 : index
    %c0_67 = arith.constant 0 : index
    %388 = vector.load %arg10[%c0_66, %c0_67] : memref<1x128xf32, #tpu.memory_space<vmem>>, vector<1x128xf32>
    %389 = vector.broadcast %388 : vector<1x128xf32> to vector<2x128xf32>
    %390 = arith.addf %387, %389 : vector<2x128xf32>
    %391 = arith.negf %390 : vector<2x128xf32>
    %392 = math.exp %391 : vector<2x128xf32>
    %cst_68 = arith.constant 1.000000e+00 : f32
    %393 = vector.broadcast %cst_68 : f32 to vector<2x128xf32>
    %394 = arith.addf %393, %392 : vector<2x128xf32>
    %395 = arith.divf %393, %394 : vector<2x128xf32>
    %c0_69 = arith.constant 0 : index
    %c0_70 = arith.constant 0 : index
    %396 = vector.load %arg11[%c0_69, %c0_70] : memref<128x4xf32, #tpu.memory_space<vmem>>, vector<128x4xf32>
    %cst_71 = arith.constant dense<0.000000e+00> : vector<2x4xf32>
    %397 = tpu.matmul %395, %396, %cst_71 {dimension_numbers = #tpu.dot_dimension_numbers<[1], [0], [0], [1], [0, 0, 1, 1], [], []>} : vector<2x128xf32>, vector<128x4xf32>, vector<2x4xf32> -> vector<2x4xf32>
    %c0_72 = arith.constant 0 : index
    %c0_73 = arith.constant 0 : index
    %398 = vector.load %arg12[%c0_72, %c0_73] : memref<1x4xf32, #tpu.memory_space<vmem>>, vector<1x4xf32>
    %399 = vector.broadcast %398 : vector<1x4xf32> to vector<2x4xf32>
    %400 = arith.addf %397, %399 : vector<2x4xf32>
    %c0_74 = arith.constant 0 : index
    %c0_75 = arith.constant 0 : index
    %401 = vector.load %arg13[%c0_74, %c0_75] : memref<2x4xf32, #tpu.memory_space<vmem>>, vector<2x4xf32>
    tpu.vector_store %arg13[%c0_74, %c0_75], %400 {strides = array<i32>} : memref<2x4xf32, #tpu.memory_space<vmem>>, vector<2x4xf32>,
    return
  }
}

</mosaic_0001>

<llo_original>
// kernel: tpu_custom_call.1
$region0: #{tpu_custom_call.1}
  #allocation0 [shape = 'u32[]', space=smem, size = 0x4, offset = 0x4, fixed_abs, tag = 'smem constant byte address 0x4 - core index']
  #allocation1 [shape = 'u32[72,128]{1,0:T(1,128)}', space=vmem, size = 0x9000, scoped, tag = 'internal scratch']
  #allocation2 [shape = 'bf16[1152,384]{1,0:T(8,128)(2,1)}', space=vmem, size = 0xd8000, scoped, tag = 'scratch operand']
  #allocation3 [shape = 's32[1]{0}', space=sflag, size = 0x4, scoped, tag = 'scratch operand']
  #allocation4 [shape = 'bf16[384,128]{1,0:T(8,128)(2,1)}', space=vmem, size = 0x18000, scoped, tag = 'scratch operand']
  #allocation5 [shape = 's32[1]{0}', space=sflag, size = 0x4, scoped, tag = 'scratch operand']
  #allocation10 [shape = 's32[]', space=sflag, size = 0x4, offset = 0, fixed_abs, tag = 'sflag constant byte address 0x0 - dummy sync flag']
  #allocation11 [shape = 's32[]', space=sflag, size = 0x4, offset = 0, fixed_abs, tag = 'sflag constant byte address 0x0 - dummy sync flag']
  #allocation12 [shape = 'u32[]', space=smem, size = 0x4, offset = 0x44, fixed_abs, tag = 'smem constant byte address 0x44 - assertion arg 0']
  #allocation13 [shape = 'u32[]', space=smem, size = 0x4, offset = 0x48, fixed_abs, tag = 'smem constant byte address 0x48 - assertion arg 1']
  #allocation14 [shape = 's32[]', space=sflag, size = 0x4, offset = 0, fixed_abs, tag = 'sflag constant byte address 0x0 - dummy sync flag']
  #allocation15 [shape = 's32[]', space=sflag, size = 0x4, offset = 0, fixed_abs, tag = 'sflag constant byte address 0x0 - dummy sync flag']
  %s0 = inlined_call_operand.vmem [shape: f32[2,16], index: 0, kind: input, shape index: {}]
  %s1 = inlined_call_operand.vmem [shape: f32[16,128], index: 1, kind: input, shape index: {}]
  %s2 = inlined_call_operand.vmem [shape: f32[1,128], index: 2, kind: input, shape index: {}]
  %s3 = inlined_call_operand.vmem [shape: f32[6,3], index: 3, kind: input, shape index: {}]
  %s4 = inlined_call_operand.vmem [shape: f32[6,1], index: 4, kind: input, shape index: {}]
  %s5 = inlined_call_operand.vmem [shape: f32[6,27], index: 5, kind: input, shape index: {}]
  %s6 = inlined_call_operand.vmem [shape: f32[9], index: 6, kind: input, shape index: {}]
  %s7 = inlined_call_operand.hbm [shape: bf16[1152,384], index: 7, kind: input, shape index: {}]
  %s8 = inlined_call_operand.vmem [shape: f32[1,384], index: 8, kind: input, shape index: {}]
  %s9 = inlined_call_operand.hbm [shape: bf16[384,128], index: 9, kind: input, shape index: {}]
  %s10 = inlined_call_operand.vmem [shape: f32[1,128], index: 10, kind: input, shape index: {}]
  %s11 = inlined_call_operand.vmem [shape: f32[128,4], index: 11, kind: input, shape index: {}]
  %s12 = inlined_call_operand.vmem [shape: f32[1,4], index: 12, kind: input, shape index: {}]
  %s13 = inlined_call_operand.hbm [shape: f32[2,4], index: 13, kind: output, shape index: {}]
  %s14 = sld [smem:[#allocation0]]
  $region66: #{tpu_custom_call.1} parent=0
    _
  %s16 = ssub.s32 1, %s14
  %s17 = scalar_select 0, %s16, %s14
  $region1: #{tpu_custom_call.1} parent=0
    #allocation6 [shape = 'u8[512]{0}', space=smem, size = 0x200, scoped, tag = 'input window, operand 6, single buffered']
    #allocation7 [shape = 's32[1]{0}', space=sflag, size = 0x4, scoped, tag = 'scoped memory for tpu_custom_call.1']
    #allocation8 [shape = 's32[1]{0}', space=sflag, size = 0x4, scoped, tag = 'scoped memory for tpu_custom_call.1']
    #allocation9 [shape = 'u8[1024]{0}', space=vmem, size = 0x400, scoped, tag = 'output window, operand 0, single buffered']
    %18 = vsyncpa [#allocation8], 0
    %19 = vsyncpa [#allocation7], 0
    // Predicated region
    $region2: #{tpu_custom_call.1} parent=1 // pred_check
      _
    $region3: #{tpu_custom_call.1} parent=1 // pred_check_branch
      %21 = sbr.rel (0) target = $region5
    $region4: #{tpu_custom_call.1} parent=1 // pred_region
      _
    $region5: #{tpu_custom_call.1} parent=1 // pred_fallthru
      _
    // Predicated region
    $region6: #{tpu_custom_call.1} parent=1 // pred_check
      _
    $region7: #{tpu_custom_call.1} parent=1 // pred_check_branch
      %23 = sbr.rel (0) target = $region9
    $region8: #{tpu_custom_call.1} parent=1 // pred_region
      _
    $region9: #{tpu_custom_call.1} parent=1 // pred_fallthru
      _
    // Predicated region
    $region10: #{tpu_custom_call.1} parent=1 // pred_check
      _
    $region11: #{tpu_custom_call.1} parent=1 // pred_check_branch
      %25 = sbr.rel (0) target = $region13
    $region12: #{tpu_custom_call.1} parent=1 // pred_region
      _
    $region13: #{tpu_custom_call.1} parent=1 // pred_fallthru
      _
    // Predicated region
    $region14: #{tpu_custom_call.1} parent=1 // pred_check
      _
    $region15: #{tpu_custom_call.1} parent=1 // pred_check_branch
      %27 = sbr.rel (0) target = $region17
    $region16: #{tpu_custom_call.1} parent=1 // pred_region
      _
    $region17: #{tpu_custom_call.1} parent=1 // pred_fallthru
      _
    // Predicated region
    $region18: #{tpu_custom_call.1} parent=1 // pred_check
      _
    $region19: #{tpu_custom_call.1} parent=1 // pred_check_branch
      %29 = sbr.rel (0) target = $region21
    $region20: #{tpu_custom_call.1} parent=1 // pred_region
      _
    $region21: #{tpu_custom_call.1} parent=1 // pred_fallthru
      _
    // Predicated region
    $region22: #{tpu_custom_call.1} parent=1 // pred_check
      _
    $region23: #{tpu_custom_call.1} parent=1 // pred_check_branch
      %31 = sbr.rel (0) target = $region25
    $region24: #{tpu_custom_call.1} parent=1 // pred_region
      _
    $region25: #{tpu_custom_call.1} parent=1 // pred_fallthru
      _
    // Predicated region
    $region26: #{tpu_custom_call.1} parent=1 // pred_check
      _
    $region27: #{tpu_custom_call.1} parent=1 // pred_check_branch
      %33 = sbr.rel (0) target = $region29
    $region28: #{tpu_custom_call.1} parent=1 // pred_region
      %35 = vsyncadd [#allocation8], 0
      %s37 = sshll.u32 %s6, 4
      %s38 = int_to_ptr.vmem [resolvable:$true] %s37
      %40 = dma.vmem_to_smem %s38, 16, [#allocation6], [#allocation8]
    $region29: #{tpu_custom_call.1} parent=1 // pred_fallthru
      _
    // Predicated region
    $region30: #{tpu_custom_call.1} parent=1 // pred_check
      _
    $region31: #{tpu_custom_call.1} parent=1 // pred_check_branch
      %42 = sbr.rel (0) target = $region33
    $region32: #{tpu_custom_call.1} parent=1 // pred_region
      _
    $region33: #{tpu_custom_call.1} parent=1 // pred_fallthru
      _
    // Predicated region
    $region34: #{tpu_custom_call.1} parent=1 // pred_check
      _
    $region35: #{tpu_custom_call.1} parent=1 // pred_check_branch
      %44 = sbr.rel (0) target = $region37
    $region36: #{tpu_custom_call.1} parent=1 // pred_region
      _
    $region37: #{tpu_custom_call.1} parent=1 // pred_fallthru
      _
    // Predicated region
    $region38: #{tpu_custom_call.1} parent=1 // pred_check
      _
    $region39: #{tpu_custom_call.1} parent=1 // pred_check_branch
      %46 = sbr.rel (0) target = $region41
    $region40: #{tpu_custom_call.1} parent=1 // pred_region
      _
    $region41: #{tpu_custom_call.1} parent=1 // pred_fallthru
      _
    // Predicated region
    $region42: #{tpu_custom_call.1} parent=1 // pred_check
      _
    $region43: #{tpu_custom_call.1} parent=1 // pred_check_branch
      %48 = sbr.rel (0) target = $region45
    $region44: #{tpu_custom_call.1} parent=1 // pred_region
      _
    $region45: #{tpu_custom_call.1} parent=1 // pred_fallthru
      _
    // Predicated region
    $region46: #{tpu_custom_call.1} parent=1 // pred_check
      _
    $region47: #{tpu_custom_call.1} parent=1 // pred_check_branch
      %50 = sbr.rel (0) target = $region49
    $region48: #{tpu_custom_call.1} parent=1 // pred_region
      %52 = dma.done [#allocation8], 16
    $region49: #{tpu_custom_call.1} parent=1 // pred_fallthru
      _
    %53 = sfence
    // Predicated region
    $region50: #{tpu_custom_call.1} parent=1 // pred_check
      _
    $region51: #{tpu_custom_call.1} parent=1 // pred_check_branch
      %55 = sbr.rel target = $region53
    $region52: #{tpu_custom_call.1} parent=1 // pred_region
      %56 = sst [smem:[#allocation12]] [#allocation11]
      %57 = sst [smem:[#allocation13]] [#allocation10]
    $region53: #{tpu_custom_call.1} parent=1 // pred_fallthru
      _
    %59 = shalt.err (0)
    %s61 = sshll.u32 %s7, 4
    %s62 = int_to_ptr.hbm [resolvable:$true] %s61
    %s63 = sshll.u32 [#allocation2], 4
    %s64 = int_to_ptr.vmem [resolvable:$true] %s63
    %66 = dma.hbm_to_vmem [thread:$0]  %s62, 27648, %s64, [#allocation3]
    // Predicated region
    $region54: #{tpu_custom_call.1} parent=1 // pred_check
      _
    $region55: #{tpu_custom_call.1} parent=1 // pred_check_branch
      %68 = sbr.rel target = $region57
    $region56: #{tpu_custom_call.1} parent=1 // pred_region
      %69 = sst [smem:[#allocation12]] [#allocation15]
      %70 = sst [smem:[#allocation13]] [#allocation14]
    $region57: #{tpu_custom_call.1} parent=1 // pred_fallthru
      _
    %72 = shalt.err (0)
    %s74 = sshll.u32 %s9, 4
    %s75 = int_to_ptr.hbm [resolvable:$true] %s74
    %s76 = sshll.u32 [#allocation4], 4
    %s77 = int_to_ptr.vmem [resolvable:$true] %s76
    %79 = dma.hbm_to_vmem [thread:$0]  %s75, 3072, %s77, [#allocation5]
    %v80 = vlaneseq
    %v81 = vand.u32 %v80, 127
    %vm82 = vcmp.eq.s32.totalorder %v81, 0
    %vm83 = vcmp.eq.s32.totalorder %v81, 127
    %v84 = vld [vmem:[%s0] sm:$0x3]
    %v85 = vld [vmem:[%s1] sm:$0xff]
    %v86 = vld [vmem:[%s1 + $0x8] sm:$0xff]
    %v87 = vld [vmem:[%s2] sm:$0x1]
    %v89 = vperm.slane %v87, 0
    %vm91 = vcmask 130048
    %v93 = vsel %vm91, %v84, 0
    %95 = vmatpush.msra.mxu0 0.0
    %96 = vmatpush.msra.mxu0 0.0
    %97 = vmatpush.msra.mxu0 0.0
    %98 = vmatpush.msra.mxu0 0.0
    %99 = vmatpush.msra.mxu0 0.0
    %100 = vmatpush.msra.mxu0 0.0
    %101 = vmatpush.msra.mxu0 0.0
    %102 = vmatpush.msra.mxu0 0.0
    %103 = vmatpush.msra.mxu0 0.0
    %104 = vmatpush.msra.mxu0 0.0
    %105 = vmatpush.msra.mxu0 0.0
    %106 = vmatpush.msra.mxu0 0.0
    %107 = vmatpush.msra.mxu0 0.0
    %108 = vmatpush.msra.mxu0 0.0
    %109 = vmatpush.msra.mxu0 %v86
    %110 = vmatpush.msra.mxu0 %v85
    %111 = vmatmul.f32.gmra.mxu0 %v93
    %v112 = vpop.f32.mrf.mxu0
    %v113 = vadd.f32 %v89, %v112
    %114 = vdwg.mxu0
    %v115 = vxor.u32 %v113, 2147483648
    %v116 = vmul.f32 %v115, 1.442695
    %v117 = vpow.pop %v116
    %v118 = vadd.f32 %v117, 1.0
    %v119 = vrcp.pop %v118
    %v120 = vmul.f32 %v118, %v119
    %v121 = vsub.f32 1.0, %v120
    %v122 = vmul.f32 %v119, %v121
    %v123 = vadd.f32 %v119, %v122
    %vm124 = vweird.f32 %v118
    %vm125 = vweird.f32 %v119
    %vm126 = vmor %vm124, %vm125
    %v127 = vsel %vm126, %v119, %v123
    %v128 = vand.u32 2147483647, %v118
    %vm129 = vcmp.eq.f32.partialorder %v128, 8.507059e+37
    %v130 = vand.u32 %v118, 2147483648
    %v131 = vor.u32 1.1754944e-38, %v130
    %v132 = vsel %vm129, %v131, %v127
    %v133 = vmul.f32 1.0, %v132
    %v135 = vrot.slane %v133, 6
    %v137 = vrot.slane %v133, 4
    %vm139 = vcmask 1041408
    %v140 = vsel %vm139, %v133, %v135
    %vm141 = vcmask 1043456
    %v142 = vsel %vm141, %v140, %v137
    %143 = vrot.lane.b32.xlu0 %v142, 1
    %v144 = vpop.permute.xlu0 %143
    %v145 = vsel %vm82, 1, 0
    %vm146 = vcmp.eq.s32.totalorder %v145, 1
    %v147 = vsel %vm146, 0.0, %v144
    %148 = vrot.lane.b32.xlu0 %v142, 127
    %v149 = vpop.permute.xlu0 %148
    %v150 = vsel %vm83, 1, 0
    %vm151 = vcmp.eq.s32.totalorder %v150, 1
    %v152 = vsel %vm151, 0.0, %v149
    %v153 = vld [vmem:[%s3] sm:$0x3f]
    %v154 = vld [vmem:[%s4] sm:$0x3f]
    %156 = vset.pattern.permute.xlu0 0
    %157 = vperm.xlu0 %156, %v153
    %v158 = vpop.permute.xlu0 %157
    %v160 = vmul.f32 %v158, %v147
    %162 = vset.pattern.permute.xlu0 0
    %163 = vperm.xlu0 %162, %v154
    %v164 = vpop.permute.xlu0 %163
    %v166 = vadd.f32 %v164, %v160
    %167 = vset.pattern.permute.xlu0 1
    %168 = vperm.xlu0 %167, %v153
    %v169 = vpop.permute.xlu0 %168
    %v171 = vmul.f32 %v169, %v142
    %v172 = vadd.f32 %v166, %v171
    %173 = vset.pattern.permute.xlu0 2
    %174 = vperm.xlu0 %173, %v153
    %v175 = vpop.permute.xlu0 %174
    %v177 = vmul.f32 %v175, %v152
    %v178 = vadd.f32 %v172, %v177
    %v179 = vxor.u32 %v178, 2147483648
    %v180 = vmul.f32 %v179, 1.442695
    %v181 = vpow.pop %v180
    %v182 = vadd.f32 %v181, 1.0
    %v183 = vrcp.pop %v182
    %v184 = vmul.f32 %v182, %v183
    %v185 = vsub.f32 1.0, %v184
    %v186 = vmul.f32 %v183, %v185
    %v187 = vadd.f32 %v183, %v186
    %vm188 = vweird.f32 %v182
    %vm189 = vweird.f32 %v183
    %vm190 = vmor %vm188, %vm189
    %v191 = vsel %vm190, %v183, %v187
    %v192 = vand.u32 2147483647, %v182
    %vm193 = vcmp.eq.f32.partialorder %v192, 8.507059e+37
    %v194 = vand.u32 %v182, 2147483648
    %v195 = vor.u32 1.1754944e-38, %v194
    %v196 = vsel %vm193, %v195, %v191
    %v197 = vmul.f32 1.0, %v196
    %v198 = vxor.u32 %v197, 2147483648
    %v199 = vmul.f32 %v198, 1.442695
    %v200 = vpow.pop %v199
    %v201 = vadd.f32 %v200, 1.0
    %v202 = vrcp.pop %v201
    %v203 = vmul.f32 %v201, %v202
    %v204 = vsub.f32 1.0, %v203
    %v205 = vmul.f32 %v202, %v204
    %v206 = vadd.f32 %v202, %v205
    %vm207 = vweird.f32 %v201
    %vm208 = vweird.f32 %v202
    %vm209 = vmor %vm207, %vm208
    %v210 = vsel %vm209, %v202, %v206
    %v211 = vand.u32 2147483647, %v201
    %vm212 = vcmp.eq.f32.partialorder %v211, 8.507059e+37
    %v213 = vand.u32 %v201, 2147483648
    %v214 = vor.u32 1.1754944e-38, %v213
    %v215 = vsel %vm212, %v214, %v210
    %v216 = vmul.f32 1.0, %v215
    %vm217 = vcmask 1045504
    %v218 = vsel %vm217, %v216, 0.0
    %219 = vadd.xlane.f32.xlu0 %v218
    %v220 = vpop.xlane.xlu0 %219
    %v221 = vmul.f32 %v216, %v216
    %v222 = vsel %vm217, %v221, 0.0
    %223 = vadd.xlane.f32.xlu0 %v222
    %v224 = vpop.xlane.xlu0 %223
    %v225 = vsel %vm139, %v220, 0.0
    %v226 = vrot.slane %v225, 4
    %v227 = vadd.f32 %v225, %v226
    %v228 = vrot.slane %v227, 2
    %v229 = vadd.f32 %v227, %v228
    %v230 = vrot.slane %v229, 1
    %v231 = vadd.f32 %v229, %v230
    %v232 = vsel %vm139, %v224, 0.0
    %v233 = vrot.slane %v232, 4
    %v234 = vadd.f32 %v232, %v233
    %v235 = vrot.slane %v234, 2
    %v236 = vadd.f32 %v234, %v235
    %v237 = vrot.slane %v236, 1
    %v238 = vadd.f32 %v236, %v237
    %v239 = vmul.f32 %v231, 0.00390625
    %v240 = vmul.f32 %v238, 0.00390625
    %v241 = vmul.f32 %v239, %v239
    %v242 = vsub.f32 %v240, %v241
    %v243 = vmax.f32 %v242, 0.0
    %v244 = vadd.f32 %v243, 1e-05
    %v245 = vrsqrt.pop %v244
    %v246 = vmul.f32 %v245, %v244
    %v247 = vmul.f32 %v246, %v245
    %v248 = vmul.f32 0.5, %v247
    %v249 = vsub.f32 1.5, %v248
    %v250 = vmul.f32 %v245, %v249
    %vm251 = vweird.f32 %v244
    %vm252 = vweird.f32 %v245
    %vm253 = vmor %vm251, %vm252
    %v254 = vsel %vm253, %v245, %v250
    %v256 = vrot.slane %v220, 2
    %v258 = vsel %vm139, %v256, 0.0
    %v259 = vrot.slane %v258, 4
    %v260 = vadd.f32 %v258, %v259
    %v261 = vrot.slane %v260, 2
    %v262 = vadd.f32 %v260, %v261
    %v263 = vrot.slane %v262, 1
    %v264 = vadd.f32 %v262, %v263
    %v266 = vrot.slane %v224, 2
    %v268 = vsel %vm139, %v266, 0.0
    %v269 = vrot.slane %v268, 4
    %v270 = vadd.f32 %v268, %v269
    %v271 = vrot.slane %v270, 2
    %v272 = vadd.f32 %v270, %v271
    %v273 = vrot.slane %v272, 1
    %v274 = vadd.f32 %v272, %v273
    %v275 = vmul.f32 %v264, 0.00390625
    %v276 = vmul.f32 %v274, 0.00390625
    %v277 = vmul.f32 %v275, %v275
    %v278 = vsub.f32 %v276, %v277
    %v279 = vmax.f32 %v278, 0.0
    %v280 = vadd.f32 %v279, 1e-05
    %v281 = vrsqrt.pop %v280
    %v282 = vmul.f32 %v281, %v280
    %v283 = vmul.f32 %v282, %v281
    %v284 = vmul.f32 0.5, %v283
    %v285 = vsub.f32 1.5, %v284
    %v286 = vmul.f32 %v281, %v285
    %vm287 = vweird.f32 %v280
    %vm288 = vweird.f32 %v281
    %vm289 = vmor %vm287, %vm288
    %v290 = vsel %vm289, %v281, %v286
    %v291 = vrot.slane %v220, 4
    %v293 = vsel %vm139, %v291, 0.0
    %v294 = vrot.slane %v293, 4
    %v295 = vadd.f32 %v293, %v294
    %v296 = vrot.slane %v295, 2
    %v297 = vadd.f32 %v295, %v296
    %v298 = vrot.slane %v297, 1
    %v299 = vadd.f32 %v297, %v298
    %v300 = vrot.slane %v224, 4
    %v302 = vsel %vm139, %v300, 0.0
    %v303 = vrot.slane %v302, 4
    %v304 = vadd.f32 %v302, %v303
    %v305 = vrot.slane %v304, 2
    %v306 = vadd.f32 %v304, %v305
    %v307 = vrot.slane %v306, 1
    %v308 = vadd.f32 %v306, %v307
    %v309 = vmul.f32 %v299, 0.00390625
    %v310 = vmul.f32 %v308, 0.00390625
    %v311 = vmul.f32 %v309, %v309
    %v312 = vsub.f32 %v310, %v311
    %v313 = vmax.f32 %v312, 0.0
    %v314 = vadd.f32 %v313, 1e-05
    %v315 = vrsqrt.pop %v314
    %v316 = vmul.f32 %v315, %v314
    %v317 = vmul.f32 %v316, %v315
    %v318 = vmul.f32 0.5, %v317
    %v319 = vsub.f32 1.5, %v318
    %v320 = vmul.f32 %v315, %v319
    %vm321 = vweird.f32 %v314
    %vm322 = vweird.f32 %v315
    %vm323 = vmor %vm321, %vm322
    %v324 = vsel %vm323, %v315, %v320
    %v325 = vsel %vm139, %v239, %v275
    %v326 = vsel %vm141, %v325, %v309
    %v327 = vsel %vm139, %v254, %v290
    %v328 = vsel %vm141, %v327, %v324
    %330 = vset.pattern.permute.xlu0 0
    %331 = vperm.xlu0 %330, %v326
    %v332 = vpop.permute.xlu0 %331
    %v334 = vsub.f32 %v216, %v332
    %336 = vset.pattern.permute.xlu0 0
    %337 = vperm.xlu0 %336, %v328
    %v338 = vpop.permute.xlu0 %337
    %v340 = vmul.f32 %v334, %v338
    %341 = vrot.lane.b32.xlu0 %v340, 1
    %v342 = vpop.permute.xlu0 %341
    %v343 = vsel %vm146, 0.0, %v342
    %344 = vrot.lane.b32.xlu0 %v340, 127
    %v345 = vpop.permute.xlu0 %344
    %v346 = vsel %vm151, 0.0, %v345
    %v347 = vld [vmem:[%s5] sm:$0x3f]
    %349 = vset.pattern.permute.xlu0 0
    %350 = vperm.xlu0 %349, %v347
    %v351 = vpop.permute.xlu0 %350
    %v353 = vmul.f32 %v351, %v343
    %354 = vset.pattern.permute.xlu0 1
    %355 = vperm.xlu0 %354, %v347
    %v356 = vpop.permute.xlu0 %355
    %v358 = vmul.f32 %v356, %v340
    %v359 = vadd.f32 %v353, %v358
    %360 = vset.pattern.permute.xlu0 2
    %361 = vperm.xlu0 %360, %v347
    %v362 = vpop.permute.xlu0 %361
    %v364 = vmul.f32 %v362, %v346
    %v365 = vadd.f32 %v359, %v364
    %v367 = vrot.slane %v365, 2
    %v369 = vadd.f32 %v365, %v367
    %v370 = vrot.slane %v365, 4
    %v372 = vadd.f32 %v369, %v370
    %s373 = sld [smem:[#allocation6]]
    %v374 = vstv %s373
    %v375 = vadd.f32 %v372, %v374
    %v376 = vxor.u32 %v375, 2147483648
    %v377 = vmul.f32 %v376, 1.442695
    %v378 = vpow.pop %v377
    %v379 = vadd.f32 %v378, 1.0
    %v380 = vrcp.pop %v379
    %v381 = vmul.f32 %v379, %v380
    %v382 = vsub.f32 1.0, %v381
    %v383 = vmul.f32 %v380, %v382
    %v384 = vadd.f32 %v380, %v383
    %vm385 = vweird.f32 %v379
    %vm386 = vweird.f32 %v380
    %vm387 = vmor %vm385, %vm386
    %v388 = vsel %vm387, %v380, %v384
    %v389 = vand.u32 2147483647, %v379
    %vm390 = vcmp.eq.f32.partialorder %v389, 8.507059e+37
    %v391 = vand.u32 %v379, 2147483648
    %v392 = vor.u32 1.1754944e-38, %v391
    %v393 = vsel %vm390, %v392, %v388
    %v394 = vmul.f32 1.0, %v393
    %395 = vset.pattern.permute.xlu0 3
    %396 = vperm.xlu0 %395, %v347
    %v397 = vpop.permute.xlu0 %396
    %v399 = vmul.f32 %v397, %v343
    %400 = vset.pattern.permute.xlu0 4
    %401 = vperm.xlu0 %400, %v347
    %v402 = vpop.permute.xlu0 %401
    %v404 = vmul.f32 %v402, %v340
    %v405 = vadd.f32 %v399, %v404
    %406 = vset.pattern.permute.xlu0 5
    %407 = vperm.xlu0 %406, %v347
    %v408 = vpop.permute.xlu0 %407
    %v410 = vmul.f32 %v408, %v346
    %v411 = vadd.f32 %v405, %v410
    %v413 = vrot.slane %v411, 2
    %v415 = vadd.f32 %v411, %v413
    %v416 = vrot.slane %v411, 4
    %v418 = vadd.f32 %v415, %v416
    %s419 = sld [smem:[#allocation6 + $0x1]]
    %v420 = vstv %s419
    %v421 = vadd.f32 %v418, %v420
    %v422 = vxor.u32 %v421, 2147483648
    %v423 = vmul.f32 %v422, 1.442695
    %v424 = vpow.pop %v423
    %v425 = vadd.f32 %v424, 1.0
    %v426 = vrcp.pop %v425
    %v427 = vmul.f32 %v425, %v426
    %v428 = vsub.f32 1.0, %v427
    %v429 = vmul.f32 %v426, %v428
    %v430 = vadd.f32 %v426, %v429
    %vm431 = vweird.f32 %v425
    %vm432 = vweird.f32 %v426
    %vm433 = vmor %vm431, %vm432
    %v434 = vsel %vm433, %v426, %v430
    %v435 = vand.u32 2147483647, %v425
    %vm436 = vcmp.eq.f32.partialorder %v435, 8.507059e+37
    %v437 = vand.u32 %v425, 2147483648
    %v438 = vor.u32 1.1754944e-38, %v437
    %v439 = vsel %vm436, %v438, %v434
    %v440 = vmul.f32 1.0, %v439
    %441 = vset.pattern.permute.xlu0 6
    %442 = vperm.xlu0 %441, %v347
    %v443 = vpop.permute.xlu0 %442
    %v445 = vmul.f32 %v443, %v343
    %446 = vset.pattern.permute.xlu0 7
    %447 = vperm.xlu0 %446, %v347
    %v448 = vpop.permute.xlu0 %447
    %v450 = vmul.f32 %v448, %v340
    %v451 = vadd.f32 %v445, %v450
    %452 = vset.pattern.permute.xlu0 8
    %453 = vperm.xlu0 %452, %v347
    %v454 = vpop.permute.xlu0 %453
    %v456 = vmul.f32 %v454, %v346
    %v457 = vadd.f32 %v451, %v456
    %v459 = vrot.slane %v457, 2
    %v461 = vadd.f32 %v457, %v459
    %v462 = vrot.slane %v457, 4
    %v464 = vadd.f32 %v461, %v462
    %s465 = sld [smem:[#allocation6 + $0x2]]
    %v466 = vstv %s465
    %v467 = vadd.f32 %v464, %v466
    %v468 = vxor.u32 %v467, 2147483648
    %v469 = vmul.f32 %v468, 1.442695
    %v470 = vpow.pop %v469
    %v471 = vadd.f32 %v470, 1.0
    %v472 = vrcp.pop %v471
    %v473 = vmul.f32 %v471, %v472
    %v474 = vsub.f32 1.0, %v473
    %v475 = vmul.f32 %v472, %v474
    %v476 = vadd.f32 %v472, %v475
    %vm477 = vweird.f32 %v471
    %vm478 = vweird.f32 %v472
    %vm479 = vmor %vm477, %vm478
    %v480 = vsel %vm479, %v472, %v476
    %v481 = vand.u32 2147483647, %v471
    %vm482 = vcmp.eq.f32.partialorder %v481, 8.507059e+37
    %v483 = vand.u32 %v471, 2147483648
    %v484 = vor.u32 1.1754944e-38, %v483
    %v485 = vsel %vm482, %v484, %v480
    %v486 = vmul.f32 1.0, %v485
    %487 = vset.pattern.permute.xlu0 9
    %488 = vperm.xlu0 %487, %v347
    %v489 = vpop.permute.xlu0 %488
    %v491 = vmul.f32 %v489, %v343
    %492 = vset.pattern.permute.xlu0 10
    %493 = vperm.xlu0 %492, %v347
    %v494 = vpop.permute.xlu0 %493
    %v496 = vmul.f32 %v494, %v340
    %v497 = vadd.f32 %v491, %v496
    %498 = vset.pattern.permute.xlu0 11
    %499 = vperm.xlu0 %498, %v347
    %v500 = vpop.permute.xlu0 %499
    %v502 = vmul.f32 %v500, %v346
    %v503 = vadd.f32 %v497, %v502
    %v505 = vrot.slane %v503, 2
    %v507 = vadd.f32 %v503, %v505
    %v508 = vrot.slane %v503, 4
    %v510 = vadd.f32 %v507, %v508
    %s511 = sld [smem:[#allocation6 + $0x3]]
    %v512 = vstv %s511
    %v513 = vadd.f32 %v510, %v512
    %v514 = vxor.u32 %v513, 2147483648
    %v515 = vmul.f32 %v514, 1.442695
    %v516 = vpow.pop %v515
    %v517 = vadd.f32 %v516, 1.0
    %v518 = vrcp.pop %v517
    %v519 = vmul.f32 %v517, %v518
    %v520 = vsub.f32 1.0, %v519
    %v521 = vmul.f32 %v518, %v520
    %v522 = vadd.f32 %v518, %v521
    %vm523 = vweird.f32 %v517
    %vm524 = vweird.f32 %v518
    %vm525 = vmor %vm523, %vm524
    %v526 = vsel %vm525, %v518, %v522
    %v527 = vand.u32 2147483647, %v517
    %vm528 = vcmp.eq.f32.partialorder %v527, 8.507059e+37
    %v529 = vand.u32 %v517, 2147483648
    %v530 = vor.u32 1.1754944e-38, %v529
    %v531 = vsel %vm528, %v530, %v526
    %v532 = vmul.f32 1.0, %v531
    %533 = vset.pattern.permute.xlu0 12
    %534 = vperm.xlu0 %533, %v347
    %v535 = vpop.permute.xlu0 %534
    %v537 = vmul.f32 %v535, %v343
    %538 = vset.pattern.permute.xlu0 13
    %539 = vperm.xlu0 %538, %v347
    %v540 = vpop.permute.xlu0 %539
    %v542 = vmul.f32 %v540, %v340
    %v543 = vadd.f32 %v537, %v542
    %544 = vset.pattern.permute.xlu0 14
    %545 = vperm.xlu0 %544, %v347
    %v546 = vpop.permute.xlu0 %545
    %v548 = vmul.f32 %v546, %v346
    %v549 = vadd.f32 %v543, %v548
    %v551 = vrot.slane %v549, 2
    %v553 = vadd.f32 %v549, %v551
    %v554 = vrot.slane %v549, 4
    %v556 = vadd.f32 %v553, %v554
    %s557 = sld [smem:[#allocation6 + $0x4]]
    %v558 = vstv %s557
    %v559 = vadd.f32 %v556, %v558
    %v560 = vxor.u32 %v559, 2147483648
    %v561 = vmul.f32 %v560, 1.442695
    %v562 = vpow.pop %v561
    %v563 = vadd.f32 %v562, 1.0
    %v564 = vrcp.pop %v563
    %v565 = vmul.f32 %v563, %v564
    %v566 = vsub.f32 1.0, %v565
    %v567 = vmul.f32 %v564, %v566
    %v568 = vadd.f32 %v564, %v567
    %vm569 = vweird.f32 %v563
    %vm570 = vweird.f32 %v564
    %vm571 = vmor %vm569, %vm570
    %v572 = vsel %vm571, %v564, %v568
    %v573 = vand.u32 2147483647, %v563
    %vm574 = vcmp.eq.f32.partialorder %v573, 8.507059e+37
    %v575 = vand.u32 %v563, 2147483648
    %v576 = vor.u32 1.1754944e-38, %v575
    %v577 = vsel %vm574, %v576, %v572
    %v578 = vmul.f32 1.0, %v577
    %579 = vset.pattern.permute.xlu0 15
    %580 = vperm.xlu0 %579, %v347
    %v581 = vpop.permute.xlu0 %580
    %v583 = vmul.f32 %v581, %v343
    %584 = vset.pattern.permute.xlu0 16
    %585 = vperm.xlu0 %584, %v347
    %v586 = vpop.permute.xlu0 %585
    %v588 = vmul.f32 %v586, %v340
    %v589 = vadd.f32 %v583, %v588
    %590 = vset.pattern.permute.xlu0 17
    %591 = vperm.xlu0 %590, %v347
    %v592 = vpop.permute.xlu0 %591
    %v594 = vmul.f32 %v592, %v346
    %v595 = vadd.f32 %v589, %v594
    %v597 = vrot.slane %v595, 2
    %v599 = vadd.f32 %v595, %v597
    %v600 = vrot.slane %v595, 4
    %v602 = vadd.f32 %v599, %v600
    %s603 = sld [smem:[#allocation6 + $0x5]]
    %v604 = vstv %s603
    %v605 = vadd.f32 %v602, %v604
    %v606 = vxor.u32 %v605, 2147483648
    %v607 = vmul.f32 %v606, 1.442695
    %v608 = vpow.pop %v607
    %v609 = vadd.f32 %v608, 1.0
    %v610 = vrcp.pop %v609
    %v611 = vmul.f32 %v609, %v610
    %v612 = vsub.f32 1.0, %v611
    %v613 = vmul.f32 %v610, %v612
    %v614 = vadd.f32 %v610, %v613
    %vm615 = vweird.f32 %v609
    %vm616 = vweird.f32 %v610
    %vm617 = vmor %vm615, %vm616
    %v618 = vsel %vm617, %v610, %v614
    %v619 = vand.u32 2147483647, %v609
    %vm620 = vcmp.eq.f32.partialorder %v619, 8.507059e+37
    %v621 = vand.u32 %v609, 2147483648
    %v622 = vor.u32 1.1754944e-38, %v621
    %v623 = vsel %vm620, %v622, %v618
    %v624 = vmul.f32 1.0, %v623
    %625 = vset.pattern.permute.xlu0 18
    %626 = vperm.xlu0 %625, %v347
    %v627 = vpop.permute.xlu0 %626
    %v629 = vmul.f32 %v627, %v343
    %630 = vset.pattern.permute.xlu0 19
    %631 = vperm.xlu0 %630, %v347
    %v632 = vpop.permute.xlu0 %631
    %v634 = vmul.f32 %v632, %v340
    %v635 = vadd.f32 %v629, %v634
    %636 = vset.pattern.permute.xlu0 20
    %637 = vperm.xlu0 %636, %v347
    %v638 = vpop.permute.xlu0 %637
    %v640 = vmul.f32 %v638, %v346
    %v641 = vadd.f32 %v635, %v640
    %v643 = vrot.slane %v641, 2
    %v645 = vadd.f32 %v641, %v643
    %v646 = vrot.slane %v641, 4
    %v648 = vadd.f32 %v645, %v646
    %s649 = sld [smem:[#allocation6 + $0x6]]
    %v650 = vstv %s649
    %v651 = vadd.f32 %v648, %v650
    %v652 = vxor.u32 %v651, 2147483648
    %v653 = vmul.f32 %v652, 1.442695
    %v654 = vpow.pop %v653
    %v655 = vadd.f32 %v654, 1.0
    %v656 = vrcp.pop %v655
    %v657 = vmul.f32 %v655, %v656
    %v658 = vsub.f32 1.0, %v657
    %v659 = vmul.f32 %v656, %v658
    %v660 = vadd.f32 %v656, %v659
    %vm661 = vweird.f32 %v655
    %vm662 = vweird.f32 %v656
    %vm663 = vmor %vm661, %vm662
    %v664 = vsel %vm663, %v656, %v660
    %v665 = vand.u32 2147483647, %v655
    %vm666 = vcmp.eq.f32.partialorder %v665, 8.507059e+37
    %v667 = vand.u32 %v655, 2147483648
    %v668 = vor.u32 1.1754944e-38, %v667
    %v669 = vsel %vm666, %v668, %v664
    %v670 = vmul.f32 1.0, %v669
    %671 = vset.pattern.permute.xlu0 21
    %672 = vperm.xlu0 %671, %v347
    %v673 = vpop.permute.xlu0 %672
    %v675 = vmul.f32 %v673, %v343
    %676 = vset.pattern.permute.xlu0 22
    %677 = vperm.xlu0 %676, %v347
    %v678 = vpop.permute.xlu0 %677
    %v680 = vmul.f32 %v678, %v340
    %v681 = vadd.f32 %v675, %v680
    %682 = vset.pattern.permute.xlu0 23
    %683 = vperm.xlu0 %682, %v347
    %v684 = vpop.permute.xlu0 %683
    %v686 = vmul.f32 %v684, %v346
    %v687 = vadd.f32 %v681, %v686
    %v689 = vrot.slane %v687, 2
    %v691 = vadd.f32 %v687, %v689
    %v692 = vrot.slane %v687, 4
    %v694 = vadd.f32 %v691, %v692
    %s695 = sld [smem:[#allocation6 + $0x7]]
    %v696 = vstv %s695
    %v697 = vadd.f32 %v694, %v696
    %v698 = vxor.u32 %v697, 2147483648
    %v699 = vmul.f32 %v698, 1.442695
    %v700 = vpow.pop %v699
    %v701 = vadd.f32 %v700, 1.0
    %v702 = vrcp.pop %v701
    %v703 = vmul.f32 %v701, %v702
    %v704 = vsub.f32 1.0, %v703
    %v705 = vmul.f32 %v702, %v704
    %v706 = vadd.f32 %v702, %v705
    %vm707 = vweird.f32 %v701
    %vm708 = vweird.f32 %v702
    %vm709 = vmor %vm707, %vm708
    %v710 = vsel %vm709, %v702, %v706
    %v711 = vand.u32 2147483647, %v701
    %vm712 = vcmp.eq.f32.partialorder %v711, 8.507059e+37
    %v713 = vand.u32 %v701, 2147483648
    %v714 = vor.u32 1.1754944e-38, %v713
    %v715 = vsel %vm712, %v714, %v710
    %v716 = vmul.f32 1.0, %v715
    %717 = vset.pattern.permute.xlu0 24
    %718 = vperm.xlu0 %717, %v347
    %v719 = vpop.permute.xlu0 %718
    %v721 = vmul.f32 %v719, %v343
    %722 = vset.pattern.permute.xlu0 25
    %723 = vperm.xlu0 %722, %v347
    %v724 = vpop.permute.xlu0 %723
    %v726 = vmul.f32 %v724, %v340
    %v727 = vadd.f32 %v721, %v726
    %728 = vset.pattern.permute.xlu0 26
    %729 = vperm.xlu0 %728, %v347
    %v730 = vpop.permute.xlu0 %729
    %v732 = vmul.f32 %v730, %v346
    %v733 = vadd.f32 %v727, %v732
    %v735 = vrot.slane %v733, 2
    %v737 = vadd.f32 %v733, %v735
    %v738 = vrot.slane %v733, 4
    %v740 = vadd.f32 %v737, %v738
    %s741 = sld [smem:[#allocation6 + $0x8]]
    %v742 = vstv %s741
    %v743 = vadd.f32 %v740, %v742
    %v744 = vxor.u32 %v743, 2147483648
    %v745 = vmul.f32 %v744, 1.442695
    %v746 = vpow.pop %v745
    %v747 = vadd.f32 %v746, 1.0
    %v748 = vrcp.pop %v747
    %v749 = vmul.f32 %v747, %v748
    %v750 = vsub.f32 1.0, %v749
    %v751 = vmul.f32 %v748, %v750
    %v752 = vadd.f32 %v748, %v751
    %vm753 = vweird.f32 %v747
    %vm754 = vweird.f32 %v748
    %vm755 = vmor %vm753, %vm754
    %v756 = vsel %vm755, %v748, %v752
    %v757 = vand.u32 2147483647, %v747
    %vm758 = vcmp.eq.f32.partialorder %v757, 8.507059e+37
    %v759 = vand.u32 %v747, 2147483648
    %v760 = vor.u32 1.1754944e-38, %v759
    %v761 = vsel %vm758, %v760, %v756
    %v762 = vmul.f32 1.0, %v761
    %v763 = vpack.c.bf16 %v394, %v394
    %v764 = vpack.c.bf16 %v440, %v440
    %v765 = vpack.c.bf16 %v486, %v486
    %v766 = vpack.c.bf16 %v532, %v532
    %v767 = vpack.c.bf16 %v578, %v578
    %v768 = vpack.c.bf16 %v624, %v624
    %v769 = vpack.c.bf16 %v670, %v670
    %v770 = vpack.c.bf16 %v716, %v716
    %v771 = vpack.c.bf16 %v762, %v762
    %s772 = smul.u32 4, 144
    %s773 = smul.u32 %s772, 3
    %s774 = sshll.u32 %s773, 4
    %775 = dma.done [#allocation3], %s774
    %v776 = vld [vmem:[#allocation2] sm:$0xff]
    %v777 = vld [vmem:[#allocation2 + $0x8] sm:$0xf]
    %v778 = vld [vmem:[#allocation2 + $0xc] sm:$0xff]
    %v779 = vld [vmem:[#allocation2 + $0x14] sm:$0xf]
    %v780 = vld [vmem:[#allocation2 + $0x18] sm:$0xff]
    %v781 = vld [vmem:[#allocation2 + $0x20] sm:$0xf]
    %v782 = vld [vmem:[#allocation2 + $0x24] sm:$0xff]
    %v783 = vld [vmem:[#allocation2 + $0x2c] sm:$0xf]
    %v784 = vld [vmem:[#allocation2 + $0x30] sm:$0xff]
    %v785 = vld [vmem:[#allocation2 + $0x38] sm:$0xf]
    %v786 = vld [vmem:[#allocation2 + $0x3c] sm:$0xff]
    %v787 = vld [vmem:[#allocation2 + $0x44] sm:$0xf]
    %v788 = vld [vmem:[#allocation2 + $0x48] sm:$0xff]
    %v789 = vld [vmem:[#allocation2 + $0x50] sm:$0xf]
    %v790 = vld [vmem:[#allocation2 + $0x54] sm:$0xff]
    %v791 = vld [vmem:[#allocation2 + $0x5c] sm:$0xf]
    %v792 = vld [vmem:[#allocation2 + $0x60] sm:$0xff]
    %v793 = vld [vmem:[#allocation2 + $0x68] sm:$0xf]
    %v794 = vld [vmem:[#allocation2 + $0x6c] sm:$0xff]
    %v795 = vld [vmem:[#allocation2 + $0x74] sm:$0xf]
    %v796 = vld [vmem:[#allocation2 + $0x78] sm:$0xff]
    %v797 = vld [vmem:[#allocation2 + $0x80] sm:$0xf]
    %v798 = vld [vmem:[#allocation2 + $0x84] sm:$0xff]
    %v799 = vld [vmem:[#allocation2 + $0x8c] sm:$0xf]
    %v800 = vld [vmem:[#allocation2 + $0x90] sm:$0xff]
    %v801 = vld [vmem:[#allocation2 + $0x98] sm:$0xf]
    %v802 = vld [vmem:[#allocation2 + $0x9c] sm:$0xff]
    %v803 = vld [vmem:[#allocation2 + $0xa4] sm:$0xf]
    %v804 = vld [vmem:[#allocation2 + $0xa8] sm:$0xff]
    %v805 = vld [vmem:[#allocation2 + $0xb0] sm:$0xf]
    %v806 = vld [vmem:[#allocation2 + $0xb4] sm:$0xff]
    %v807 = vld [vmem:[#allocation2 + $0xbc] sm:$0xf]
    %v808 = vld [vmem:[#allocation2 + $0xc0] sm:$0xff]
    %v809 = vld [vmem:[#allocation2 + $0xc8] sm:$0xf]
    %v810 = vld [vmem:[#allocation2 + $0xcc] sm:$0xff]
    %v811 = vld [vmem:[#allocation2 + $0xd4] sm:$0xf]
    %v812 = vld [vmem:[#allocation2 + $0xd8] sm:$0xff]
    %v813 = vld [vmem:[#allocation2 + $0xe0] sm:$0xf]
    %v814 = vld [vmem:[#allocation2 + $0xe4] sm:$0xff]
    %v815 = vld [vmem:[#allocation2 + $0xec] sm:$0xf]
    %v816 = vld [vmem:[#allocation2 + $0xf0] sm:$0xff]
    %v817 = vld [vmem:[#allocation2 + $0xf8] sm:$0xf]
    %v818 = vld [vmem:[#allocation2 + $0xfc] sm:$0xff]
    %v819 = vld [vmem:[#allocation2 + $0x104] sm:$0xf]
    %v820 = vld [vmem:[#allocation2 + $0x108] sm:$0xff]
    %v821 = vld [vmem:[#allocation2 + $0x110] sm:$0xf]
    %v822 = vld [vmem:[#allocation2 + $0x114] sm:$0xff]
    %v823 = vld [vmem:[#allocation2 + $0x11c] sm:$0xf]
    %v824 = vld [vmem:[#allocation2 + $0x120] sm:$0xff]
    %v825 = vld [vmem:[#allocation2 + $0x128] sm:$0xf]
    %v826 = vld [vmem:[#allocation2 + $0x12c] sm:$0xff]
    %v827 = vld [vmem:[#allocation2 + $0x134] sm:$0xf]
    %v828 = vld [vmem:[#allocation2 + $0x138] sm:$0xff]
    %v829 = vld [vmem:[#allocation2 + $0x140] sm:$0xf]
    %v830 = vld [vmem:[#allocation2 + $0x144] sm:$0xff]
    %v831 = vld [vmem:[#allocation2 + $0x14c] sm:$0xf]
    %v832 = vld [vmem:[#allocation2 + $0x150] sm:$0xff]
    %v833 = vld [vmem:[#allocation2 + $0x158] sm:$0xf]
    %v834 = vld [vmem:[#allocation2 + $0x15c] sm:$0xff]
    %v835 = vld [vmem:[#allocation2 + $0x164] sm:$0xf]
    %v836 = vld [vmem:[#allocation2 + $0x168] sm:$0xff]
    %v837 = vld [vmem:[#allocation2 + $0x170] sm:$0xf]
    %v838 = vld [vmem:[#allocation2 + $0x174] sm:$0xff]
    %v839 = vld [vmem:[#allocation2 + $0x17c] sm:$0xf]
    %v840 = vld [vmem:[#allocation2 + $0x180] sm:$0xff]
    %v841 = vld [vmem:[#allocation2 + $0x188] sm:$0xf]
    %v842 = vld [vmem:[#allocation2 + $0x18c] sm:$0xff]
    %v843 = vld [vmem:[#allocation2 + $0x194] sm:$0xf]
    %v844 = vld [vmem:[#allocation2 + $0x198] sm:$0xff]
    %v845 = vld [vmem:[#allocation2 + $0x1a0] sm:$0xf]
    %v846 = vld [vmem:[#allocation2 + $0x1a4] sm:$0xff]
    %v847 = vld [vmem:[#allocation2 + $0x1ac] sm:$0xf]
    %v848 = vld [vmem:[#allocation2 + $0x1b0] sm:$0xff]
    %v849 = vld [vmem:[#allocation2 + $0x1b8] sm:$0xf]
    %v850 = vld [vmem:[#allocation2 + $0x1bc] sm:$0xff]
    %v851 = vld [vmem:[#allocation2 + $0x1c4] sm:$0xf]
    %v852 = vld [vmem:[#allocation2 + $0x1c8] sm:$0xff]
    %v853 = vld [vmem:[#allocation2 + $0x1d0] sm:$0xf]
    %v854 = vld [vmem:[#allocation2 + $0x1d4] sm:$0xff]
    %v855 = vld [vmem:[#allocation2 + $0x1dc] sm:$0xf]
    %v856 = vld [vmem:[#allocation2 + $0x1e0] sm:$0xff]
    %v857 = vld [vmem:[#allocation2 + $0x1e8] sm:$0xf]
    %v858 = vld [vmem:[#allocation2 + $0x1ec] sm:$0xff]
    %v859 = vld [vmem:[#allocation2 + $0x1f4] sm:$0xf]
    %v860 = vld [vmem:[#allocation2 + $0x1f8] sm:$0xff]
    %v861 = vld [vmem:[#allocation2 + $0x200] sm:$0xf]
    %v862 = vld [vmem:[#allocation2 + $0x204] sm:$0xff]
    %v863 = vld [vmem:[#allocation2 + $0x20c] sm:$0xf]
    %v864 = vld [vmem:[#allocation2 + $0x210] sm:$0xff]
    %v865 = vld [vmem:[#allocation2 + $0x218] sm:$0xf]
    %v866 = vld [vmem:[#allocation2 + $0x21c] sm:$0xff]
    %v867 = vld [vmem:[#allocation2 + $0x224] sm:$0xf]
    %v868 = vld [vmem:[#allocation2 + $0x228] sm:$0xff]
    %v869 = vld [vmem:[#allocation2 + $0x230] sm:$0xf]
    %v870 = vld [vmem:[#allocation2 + $0x234] sm:$0xff]
    %v871 = vld [vmem:[#allocation2 + $0x23c] sm:$0xf]
    %v872 = vld [vmem:[#allocation2 + $0x240] sm:$0xff]
    %v873 = vld [vmem:[#allocation2 + $0x248] sm:$0xf]
    %v874 = vld [vmem:[#allocation2 + $0x24c] sm:$0xff]
    %v875 = vld [vmem:[#allocation2 + $0x254] sm:$0xf]
    %v876 = vld [vmem:[#allocation2 + $0x258] sm:$0xff]
    %v877 = vld [vmem:[#allocation2 + $0x260] sm:$0xf]
    %v878 = vld [vmem:[#allocation2 + $0x264] sm:$0xff]
    %v879 = vld [vmem:[#allocation2 + $0x26c] sm:$0xf]
    %v880 = vld [vmem:[#allocation2 + $0x270] sm:$0xff]
    %v881 = vld [vmem:[#allocation2 + $0x278] sm:$0xf]
    %v882 = vld [vmem:[#allocation2 + $0x27c] sm:$0xff]
    %v883 = vld [vmem:[#allocation2 + $0x284] sm:$0xf]
    %v884 = vld [vmem:[#allocation2 + $0x288] sm:$0xff]
    %v885 = vld [vmem:[#allocation2 + $0x290] sm:$0xf]
    %v886 = vld [vmem:[#allocation2 + $0x294] sm:$0xff]
    %v887 = vld [vmem:[#allocation2 + $0x29c] sm:$0xf]
    %v888 = vld [vmem:[#allocation2 + $0x2a0] sm:$0xff]
    %v889 = vld [vmem:[#allocation2 + $0x2a8] sm:$0xf]
    %v890 = vld [vmem:[#allocation2 + $0x2ac] sm:$0xff]
    %v891 = vld [vmem:[#allocation2 + $0x2b4] sm:$0xf]
    %v892 = vld [vmem:[#allocation2 + $0x2b8] sm:$0xff]
    %v893 = vld [vmem:[#allocation2 + $0x2c0] sm:$0xf]
    %v894 = vld [vmem:[#allocation2 + $0x2c4] sm:$0xff]
    %v895 = vld [vmem:[#allocation2 + $0x2cc] sm:$0xf]
    %v896 = vld [vmem:[#allocation2 + $0x2d0] sm:$0xff]
    %v897 = vld [vmem:[#allocation2 + $0x2d8] sm:$0xf]
    %v898 = vld [vmem:[#allocation2 + $0x2dc] sm:$0xff]
    %v899 = vld [vmem:[#allocation2 + $0x2e4] sm:$0xf]
    %v900 = vld [vmem:[#allocation2 + $0x2e8] sm:$0xff]
    %v901 = vld [vmem:[#allocation2 + $0x2f0] sm:$0xf]
    %v902 = vld [vmem:[#allocation2 + $0x2f4] sm:$0xff]
    %v903 = vld [vmem:[#allocation2 + $0x2fc] sm:$0xf]
    %v904 = vld [vmem:[#allocation2 + $0x300] sm:$0xff]
    %v905 = vld [vmem:[#allocation2 + $0x308] sm:$0xf]
    %v906 = vld [vmem:[#allocation2 + $0x30c] sm:$0xff]
    %v907 = vld [vmem:[#allocation2 + $0x314] sm:$0xf]
    %v908 = vld [vmem:[#allocation2 + $0x318] sm:$0xff]
    %v909 = vld [vmem:[#allocation2 + $0x320] sm:$0xf]
    %v910 = vld [vmem:[#allocation2 + $0x324] sm:$0xff]
    %v911 = vld [vmem:[#allocation2 + $0x32c] sm:$0xf]
    %v912 = vld [vmem:[#allocation2 + $0x330] sm:$0xff]
    %v913 = vld [vmem:[#allocation2 + $0x338] sm:$0xf]
    %v914 = vld [vmem:[#allocation2 + $0x33c] sm:$0xff]
    %v915 = vld [vmem:[#allocation2 + $0x344] sm:$0xf]
    %v916 = vld [vmem:[#allocation2 + $0x348] sm:$0xff]
    %v917 = vld [vmem:[#allocation2 + $0x350] sm:$0xf]
    %v918 = vld [vmem:[#allocation2 + $0x354] sm:$0xff]
    %v919 = vld [vmem:[#allocation2 + $0x35c] sm:$0xf]
    %v920 = vld [vmem:[#allocation2 + $0x360] sm:$0xff]
    %v921 = vld [vmem:[#allocation2 + $0x368] sm:$0xf]
    %v922 = vld [vmem:[#allocation2 + $0x36c] sm:$0xff]
    %v923 = vld [vmem:[#allocation2 + $0x374] sm:$0xf]
    %v924 = vld [vmem:[#allocation2 + $0x378] sm:$0xff]
    %v925 = vld [vmem:[#allocation2 + $0x380] sm:$0xf]
    %v926 = vld [vmem:[#allocation2 + $0x384] sm:$0xff]
    %v927 = vld [vmem:[#allocation2 + $0x38c] sm:$0xf]
    %v928 = vld [vmem:[#allocation2 + $0x390] sm:$0xff]
    %v929 = vld [vmem:[#allocation2 + $0x398] sm:$0xf]
    %v930 = vld [vmem:[#allocation2 + $0x39c] sm:$0xff]
    %v931 = vld [vmem:[#allocation2 + $0x3a4] sm:$0xf]
    %v932 = vld [vmem:[#allocation2 + $0x3a8] sm:$0xff]
    %v933 = vld [vmem:[#allocation2 + $0x3b0] sm:$0xf]
    %v934 = vld [vmem:[#allocation2 + $0x3b4] sm:$0xff]
    %v935 = vld [vmem:[#allocation2 + $0x3bc] sm:$0xf]
    %v936 = vld [vmem:[#allocation2 + $0x3c0] sm:$0xff]
    %v937 = vld [vmem:[#allocation2 + $0x3c8] sm:$0xf]
    %v938 = vld [vmem:[#allocation2 + $0x3cc] sm:$0xff]
    %v939 = vld [vmem:[#allocation2 + $0x3d4] sm:$0xf]
    %v940 = vld [vmem:[#allocation2 + $0x3d8] sm:$0xff]
    %v941 = vld [vmem:[#allocation2 + $0x3e0] sm:$0xf]
    %v942 = vld [vmem:[#allocation2 + $0x3e4] sm:$0xff]
    %v943 = vld [vmem:[#allocation2 + $0x3ec] sm:$0xf]
    %v944 = vld [vmem:[#allocation2 + $0x3f0] sm:$0xff]
    %v945 = vld [vmem:[#allocation2 + $0x3f8] sm:$0xf]
    %v946 = vld [vmem:[#allocation2 + $0x3fc] sm:$0xff]
    %v947 = vld [vmem:[#allocation2 + $0x404] sm:$0xf]
    %v948 = vld [vmem:[#allocation2 + $0x408] sm:$0xff]
    %v949 = vld [vmem:[#allocation2 + $0x410] sm:$0xf]
    %v950 = vld [vmem:[#allocation2 + $0x414] sm:$0xff]
    %v951 = vld [vmem:[#allocation2 + $0x41c] sm:$0xf]
    %v952 = vld [vmem:[#allocation2 + $0x420] sm:$0xff]
    %v953 = vld [vmem:[#allocation2 + $0x428] sm:$0xf]
    %v954 = vld [vmem:[#allocation2 + $0x42c] sm:$0xff]
    %v955 = vld [vmem:[#allocation2 + $0x434] sm:$0xf]
    %v956 = vld [vmem:[#allocation2 + $0x438] sm:$0xff]
    %v957 = vld [vmem:[#allocation2 + $0x440] sm:$0xf]
    %v958 = vld [vmem:[#allocation2 + $0x444] sm:$0xff]
    %v959 = vld [vmem:[#allocation2 + $0x44c] sm:$0xf]
    %v960 = vld [vmem:[#allocation2 + $0x450] sm:$0xff]
    %v961 = vld [vmem:[#allocation2 + $0x458] sm:$0xf]
    %v962 = vld [vmem:[#allocation2 + $0x45c] sm:$0xff]
    %v963 = vld [vmem:[#allocation2 + $0x464] sm:$0xf]
    %v964 = vld [vmem:[#allocation2 + $0x468] sm:$0xff]
    %v965 = vld [vmem:[#allocation2 + $0x470] sm:$0xf]
    %v966 = vld [vmem:[#allocation2 + $0x474] sm:$0xff]
    %v967 = vld [vmem:[#allocation2 + $0x47c] sm:$0xf]
    %v968 = vld [vmem:[#allocation2 + $0x480] sm:$0xff]
    %v969 = vld [vmem:[#allocation2 + $0x488] sm:$0xf]
    %v970 = vld [vmem:[#allocation2 + $0x48c] sm:$0xff]
    %v971 = vld [vmem:[#allocation2 + $0x494] sm:$0xf]
    %v972 = vld [vmem:[#allocation2 + $0x498] sm:$0xff]
    %v973 = vld [vmem:[#allocation2 + $0x4a0] sm:$0xf]
    %v974 = vld [vmem:[#allocation2 + $0x4a4] sm:$0xff]
    %v975 = vld [vmem:[#allocation2 + $0x4ac] sm:$0xf]
    %v976 = vld [vmem:[#allocation2 + $0x4b0] sm:$0xff]
    %v977 = vld [vmem:[#allocation2 + $0x4b8] sm:$0xf]
    %v978 = vld [vmem:[#allocation2 + $0x4bc] sm:$0xff]
    %v979 = vld [vmem:[#allocation2 + $0x4c4] sm:$0xf]
    %v980 = vld [vmem:[#allocation2 + $0x4c8] sm:$0xff]
    %v981 = vld [vmem:[#allocation2 + $0x4d0] sm:$0xf]
    %v982 = vld [vmem:[#allocation2 + $0x4d4] sm:$0xff]
    %v983 = vld [vmem:[#allocation2 + $0x4dc] sm:$0xf]
    %v984 = vld [vmem:[#allocation2 + $0x4e0] sm:$0xff]
    %v985 = vld [vmem:[#allocation2 + $0x4e8] sm:$0xf]
    %v986 = vld [vmem:[#allocation2 + $0x4ec] sm:$0xff]
    %v987 = vld [vmem:[#allocation2 + $0x4f4] sm:$0xf]
    %v988 = vld [vmem:[#allocation2 + $0x4f8] sm:$0xff]
    %v989 = vld [vmem:[#allocation2 + $0x500] sm:$0xf]
    %v990 = vld [vmem:[#allocation2 + $0x504] sm:$0xff]
    %v991 = vld [vmem:[#allocation2 + $0x50c] sm:$0xf]
    %v992 = vld [vmem:[#allocation2 + $0x510] sm:$0xff]
    %v993 = vld [vmem:[#allocation2 + $0x518] sm:$0xf]
    %v994 = vld [vmem:[#allocation2 + $0x51c] sm:$0xff]
    %v995 = vld [vmem:[#allocation2 + $0x524] sm:$0xf]
    %v996 = vld [vmem:[#allocation2 + $0x528] sm:$0xff]
    %v997 = vld [vmem:[#allocation2 + $0x530] sm:$0xf]
    %v998 = vld [vmem:[#allocation2 + $0x534] sm:$0xff]
    %v999 = vld [vmem:[#allocation2 + $0x53c] sm:$0xf]
    %v1000 = vld [vmem:[#allocation2 + $0x540] sm:$0xff]
    %v1001 = vld [vmem:[#allocation2 + $0x548] sm:$0xf]
    %v1002 = vld [vmem:[#allocation2 + $0x54c] sm:$0xff]
    %v1003 = vld [vmem:[#allocation2 + $0x554] sm:$0xf]
    %v1004 = vld [vmem:[#allocation2 + $0x558] sm:$0xff]
    %v1005 = vld [vmem:[#allocation2 + $0x560] sm:$0xf]
    %v1006 = vld [vmem:[#allocation2 + $0x564] sm:$0xff]
    %v1007 = vld [vmem:[#allocation2 + $0x56c] sm:$0xf]
    %v1008 = vld [vmem:[#allocation2 + $0x570] sm:$0xff]
    %v1009 = vld [vmem:[#allocation2 + $0x578] sm:$0xf]
    %v1010 = vld [vmem:[#allocation2 + $0x57c] sm:$0xff]
    %v1011 = vld [vmem:[#allocation2 + $0x584] sm:$0xf]
    %v1012 = vld [vmem:[#allocation2 + $0x588] sm:$0xff]
    %v1013 = vld [vmem:[#allocation2 + $0x590] sm:$0xf]
    %v1014 = vld [vmem:[#allocation2 + $0x594] sm:$0xff]
    %v1015 = vld [vmem:[#allocation2 + $0x59c] sm:$0xf]
    %v1016 = vld [vmem:[#allocation2 + $0x5a0] sm:$0xff]
    %v1017 = vld [vmem:[#allocation2 + $0x5a8] sm:$0xf]
    %v1018 = vld [vmem:[#allocation2 + $0x5ac] sm:$0xff]
    %v1019 = vld [vmem:[#allocation2 + $0x5b4] sm:$0xf]
    %v1020 = vld [vmem:[#allocation2 + $0x5b8] sm:$0xff]
    %v1021 = vld [vmem:[#allocation2 + $0x5c0] sm:$0xf]
    %v1022 = vld [vmem:[#allocation2 + $0x5c4] sm:$0xff]
    %v1023 = vld [vmem:[#allocation2 + $0x5cc] sm:$0xf]
    %v1024 = vld [vmem:[#allocation2 + $0x5d0] sm:$0xff]
    %v1025 = vld [vmem:[#allocation2 + $0x5d8] sm:$0xf]
    %v1026 = vld [vmem:[#allocation2 + $0x5dc] sm:$0xff]
    %v1027 = vld [vmem:[#allocation2 + $0x5e4] sm:$0xf]
    %v1028 = vld [vmem:[#allocation2 + $0x5e8] sm:$0xff]
    %v1029 = vld [vmem:[#allocation2 + $0x5f0] sm:$0xf]
    %v1030 = vld [vmem:[#allocation2 + $0x5f4] sm:$0xff]
    %v1031 = vld [vmem:[#allocation2 + $0x5fc] sm:$0xf]
    %v1032 = vld [vmem:[#allocation2 + $0x600] sm:$0xff]
    %v1033 = vld [vmem:[#allocation2 + $0x608] sm:$0xf]
    %v1034 = vld [vmem:[#allocation2 + $0x60c] sm:$0xff]
    %v1035 = vld [vmem:[#allocation2 + $0x614] sm:$0xf]
    %v1036 = vld [vmem:[#allocation2 + $0x618] sm:$0xff]
    %v1037 = vld [vmem:[#allocation2 + $0x620] sm:$0xf]
    %v1038 = vld [vmem:[#allocation2 + $0x624] sm:$0xff]
    %v1039 = vld [vmem:[#allocation2 + $0x62c] sm:$0xf]
    %v1040 = vld [vmem:[#allocation2 + $0x630] sm:$0xff]
    %v1041 = vld [vmem:[#allocation2 + $0x638] sm:$0xf]
    %v1042 = vld [vmem:[#allocation2 + $0x63c] sm:$0xff]
    %v1043 = vld [vmem:[#allocation2 + $0x644] sm:$0xf]
    %v1044 = vld [vmem:[#allocation2 + $0x648] sm:$0xff]
    %v1045 = vld [vmem:[#allocation2 + $0x650] sm:$0xf]
    %v1046 = vld [vmem:[#allocation2 + $0x654] sm:$0xff]
    %v1047 = vld [vmem:[#allocation2 + $0x65c] sm:$0xf]
    %v1048 = vld [vmem:[#allocation2 + $0x660] sm:$0xff]
    %v1049 = vld [vmem:[#allocation2 + $0x668] sm:$0xf]
    %v1050 = vld [vmem:[#allocation2 + $0x66c] sm:$0xff]
    %v1051 = vld [vmem:[#allocation2 + $0x674] sm:$0xf]
    %v1052 = vld [vmem:[#allocation2 + $0x678] sm:$0xff]
    %v1053 = vld [vmem:[#allocation2 + $0x680] sm:$0xf]
    %v1054 = vld [vmem:[#allocation2 + $0x684] sm:$0xff]
    %v1055 = vld [vmem:[#allocation2 + $0x68c] sm:$0xf]
    %v1056 = vld [vmem:[#allocation2 + $0x690] sm:$0xff]
    %v1057 = vld [vmem:[#allocation2 + $0x698] sm:$0xf]
    %v1058 = vld [vmem:[#allocation2 + $0x69c] sm:$0xff]
    %v1059 = vld [vmem:[#allocation2 + $0x6a4] sm:$0xf]
    %v1060 = vld [vmem:[#allocation2 + $0x6a8] sm:$0xff]
    %v1061 = vld [vmem:[#allocation2 + $0x6b0] sm:$0xf]
    %v1062 = vld [vmem:[#allocation2 + $0x6b4] sm:$0xff]
    %v1063 = vld [vmem:[#allocation2 + $0x6bc] sm:$0xf]
    %v1064 = vld [vmem:[%s8] sm:$0x7]
    %v1066 = vperm.slane %v1064, 0
    %v1067 = vperm.slane %v1064, 1
    %v1068 = vperm.slane %v1064, 2
    %v1360 = vunpack.c.l.b16 %v776
    %v1361 = vunpack.c.h.b16 %v776
    %v1362 = vunpack.c.l.b16 %v777
    %v1363 = vunpack.c.l.b16 %v778
    %v1364 = vunpack.c.h.b16 %v778
    %v1365 = vunpack.c.l.b16 %v779
    %v1366 = vunpack.c.l.b16 %v780
    %v1367 = vunpack.c.h.b16 %v780
    %v1368 = vunpack.c.l.b16 %v781
    %v1369 = vunpack.c.l.b16 %v782
    %v1370 = vunpack.c.h.b16 %v782
    %v1371 = vunpack.c.l.b16 %v783
    %v1372 = vunpack.c.l.b16 %v784
    %v1373 = vunpack.c.h.b16 %v784
    %v1374 = vunpack.c.l.b16 %v785
    %v1375 = vunpack.c.l.b16 %v786
    %v1376 = vunpack.c.h.b16 %v786
    %v1377 = vunpack.c.l.b16 %v787
    %v1378 = vunpack.c.l.b16 %v788
    %v1379 = vunpack.c.h.b16 %v788
    %v1380 = vunpack.c.l.b16 %v789
    %v1381 = vunpack.c.l.b16 %v790
    %v1382 = vunpack.c.h.b16 %v790
    %v1383 = vunpack.c.l.b16 %v791
    %v1384 = vunpack.c.l.b16 %v792
    %v1385 = vunpack.c.h.b16 %v792
    %v1386 = vunpack.c.l.b16 %v793
    %v1387 = vunpack.c.l.b16 %v794
    %v1388 = vunpack.c.h.b16 %v794
    %v1389 = vunpack.c.l.b16 %v795
    %v1390 = vunpack.c.l.b16 %v796
    %v1391 = vunpack.c.h.b16 %v796
    %v1392 = vunpack.c.l.b16 %v797
    %v1393 = vunpack.c.l.b16 %v798
    %v1394 = vunpack.c.h.b16 %v798
    %v1395 = vunpack.c.l.b16 %v799
    %v1396 = vunpack.c.l.b16 %v800
    %v1397 = vunpack.c.h.b16 %v800
    %v1398 = vunpack.c.l.b16 %v801
    %v1399 = vunpack.c.l.b16 %v802
    %v1400 = vunpack.c.h.b16 %v802
    %v1401 = vunpack.c.l.b16 %v803
    %v1402 = vunpack.c.l.b16 %v804
    %v1403 = vunpack.c.h.b16 %v804
    %v1404 = vunpack.c.l.b16 %v805
    %v1405 = vunpack.c.l.b16 %v806
    %v1406 = vunpack.c.h.b16 %v806
    %v1407 = vunpack.c.l.b16 %v807
    %v1408 = vunpack.c.l.b16 %v808
    %v1409 = vunpack.c.h.b16 %v808
    %v1410 = vunpack.c.l.b16 %v809
    %v1411 = vunpack.c.l.b16 %v810
    %v1412 = vunpack.c.h.b16 %v810
    %v1413 = vunpack.c.l.b16 %v811
    %v1414 = vunpack.c.l.b16 %v812
    %v1415 = vunpack.c.h.b16 %v812
    %v1416 = vunpack.c.l.b16 %v813
    %v1417 = vunpack.c.l.b16 %v814
    %v1418 = vunpack.c.h.b16 %v814
    %v1419 = vunpack.c.l.b16 %v815
    %v1420 = vunpack.c.l.b16 %v816
    %v1421 = vunpack.c.h.b16 %v816
    %v1422 = vunpack.c.l.b16 %v817
    %v1423 = vunpack.c.l.b16 %v818
    %v1424 = vunpack.c.h.b16 %v818
    %v1425 = vunpack.c.l.b16 %v819
    %v1426 = vunpack.c.l.b16 %v820
    %v1427 = vunpack.c.h.b16 %v820
    %v1428 = vunpack.c.l.b16 %v821
    %v1429 = vunpack.c.l.b16 %v822
    %v1430 = vunpack.c.h.b16 %v822
    %v1431 = vunpack.c.l.b16 %v823
    %v1432 = vunpack.c.l.b16 %v824
    %v1433 = vunpack.c.h.b16 %v824
    %v1434 = vunpack.c.l.b16 %v825
    %v1435 = vunpack.c.l.b16 %v826
    %v1436 = vunpack.c.h.b16 %v826
    %v1437 = vunpack.c.l.b16 %v827
    %v1438 = vunpack.c.l.b16 %v828
    %v1439 = vunpack.c.h.b16 %v828
    %v1440 = vunpack.c.l.b16 %v829
    %v1441 = vunpack.c.l.b16 %v830
    %v1442 = vunpack.c.h.b16 %v830
    %v1443 = vunpack.c.l.b16 %v831
    %v1444 = vunpack.c.l.b16 %v832
    %v1445 = vunpack.c.h.b16 %v832
    %v1446 = vunpack.c.l.b16 %v833
    %v1447 = vunpack.c.l.b16 %v834
    %v1448 = vunpack.c.h.b16 %v834
    %v1449 = vunpack.c.l.b16 %v835
    %v1450 = vunpack.c.l.b16 %v836
    %v1451 = vunpack.c.h.b16 %v836
    %v1452 = vunpack.c.l.b16 %v837
    %v1453 = vunpack.c.l.b16 %v838
    %v1454 = vunpack.c.h.b16 %v838
    %v1455 = vunpack.c.l.b16 %v839
    %v1456 = vunpack.c.l.b16 %v840
    %v1457 = vunpack.c.h.b16 %v840
    %v1458 = vunpack.c.l.b16 %v841
    %v1459 = vunpack.c.l.b16 %v842
    %v1460 = vunpack.c.h.b16 %v842
    %v1461 = vunpack.c.l.b16 %v843
    %v1462 = vunpack.c.l.b16 %v844
    %v1463 = vunpack.c.h.b16 %v844
    %v1464 = vunpack.c.l.b16 %v845
    %v1465 = vunpack.c.l.b16 %v846
    %v1466 = vunpack.c.h.b16 %v846
    %v1467 = vunpack.c.l.b16 %v847
    %v1468 = vunpack.c.l.b16 %v848
    %v1469 = vunpack.c.h.b16 %v848
    %v1470 = vunpack.c.l.b16 %v849
    %v1471 = vunpack.c.l.b16 %v850
    %v1472 = vunpack.c.h.b16 %v850
    %v1473 = vunpack.c.l.b16 %v851
    %v1474 = vunpack.c.l.b16 %v852
    %v1475 = vunpack.c.h.b16 %v852
    %v1476 = vunpack.c.l.b16 %v853
    %v1477 = vunpack.c.l.b16 %v854
    %v1478 = vunpack.c.h.b16 %v854
    %v1479 = vunpack.c.l.b16 %v855
    %v1480 = vunpack.c.l.b16 %v856
    %v1481 = vunpack.c.h.b16 %v856
    %v1482 = vunpack.c.l.b16 %v857
    %v1483 = vunpack.c.l.b16 %v858
    %v1484 = vunpack.c.h.b16 %v858
    %v1485 = vunpack.c.l.b16 %v859
    %v1486 = vunpack.c.l.b16 %v860
    %v1487 = vunpack.c.h.b16 %v860
    %v1488 = vunpack.c.l.b16 %v861
    %v1489 = vunpack.c.l.b16 %v862
    %v1490 = vunpack.c.h.b16 %v862
    %v1491 = vunpack.c.l.b16 %v863
    %v1492 = vunpack.c.l.b16 %v864
    %v1493 = vunpack.c.h.b16 %v864
    %v1494 = vunpack.c.l.b16 %v865
    %v1495 = vunpack.c.l.b16 %v866
    %v1496 = vunpack.c.h.b16 %v866
    %v1497 = vunpack.c.l.b16 %v867
    %v1498 = vunpack.c.l.b16 %v868
    %v1499 = vunpack.c.h.b16 %v868
    %v1500 = vunpack.c.l.b16 %v869
    %v1501 = vunpack.c.l.b16 %v870
    %v1502 = vunpack.c.h.b16 %v870
    %v1503 = vunpack.c.l.b16 %v871
    %v1504 = vunpack.c.l.b16 %v872
    %v1505 = vunpack.c.h.b16 %v872
    %v1506 = vunpack.c.l.b16 %v873
    %v1507 = vunpack.c.l.b16 %v874
    %v1508 = vunpack.c.h.b16 %v874
    %v1509 = vunpack.c.l.b16 %v875
    %v1510 = vunpack.c.l.b16 %v876
    %v1511 = vunpack.c.h.b16 %v876
    %v1512 = vunpack.c.l.b16 %v877
    %v1513 = vunpack.c.l.b16 %v878
    %v1514 = vunpack.c.h.b16 %v878
    %v1515 = vunpack.c.l.b16 %v879
    %v1516 = vunpack.c.l.b16 %v880
    %v1517 = vunpack.c.h.b16 %v880
    %v1518 = vunpack.c.l.b16 %v881
    %v1519 = vunpack.c.l.b16 %v882
    %v1520 = vunpack.c.h.b16 %v882
    %v1521 = vunpack.c.l.b16 %v883
    %v1522 = vunpack.c.l.b16 %v884
    %v1523 = vunpack.c.h.b16 %v884
    %v1524 = vunpack.c.l.b16 %v885
    %v1525 = vunpack.c.l.b16 %v886
    %v1526 = vunpack.c.h.b16 %v886
    %v1527 = vunpack.c.l.b16 %v887
    %v1528 = vunpack.c.l.b16 %v888
    %v1529 = vunpack.c.h.b16 %v888
    %v1530 = vunpack.c.l.b16 %v889
    %v1531 = vunpack.c.l.b16 %v890
    %v1532 = vunpack.c.h.b16 %v890
    %v1533 = vunpack.c.l.b16 %v891
    %v1534 = vunpack.c.l.b16 %v892
    %v1535 = vunpack.c.h.b16 %v892
    %v1536 = vunpack.c.l.b16 %v893
    %v1537 = vunpack.c.l.b16 %v894
    %v1538 = vunpack.c.h.b16 %v894
    %v1539 = vunpack.c.l.b16 %v895
    %v1540 = vunpack.c.l.b16 %v896
    %v1541 = vunpack.c.h.b16 %v896
    %v1542 = vunpack.c.l.b16 %v897
    %v1543 = vunpack.c.l.b16 %v898
    %v1544 = vunpack.c.h.b16 %v898
    %v1545 = vunpack.c.l.b16 %v899
    %v1546 = vunpack.c.l.b16 %v900
    %v1547 = vunpack.c.h.b16 %v900
    %v1548 = vunpack.c.l.b16 %v901
    %v1549 = vunpack.c.l.b16 %v902
    %v1550 = vunpack.c.h.b16 %v902
    %v1551 = vunpack.c.l.b16 %v903
    %v1552 = vunpack.c.l.b16 %v904
    %v1553 = vunpack.c.h.b16 %v904
    %v1554 = vunpack.c.l.b16 %v905
    %v1555 = vunpack.c.l.b16 %v906
    %v1556 = vunpack.c.h.b16 %v906
    %v1557 = vunpack.c.l.b16 %v907
    %v1558 = vunpack.c.l.b16 %v908
    %v1559 = vunpack.c.h.b16 %v908
    %v1560 = vunpack.c.l.b16 %v909
    %v1561 = vunpack.c.l.b16 %v910
    %v1562 = vunpack.c.h.b16 %v910
    %v1563 = vunpack.c.l.b16 %v911
    %v1564 = vunpack.c.l.b16 %v912
    %v1565 = vunpack.c.h.b16 %v912
    %v1566 = vunpack.c.l.b16 %v913
    %v1567 = vunpack.c.l.b16 %v914
    %v1568 = vunpack.c.h.b16 %v914
    %v1569 = vunpack.c.l.b16 %v915
    %v1570 = vunpack.c.l.b16 %v916
    %v1571 = vunpack.c.h.b16 %v916
    %v1572 = vunpack.c.l.b16 %v917
    %v1573 = vunpack.c.l.b16 %v918
    %v1574 = vunpack.c.h.b16 %v918
    %v1575 = vunpack.c.l.b16 %v919
    %v1576 = vunpack.c.l.b16 %v920
    %v1577 = vunpack.c.h.b16 %v920
    %v1578 = vunpack.c.l.b16 %v921
    %v1579 = vunpack.c.l.b16 %v922
    %v1580 = vunpack.c.h.b16 %v922
    %v1581 = vunpack.c.l.b16 %v923
    %v1582 = vunpack.c.l.b16 %v924
    %v1583 = vunpack.c.h.b16 %v924
    %v1584 = vunpack.c.l.b16 %v925
    %v1585 = vunpack.c.l.b16 %v926
    %v1586 = vunpack.c.h.b16 %v926
    %v1587 = vunpack.c.l.b16 %v927
    %v1588 = vunpack.c.l.b16 %v928
    %v1589 = vunpack.c.h.b16 %v928
    %v1590 = vunpack.c.l.b16 %v929
    %v1591 = vunpack.c.l.b16 %v930
    %v1592 = vunpack.c.h.b16 %v930
    %v1593 = vunpack.c.l.b16 %v931
    %v1594 = vunpack.c.l.b16 %v932
    %v1595 = vunpack.c.h.b16 %v932
    %v1596 = vunpack.c.l.b16 %v933
    %v1597 = vunpack.c.l.b16 %v934
    %v1598 = vunpack.c.h.b16 %v934
    %v1599 = vunpack.c.l.b16 %v935
    %v1600 = vunpack.c.l.b16 %v936
    %v1601 = vunpack.c.h.b16 %v936
    %v1602 = vunpack.c.l.b16 %v937
    %v1603 = vunpack.c.l.b16 %v938
    %v1604 = vunpack.c.h.b16 %v938
    %v1605 = vunpack.c.l.b16 %v939
    %v1606 = vunpack.c.l.b16 %v940
    %v1607 = vunpack.c.h.b16 %v940
    %v1608 = vunpack.c.l.b16 %v941
    %v1609 = vunpack.c.l.b16 %v942
    %v1610 = vunpack.c.h.b16 %v942
    %v1611 = vunpack.c.l.b16 %v943
    %v1612 = vunpack.c.l.b16 %v944
    %v1613 = vunpack.c.h.b16 %v944
    %v1614 = vunpack.c.l.b16 %v945
    %v1615 = vunpack.c.l.b16 %v946
    %v1616 = vunpack.c.h.b16 %v946
    %v1617 = vunpack.c.l.b16 %v947
    %v1618 = vunpack.c.l.b16 %v948
    %v1619 = vunpack.c.h.b16 %v948
    %v1620 = vunpack.c.l.b16 %v949
    %v1621 = vunpack.c.l.b16 %v950
    %v1622 = vunpack.c.h.b16 %v950
    %v1623 = vunpack.c.l.b16 %v951
    %v1624 = vunpack.c.l.b16 %v952
    %v1625 = vunpack.c.h.b16 %v952
    %v1626 = vunpack.c.l.b16 %v953
    %v1627 = vunpack.c.l.b16 %v954
    %v1628 = vunpack.c.h.b16 %v954
    %v1629 = vunpack.c.l.b16 %v955
    %v1630 = vunpack.c.l.b16 %v956
    %v1631 = vunpack.c.h.b16 %v956
    %v1632 = vunpack.c.l.b16 %v957
    %v1633 = vunpack.c.l.b16 %v958
    %v1634 = vunpack.c.h.b16 %v958
    %v1635 = vunpack.c.l.b16 %v959
    %v1636 = vunpack.c.l.b16 %v960
    %v1637 = vunpack.c.h.b16 %v960
    %v1638 = vunpack.c.l.b16 %v961
    %v1639 = vunpack.c.l.b16 %v962
    %v1640 = vunpack.c.h.b16 %v962
    %v1641 = vunpack.c.l.b16 %v963
    %v1642 = vunpack.c.l.b16 %v964
    %v1643 = vunpack.c.h.b16 %v964
    %v1644 = vunpack.c.l.b16 %v965
    %v1645 = vunpack.c.l.b16 %v966
    %v1646 = vunpack.c.h.b16 %v966
    %v1647 = vunpack.c.l.b16 %v967
    %v1648 = vunpack.c.l.b16 %v968
    %v1649 = vunpack.c.h.b16 %v968
    %v1650 = vunpack.c.l.b16 %v969
    %v1651 = vunpack.c.l.b16 %v970
    %v1652 = vunpack.c.h.b16 %v970
    %v1653 = vunpack.c.l.b16 %v971
    %v1654 = vunpack.c.l.b16 %v972
    %v1655 = vunpack.c.h.b16 %v972
    %v1656 = vunpack.c.l.b16 %v973
    %v1657 = vunpack.c.l.b16 %v974
    %v1658 = vunpack.c.h.b16 %v974
    %v1659 = vunpack.c.l.b16 %v975
    %v1660 = vunpack.c.l.b16 %v976
    %v1661 = vunpack.c.h.b16 %v976
    %v1662 = vunpack.c.l.b16 %v977
    %v1663 = vunpack.c.l.b16 %v978
    %v1664 = vunpack.c.h.b16 %v978
    %v1665 = vunpack.c.l.b16 %v979
    %v1666 = vunpack.c.l.b16 %v980
    %v1667 = vunpack.c.h.b16 %v980
    %v1668 = vunpack.c.l.b16 %v981
    %v1669 = vunpack.c.l.b16 %v982
    %v1670 = vunpack.c.h.b16 %v982
    %v1671 = vunpack.c.l.b16 %v983
    %v1672 = vunpack.c.l.b16 %v984
    %v1673 = vunpack.c.h.b16 %v984
    %v1674 = vunpack.c.l.b16 %v985
    %v1675 = vunpack.c.l.b16 %v986
    %v1676 = vunpack.c.h.b16 %v986
    %v1677 = vunpack.c.l.b16 %v987
    %v1678 = vunpack.c.l.b16 %v988
    %v1679 = vunpack.c.h.b16 %v988
    %v1680 = vunpack.c.l.b16 %v989
    %v1681 = vunpack.c.l.b16 %v990
    %v1682 = vunpack.c.h.b16 %v990
    %v1683 = vunpack.c.l.b16 %v991
    %v1684 = vunpack.c.l.b16 %v992
    %v1685 = vunpack.c.h.b16 %v992
    %v1686 = vunpack.c.l.b16 %v993
    %v1687 = vunpack.c.l.b16 %v994
    %v1688 = vunpack.c.h.b16 %v994
    %v1689 = vunpack.c.l.b16 %v995
    %v1690 = vunpack.c.l.b16 %v996
    %v1691 = vunpack.c.h.b16 %v996
    %v1692 = vunpack.c.l.b16 %v997
    %v1693 = vunpack.c.l.b16 %v998
    %v1694 = vunpack.c.h.b16 %v998
    %v1695 = vunpack.c.l.b16 %v999
    %v1696 = vunpack.c.l.b16 %v1000
    %v1697 = vunpack.c.h.b16 %v1000
    %v1698 = vunpack.c.l.b16 %v1001
    %v1699 = vunpack.c.l.b16 %v1002
    %v1700 = vunpack.c.h.b16 %v1002
    %v1701 = vunpack.c.l.b16 %v1003
    %v1702 = vunpack.c.l.b16 %v1004
    %v1703 = vunpack.c.h.b16 %v1004
    %v1704 = vunpack.c.l.b16 %v1005
    %v1705 = vunpack.c.l.b16 %v1006
    %v1706 = vunpack.c.h.b16 %v1006
    %v1707 = vunpack.c.l.b16 %v1007
    %v1708 = vunpack.c.l.b16 %v1008
    %v1709 = vunpack.c.h.b16 %v1008
    %v1710 = vunpack.c.l.b16 %v1009
    %v1711 = vunpack.c.l.b16 %v1010
    %v1712 = vunpack.c.h.b16 %v1010
    %v1713 = vunpack.c.l.b16 %v1011
    %v1714 = vunpack.c.l.b16 %v1012
    %v1715 = vunpack.c.h.b16 %v1012
    %v1716 = vunpack.c.l.b16 %v1013
    %v1717 = vunpack.c.l.b16 %v1014
    %v1718 = vunpack.c.h.b16 %v1014
    %v1719 = vunpack.c.l.b16 %v1015
    %v1720 = vunpack.c.l.b16 %v1016
    %v1721 = vunpack.c.h.b16 %v1016
    %v1722 = vunpack.c.l.b16 %v1017
    %v1723 = vunpack.c.l.b16 %v1018
    %v1724 = vunpack.c.h.b16 %v1018
    %v1725 = vunpack.c.l.b16 %v1019
    %v1726 = vunpack.c.l.b16 %v1020
    %v1727 = vunpack.c.h.b16 %v1020
    %v1728 = vunpack.c.l.b16 %v1021
    %v1729 = vunpack.c.l.b16 %v1022
    %v1730 = vunpack.c.h.b16 %v1022
    %v1731 = vunpack.c.l.b16 %v1023
    %v1732 = vunpack.c.l.b16 %v1024
    %v1733 = vunpack.c.h.b16 %v1024
    %v1734 = vunpack.c.l.b16 %v1025
    %v1735 = vunpack.c.l.b16 %v1026
    %v1736 = vunpack.c.h.b16 %v1026
    %v1737 = vunpack.c.l.b16 %v1027
    %v1738 = vunpack.c.l.b16 %v1028
    %v1739 = vunpack.c.h.b16 %v1028
    %v1740 = vunpack.c.l.b16 %v1029
    %v1741 = vunpack.c.l.b16 %v1030
    %v1742 = vunpack.c.h.b16 %v1030
    %v1743 = vunpack.c.l.b16 %v1031
    %v1744 = vunpack.c.l.b16 %v1032
    %v1745 = vunpack.c.h.b16 %v1032
    %v1746 = vunpack.c.l.b16 %v1033
    %v1747 = vunpack.c.l.b16 %v1034
    %v1748 = vunpack.c.h.b16 %v1034
    %v1749 = vunpack.c.l.b16 %v1035
    %v1750 = vunpack.c.l.b16 %v1036
    %v1751 = vunpack.c.h.b16 %v1036
    %v1752 = vunpack.c.l.b16 %v1037
    %v1753 = vunpack.c.l.b16 %v1038
    %v1754 = vunpack.c.h.b16 %v1038
    %v1755 = vunpack.c.l.b16 %v1039
    %v1756 = vunpack.c.l.b16 %v1040
    %v1757 = vunpack.c.h.b16 %v1040
    %v1758 = vunpack.c.l.b16 %v1041
    %v1759 = vunpack.c.l.b16 %v1042
    %v1760 = vunpack.c.h.b16 %v1042
    %v1761 = vunpack.c.l.b16 %v1043
    %v1762 = vunpack.c.l.b16 %v1044
    %v1763 = vunpack.c.h.b16 %v1044
    %v1764 = vunpack.c.l.b16 %v1045
    %v1765 = vunpack.c.l.b16 %v1046
    %v1766 = vunpack.c.h.b16 %v1046
    %v1767 = vunpack.c.l.b16 %v1047
    %v1768 = vunpack.c.l.b16 %v1048
    %v1769 = vunpack.c.h.b16 %v1048
    %v1770 = vunpack.c.l.b16 %v1049
    %v1771 = vunpack.c.l.b16 %v1050
    %v1772 = vunpack.c.h.b16 %v1050
    %v1773 = vunpack.c.l.b16 %v1051
    %v1774 = vunpack.c.l.b16 %v1052
    %v1775 = vunpack.c.h.b16 %v1052
    %v1776 = vunpack.c.l.b16 %v1053
    %v1777 = vunpack.c.l.b16 %v1054
    %v1778 = vunpack.c.h.b16 %v1054
    %v1779 = vunpack.c.l.b16 %v1055
    %v1780 = vunpack.c.l.b16 %v1056
    %v1781 = vunpack.c.h.b16 %v1056
    %v1782 = vunpack.c.l.b16 %v1057
    %v1783 = vunpack.c.l.b16 %v1058
    %v1784 = vunpack.c.h.b16 %v1058
    %v1785 = vunpack.c.l.b16 %v1059
    %v1786 = vunpack.c.l.b16 %v1060
    %v1787 = vunpack.c.h.b16 %v1060
    %v1788 = vunpack.c.l.b16 %v1061
    %v1789 = vunpack.c.l.b16 %v1062
    %v1790 = vunpack.c.h.b16 %v1062
    %v1791 = vunpack.c.l.b16 %v1063
    %v1792 = vpack.c.b16 %v1363, %v1360
    %v1793 = vpack.c.b16 %v1364, %v1361
    %v1794 = vpack.c.b16 %v1365, %v1362
    %v1795 = vpack.c.b16 %v1369, %v1366
    %v1796 = vpack.c.b16 %v1370, %v1367
    %v1797 = vpack.c.b16 %v1371, %v1368
    %v1798 = vpack.c.b16 %v1375, %v1372
    %v1799 = vpack.c.b16 %v1376, %v1373
    %v1800 = vpack.c.b16 %v1377, %v1374
    %v1801 = vpack.c.b16 %v1381, %v1378
    %v1802 = vpack.c.b16 %v1382, %v1379
    %v1803 = vpack.c.b16 %v1383, %v1380
    %v1804 = vpack.c.b16 %v1387, %v1384
    %v1805 = vpack.c.b16 %v1388, %v1385
    %v1806 = vpack.c.b16 %v1389, %v1386
    %v1807 = vpack.c.b16 %v1393, %v1390
    %v1808 = vpack.c.b16 %v1394, %v1391
    %v1809 = vpack.c.b16 %v1395, %v1392
    %v1810 = vpack.c.b16 %v1399, %v1396
    %v1811 = vpack.c.b16 %v1400, %v1397
    %v1812 = vpack.c.b16 %v1401, %v1398
    %v1813 = vpack.c.b16 %v1405, %v1402
    %v1814 = vpack.c.b16 %v1406, %v1403
    %v1815 = vpack.c.b16 %v1407, %v1404
    %v1816 = vpack.c.b16 %v1411, %v1408
    %v1817 = vpack.c.b16 %v1412, %v1409
    %v1818 = vpack.c.b16 %v1413, %v1410
    %v1819 = vpack.c.b16 %v1417, %v1414
    %v1820 = vpack.c.b16 %v1418, %v1415
    %v1821 = vpack.c.b16 %v1419, %v1416
    %v1822 = vpack.c.b16 %v1423, %v1420
    %v1823 = vpack.c.b16 %v1424, %v1421
    %v1824 = vpack.c.b16 %v1425, %v1422
    %v1825 = vpack.c.b16 %v1429, %v1426
    %v1826 = vpack.c.b16 %v1430, %v1427
    %v1827 = vpack.c.b16 %v1431, %v1428
    %v1828 = vpack.c.b16 %v1435, %v1432
    %v1829 = vpack.c.b16 %v1436, %v1433
    %v1830 = vpack.c.b16 %v1437, %v1434
    %v1831 = vpack.c.b16 %v1441, %v1438
    %v1832 = vpack.c.b16 %v1442, %v1439
    %v1833 = vpack.c.b16 %v1443, %v1440
    %v1834 = vpack.c.b16 %v1447, %v1444
    %v1835 = vpack.c.b16 %v1448, %v1445
    %v1836 = vpack.c.b16 %v1449, %v1446
    %v1837 = vpack.c.b16 %v1453, %v1450
    %v1838 = vpack.c.b16 %v1454, %v1451
    %v1839 = vpack.c.b16 %v1455, %v1452
    %v1840 = vpack.c.b16 %v1459, %v1456
    %v1841 = vpack.c.b16 %v1460, %v1457
    %v1842 = vpack.c.b16 %v1461, %v1458
    %v1843 = vpack.c.b16 %v1465, %v1462
    %v1844 = vpack.c.b16 %v1466, %v1463
    %v1845 = vpack.c.b16 %v1467, %v1464
    %v1846 = vpack.c.b16 %v1471, %v1468
    %v1847 = vpack.c.b16 %v1472, %v1469
    %v1848 = vpack.c.b16 %v1473, %v1470
    %v1849 = vpack.c.b16 %v1477, %v1474
    %v1850 = vpack.c.b16 %v1478, %v1475
    %v1851 = vpack.c.b16 %v1479, %v1476
    %v1852 = vpack.c.b16 %v1483, %v1480
    %v1853 = vpack.c.b16 %v1484, %v1481
    %v1854 = vpack.c.b16 %v1485, %v1482
    %v1855 = vpack.c.b16 %v1489, %v1486
    %v1856 = vpack.c.b16 %v1490, %v1487
    %v1857 = vpack.c.b16 %v1491, %v1488
    %v1858 = vpack.c.b16 %v1495, %v1492
    %v1859 = vpack.c.b16 %v1496, %v1493
    %v1860 = vpack.c.b16 %v1497, %v1494
    %v1861 = vpack.c.b16 %v1501, %v1498
    %v1862 = vpack.c.b16 %v1502, %v1499
    %v1863 = vpack.c.b16 %v1503, %v1500
    %v1864 = vpack.c.b16 %v1507, %v1504
    %v1865 = vpack.c.b16 %v1508, %v1505
    %v1866 = vpack.c.b16 %v1509, %v1506
    %v1867 = vpack.c.b16 %v1513, %v1510
    %v1868 = vpack.c.b16 %v1514, %v1511
    %v1869 = vpack.c.b16 %v1515, %v1512
    %v1870 = vpack.c.b16 %v1519, %v1516
    %v1871 = vpack.c.b16 %v1520, %v1517
    %v1872 = vpack.c.b16 %v1521, %v1518
    %v1873 = vpack.c.b16 %v1525, %v1522
    %v1874 = vpack.c.b16 %v1526, %v1523
    %v1875 = vpack.c.b16 %v1527, %v1524
    %v1876 = vpack.c.b16 %v1531, %v1528
    %v1877 = vpack.c.b16 %v1532, %v1529
    %v1878 = vpack.c.b16 %v1533, %v1530
    %v1879 = vpack.c.b16 %v1537, %v1534
    %v1880 = vpack.c.b16 %v1538, %v1535
    %v1881 = vpack.c.b16 %v1539, %v1536
    %v1882 = vpack.c.b16 %v1543, %v1540
    %v1883 = vpack.c.b16 %v1544, %v1541
    %v1884 = vpack.c.b16 %v1545, %v1542
    %v1885 = vpack.c.b16 %v1549, %v1546
    %v1886 = vpack.c.b16 %v1550, %v1547
    %v1887 = vpack.c.b16 %v1551, %v1548
    %v1888 = vpack.c.b16 %v1555, %v1552
    %v1889 = vpack.c.b16 %v1556, %v1553
    %v1890 = vpack.c.b16 %v1557, %v1554
    %v1891 = vpack.c.b16 %v1561, %v1558
    %v1892 = vpack.c.b16 %v1562, %v1559
    %v1893 = vpack.c.b16 %v1563, %v1560
    %v1894 = vpack.c.b16 %v1567, %v1564
    %v1895 = vpack.c.b16 %v1568, %v1565
    %v1896 = vpack.c.b16 %v1569, %v1566
    %v1897 = vpack.c.b16 %v1573, %v1570
    %v1898 = vpack.c.b16 %v1574, %v1571
    %v1899 = vpack.c.b16 %v1575, %v1572
    %v1900 = vpack.c.b16 %v1579, %v1576
    %v1901 = vpack.c.b16 %v1580, %v1577
    %v1902 = vpack.c.b16 %v1581, %v1578
    %v1903 = vpack.c.b16 %v1585, %v1582
    %v1904 = vpack.c.b16 %v1586, %v1583
    %v1905 = vpack.c.b16 %v1587, %v1584
    %v1906 = vpack.c.b16 %v1591, %v1588
    %v1907 = vpack.c.b16 %v1592, %v1589
    %v1908 = vpack.c.b16 %v1593, %v1590
    %v1909 = vpack.c.b16 %v1597, %v1594
    %v1910 = vpack.c.b16 %v1598, %v1595
    %v1911 = vpack.c.b16 %v1599, %v1596
    %v1912 = vpack.c.b16 %v1603, %v1600
    %v1913 = vpack.c.b16 %v1604, %v1601
    %v1914 = vpack.c.b16 %v1605, %v1602
    %v1915 = vpack.c.b16 %v1609, %v1606
    %v1916 = vpack.c.b16 %v1610, %v1607
    %v1917 = vpack.c.b16 %v1611, %v1608
    %v1918 = vpack.c.b16 %v1615, %v1612
    %v1919 = vpack.c.b16 %v1616, %v1613
    %v1920 = vpack.c.b16 %v1617, %v1614
    %v1921 = vpack.c.b16 %v1621, %v1618
    %v1922 = vpack.c.b16 %v1622, %v1619
    %v1923 = vpack.c.b16 %v1623, %v1620
    %v1924 = vpack.c.b16 %v1627, %v1624
    %v1925 = vpack.c.b16 %v1628, %v1625
    %v1926 = vpack.c.b16 %v1629, %v1626
    %v1927 = vpack.c.b16 %v1633, %v1630
    %v1928 = vpack.c.b16 %v1634, %v1631
    %v1929 = vpack.c.b16 %v1635, %v1632
    %v1930 = vpack.c.b16 %v1639, %v1636
    %v1931 = vpack.c.b16 %v1640, %v1637
    %v1932 = vpack.c.b16 %v1641, %v1638
    %v1933 = vpack.c.b16 %v1645, %v1642
    %v1934 = vpack.c.b16 %v1646, %v1643
    %v1935 = vpack.c.b16 %v1647, %v1644
    %v1936 = vpack.c.b16 %v1651, %v1648
    %v1937 = vpack.c.b16 %v1652, %v1649
    %v1938 = vpack.c.b16 %v1653, %v1650
    %v1939 = vpack.c.b16 %v1657, %v1654
    %v1940 = vpack.c.b16 %v1658, %v1655
    %v1941 = vpack.c.b16 %v1659, %v1656
    %v1942 = vpack.c.b16 %v1663, %v1660
    %v1943 = vpack.c.b16 %v1664, %v1661
    %v1944 = vpack.c.b16 %v1665, %v1662
    %v1945 = vpack.c.b16 %v1669, %v1666
    %v1946 = vpack.c.b16 %v1670, %v1667
    %v1947 = vpack.c.b16 %v1671, %v1668
    %v1948 = vpack.c.b16 %v1675, %v1672
    %v1949 = vpack.c.b16 %v1676, %v1673
    %v1950 = vpack.c.b16 %v1677, %v1674
    %v1951 = vpack.c.b16 %v1681, %v1678
    %v1952 = vpack.c.b16 %v1682, %v1679
    %v1953 = vpack.c.b16 %v1683, %v1680
    %v1954 = vpack.c.b16 %v1687, %v1684
    %v1955 = vpack.c.b16 %v1688, %v1685
    %v1956 = vpack.c.b16 %v1689, %v1686
    %v1957 = vpack.c.b16 %v1693, %v1690
    %v1958 = vpack.c.b16 %v1694, %v1691
    %v1959 = vpack.c.b16 %v1695, %v1692
    %v1960 = vpack.c.b16 %v1699, %v1696
    %v1961 = vpack.c.b16 %v1700, %v1697
    %v1962 = vpack.c.b16 %v1701, %v1698
    %v1963 = vpack.c.b16 %v1705, %v1702
    %v1964 = vpack.c.b16 %v1706, %v1703
    %v1965 = vpack.c.b16 %v1707, %v1704
    %v1966 = vpack.c.b16 %v1711, %v1708
    %v1967 = vpack.c.b16 %v1712, %v1709
    %v1968 = vpack.c.b16 %v1713, %v1710
    %v1969 = vpack.c.b16 %v1717, %v1714
    %v1970 = vpack.c.b16 %v1718, %v1715
    %v1971 = vpack.c.b16 %v1719, %v1716
    %v1972 = vpack.c.b16 %v1723, %v1720
    %v1973 = vpack.c.b16 %v1724, %v1721
    %v1974 = vpack.c.b16 %v1725, %v1722
    %v1975 = vpack.c.b16 %v1729, %v1726
    %v1976 = vpack.c.b16 %v1730, %v1727
    %v1977 = vpack.c.b16 %v1731, %v1728
    %v1978 = vpack.c.b16 %v1735, %v1732
    %v1979 = vpack.c.b16 %v1736, %v1733
    %v1980 = vpack.c.b16 %v1737, %v1734
    %v1981 = vpack.c.b16 %v1741, %v1738
    %v1982 = vpack.c.b16 %v1742, %v1739
    %v1983 = vpack.c.b16 %v1743, %v1740
    %v1984 = vpack.c.b16 %v1747, %v1744
    %v1985 = vpack.c.b16 %v1748, %v1745
    %v1986 = vpack.c.b16 %v1749, %v1746
    %v1987 = vpack.c.b16 %v1753, %v1750
    %v1988 = vpack.c.b16 %v1754, %v1751
    %v1989 = vpack.c.b16 %v1755, %v1752
    %v1990 = vpack.c.b16 %v1759, %v1756
    %v1991 = vpack.c.b16 %v1760, %v1757
    %v1992 = vpack.c.b16 %v1761, %v1758
    %v1993 = vpack.c.b16 %v1765, %v1762
    %v1994 = vpack.c.b16 %v1766, %v1763
    %v1995 = vpack.c.b16 %v1767, %v1764
    %v1996 = vpack.c.b16 %v1771, %v1768
    %v1997 = vpack.c.b16 %v1772, %v1769
    %v1998 = vpack.c.b16 %v1773, %v1770
    %v1999 = vpack.c.b16 %v1777, %v1774
    %v2000 = vpack.c.b16 %v1778, %v1775
    %v2001 = vpack.c.b16 %v1779, %v1776
    %v2002 = vpack.c.b16 %v1783, %v1780
    %v2003 = vpack.c.b16 %v1784, %v1781
    %v2004 = vpack.c.b16 %v1785, %v1782
    %v2005 = vpack.c.b16 %v1789, %v1786
    %v2006 = vpack.c.b16 %v1790, %v1787
    %v2007 = vpack.c.b16 %v1791, %v1788
    %2224 = vmatpush.bf16.msra.mxu0 %v1813
    %2225 = vmatpush.bf16.msra.mxu0 %v1810
    %2226 = vmatpush.bf16.msra.mxu0 %v1807
    %2227 = vmatpush.bf16.msra.mxu0 %v1804
    %2228 = vmatpush.bf16.msra.mxu0 %v1801
    %2229 = vmatpush.bf16.msra.mxu0 %v1798
    %2230 = vmatpush.bf16.msra.mxu0 %v1795
    %2231 = vmatpush.bf16.msra.mxu0 %v1792
    %2232 = vmatmul.bf16.gmra.mxu0 %v763
    %v2233 = vpop.f32.mrf.mxu0
    %v2234 = vadd.f32 %v1066, %v2233
    %v2235 = vpop.f32.mrf.mxu0
    %2236 = vdwg.mxu0
    %2237 = vmatpush.bf16.msra.mxu0 %v1837
    %2238 = vmatpush.bf16.msra.mxu0 %v1834
    %2239 = vmatpush.bf16.msra.mxu0 %v1831
    %2240 = vmatpush.bf16.msra.mxu0 %v1828
    %2241 = vmatpush.bf16.msra.mxu0 %v1825
    %2242 = vmatpush.bf16.msra.mxu0 %v1822
    %2243 = vmatpush.bf16.msra.mxu0 %v1819
    %2244 = vmatpush.bf16.msra.mxu0 %v1816
    %2245 = vmatmul.bf16.gmra.mxu0 %v764
    %v2246 = vpop.f32.mrf.mxu0
    %v2247 = vadd.f32 %v2234, %v2246
    %v2248 = vpop.f32.mrf.mxu0
    %2249 = vdwg.mxu0
    %2250 = vmatpush.bf16.msra.mxu0 %v1861
    %2251 = vmatpush.bf16.msra.mxu0 %v1858
    %2252 = vmatpush.bf16.msra.mxu0 %v1855
    %2253 = vmatpush.bf16.msra.mxu0 %v1852
    %2254 = vmatpush.bf16.msra.mxu0 %v1849
    %2255 = vmatpush.bf16.msra.mxu0 %v1846
    %2256 = vmatpush.bf16.msra.mxu0 %v1843
    %2257 = vmatpush.bf16.msra.mxu0 %v1840
    %2258 = vmatmul.bf16.gmra.mxu0 %v765
    %v2259 = vpop.f32.mrf.mxu0
    %v2260 = vadd.f32 %v2247, %v2259
    %v2261 = vpop.f32.mrf.mxu0
    %2262 = vdwg.mxu0
    %2263 = vmatpush.bf16.msra.mxu0 %v1885
    %2264 = vmatpush.bf16.msra.mxu0 %v1882
    %2265 = vmatpush.bf16.msra.mxu0 %v1879
    %2266 = vmatpush.bf16.msra.mxu0 %v1876
    %2267 = vmatpush.bf16.msra.mxu0 %v1873
    %2268 = vmatpush.bf16.msra.mxu0 %v1870
    %2269 = vmatpush.bf16.msra.mxu0 %v1867
    %2270 = vmatpush.bf16.msra.mxu0 %v1864
    %2271 = vmatmul.bf16.gmra.mxu0 %v766
    %v2272 = vpop.f32.mrf.mxu0
    %v2273 = vadd.f32 %v2260, %v2272
    %v2274 = vpop.f32.mrf.mxu0
    %2275 = vdwg.mxu0
    %2276 = vmatpush.bf16.msra.mxu0 %v1909
    %2277 = vmatpush.bf16.msra.mxu0 %v1906
    %2278 = vmatpush.bf16.msra.mxu0 %v1903
    %2279 = vmatpush.bf16.msra.mxu0 %v1900
    %2280 = vmatpush.bf16.msra.mxu0 %v1897
    %2281 = vmatpush.bf16.msra.mxu0 %v1894
    %2282 = vmatpush.bf16.msra.mxu0 %v1891
    %2283 = vmatpush.bf16.msra.mxu0 %v1888
    %2284 = vmatmul.bf16.gmra.mxu0 %v767
    %v2285 = vpop.f32.mrf.mxu0
    %v2286 = vadd.f32 %v2273, %v2285
    %v2287 = vpop.f32.mrf.mxu0
    %2288 = vdwg.mxu0
    %2289 = vmatpush.bf16.msra.mxu0 %v1933
    %2290 = vmatpush.bf16.msra.mxu0 %v1930
    %2291 = vmatpush.bf16.msra.mxu0 %v1927
    %2292 = vmatpush.bf16.msra.mxu0 %v1924
    %2293 = vmatpush.bf16.msra.mxu0 %v1921
    %2294 = vmatpush.bf16.msra.mxu0 %v1918
    %2295 = vmatpush.bf16.msra.mxu0 %v1915
    %2296 = vmatpush.bf16.msra.mxu0 %v1912
    %2297 = vmatmul.bf16.gmra.mxu0 %v768
    %v2298 = vpop.f32.mrf.mxu0
    %v2299 = vadd.f32 %v2286, %v2298
    %v2300 = vpop.f32.mrf.mxu0
    %2301 = vdwg.mxu0
    %2302 = vmatpush.bf16.msra.mxu0 %v1957
    %2303 = vmatpush.bf16.msra.mxu0 %v1954
    %2304 = vmatpush.bf16.msra.mxu0 %v1951
    %2305 = vmatpush.bf16.msra.mxu0 %v1948
    %2306 = vmatpush.bf16.msra.mxu0 %v1945
    %2307 = vmatpush.bf16.msra.mxu0 %v1942
    %2308 = vmatpush.bf16.msra.mxu0 %v1939
    %2309 = vmatpush.bf16.msra.mxu0 %v1936
    %2310 = vmatmul.bf16.gmra.mxu0 %v769
    %v2311 = vpop.f32.mrf.mxu0
    %v2312 = vadd.f32 %v2299, %v2311
    %v2313 = vpop.f32.mrf.mxu0
    %2314 = vdwg.mxu0
    %2315 = vmatpush.bf16.msra.mxu0 %v1981
    %2316 = vmatpush.bf16.msra.mxu0 %v1978
    %2317 = vmatpush.bf16.msra.mxu0 %v1975
    %2318 = vmatpush.bf16.msra.mxu0 %v1972
    %2319 = vmatpush.bf16.msra.mxu0 %v1969
    %2320 = vmatpush.bf16.msra.mxu0 %v1966
    %2321 = vmatpush.bf16.msra.mxu0 %v1963
    %2322 = vmatpush.bf16.msra.mxu0 %v1960
    %2323 = vmatmul.bf16.gmra.mxu0 %v770
    %v2324 = vpop.f32.mrf.mxu0
    %v2325 = vadd.f32 %v2312, %v2324
    %v2326 = vpop.f32.mrf.mxu0
    %2327 = vdwg.mxu0
    %2328 = vmatpush.bf16.msra.mxu0 %v2005
    %2329 = vmatpush.bf16.msra.mxu0 %v2002
    %2330 = vmatpush.bf16.msra.mxu0 %v1999
    %2331 = vmatpush.bf16.msra.mxu0 %v1996
    %2332 = vmatpush.bf16.msra.mxu0 %v1993
    %2333 = vmatpush.bf16.msra.mxu0 %v1990
    %2334 = vmatpush.bf16.msra.mxu0 %v1987
    %2335 = vmatpush.bf16.msra.mxu0 %v1984
    %2336 = vmatmul.bf16.gmra.mxu0 %v771
    %v2337 = vpop.f32.mrf.mxu0
    %v2338 = vadd.f32 %v2325, %v2337
    %v2339 = vpop.f32.mrf.mxu0
    %2340 = vdwg.mxu0
    %2341 = vmatpush.bf16.msra.mxu0 %v1814
    %2342 = vmatpush.bf16.msra.mxu0 %v1811
    %2343 = vmatpush.bf16.msra.mxu0 %v1808
    %2344 = vmatpush.bf16.msra.mxu0 %v1805
    %2345 = vmatpush.bf16.msra.mxu0 %v1802
    %2346 = vmatpush.bf16.msra.mxu0 %v1799
    %2347 = vmatpush.bf16.msra.mxu0 %v1796
    %2348 = vmatpush.bf16.msra.mxu0 %v1793
    %2349 = vmatmul.bf16.gmra.mxu0 %v763
    %v2350 = vpop.f32.mrf.mxu0
    %v2351 = vadd.f32 %v1067, %v2350
    %v2352 = vpop.f32.mrf.mxu0
    %2353 = vdwg.mxu0
    %2354 = vmatpush.bf16.msra.mxu0 %v1838
    %2355 = vmatpush.bf16.msra.mxu0 %v1835
    %2356 = vmatpush.bf16.msra.mxu0 %v1832
    %2357 = vmatpush.bf16.msra.mxu0 %v1829
    %2358 = vmatpush.bf16.msra.mxu0 %v1826
    %2359 = vmatpush.bf16.msra.mxu0 %v1823
    %2360 = vmatpush.bf16.msra.mxu0 %v1820
    %2361 = vmatpush.bf16.msra.mxu0 %v1817
    %2362 = vmatmul.bf16.gmra.mxu0 %v764
    %v2363 = vpop.f32.mrf.mxu0
    %v2364 = vadd.f32 %v2351, %v2363
    %v2365 = vpop.f32.mrf.mxu0
    %2366 = vdwg.mxu0
    %2367 = vmatpush.bf16.msra.mxu0 %v1862
    %2368 = vmatpush.bf16.msra.mxu0 %v1859
    %2369 = vmatpush.bf16.msra.mxu0 %v1856
    %2370 = vmatpush.bf16.msra.mxu0 %v1853
    %2371 = vmatpush.bf16.msra.mxu0 %v1850
    %2372 = vmatpush.bf16.msra.mxu0 %v1847
    %2373 = vmatpush.bf16.msra.mxu0 %v1844
    %2374 = vmatpush.bf16.msra.mxu0 %v1841
    %2375 = vmatmul.bf16.gmra.mxu0 %v765
    %v2376 = vpop.f32.mrf.mxu0
    %v2377 = vadd.f32 %v2364, %v2376
    %v2378 = vpop.f32.mrf.mxu0
    %2379 = vdwg.mxu0
    %2380 = vmatpush.bf16.msra.mxu0 %v1886
    %2381 = vmatpush.bf16.msra.mxu0 %v1883
    %2382 = vmatpush.bf16.msra.mxu0 %v1880
    %2383 = vmatpush.bf16.msra.mxu0 %v1877
    %2384 = vmatpush.bf16.msra.mxu0 %v1874
    %2385 = vmatpush.bf16.msra.mxu0 %v1871
    %2386 = vmatpush.bf16.msra.mxu0 %v1868
    %2387 = vmatpush.bf16.msra.mxu0 %v1865
    %2388 = vmatmul.bf16.gmra.mxu0 %v766
    %v2389 = vpop.f32.mrf.mxu0
    %v2390 = vadd.f32 %v2377, %v2389
    %v2391 = vpop.f32.mrf.mxu0
    %2392 = vdwg.mxu0
    %2393 = vmatpush.bf16.msra.mxu0 %v1910
    %2394 = vmatpush.bf16.msra.mxu0 %v1907
    %2395 = vmatpush.bf16.msra.mxu0 %v1904
    %2396 = vmatpush.bf16.msra.mxu0 %v1901
    %2397 = vmatpush.bf16.msra.mxu0 %v1898
    %2398 = vmatpush.bf16.msra.mxu0 %v1895
    %2399 = vmatpush.bf16.msra.mxu0 %v1892
    %2400 = vmatpush.bf16.msra.mxu0 %v1889
    %2401 = vmatmul.bf16.gmra.mxu0 %v767
    %v2402 = vpop.f32.mrf.mxu0
    %v2403 = vadd.f32 %v2390, %v2402
    %v2404 = vpop.f32.mrf.mxu0
    %2405 = vdwg.mxu0
    %2406 = vmatpush.bf16.msra.mxu0 %v1934
    %2407 = vmatpush.bf16.msra.mxu0 %v1931
    %2408 = vmatpush.bf16.msra.mxu0 %v1928
    %2409 = vmatpush.bf16.msra.mxu0 %v1925
    %2410 = vmatpush.bf16.msra.mxu0 %v1922
    %2411 = vmatpush.bf16.msra.mxu0 %v1919
    %2412 = vmatpush.bf16.msra.mxu0 %v1916
    %2413 = vmatpush.bf16.msra.mxu0 %v1913
    %2414 = vmatmul.bf16.gmra.mxu0 %v768
    %v2415 = vpop.f32.mrf.mxu0
    %v2416 = vadd.f32 %v2403, %v2415
    %v2417 = vpop.f32.mrf.mxu0
    %2418 = vdwg.mxu0
    %2419 = vmatpush.bf16.msra.mxu0 %v1958
    %2420 = vmatpush.bf16.msra.mxu0 %v1955
    %2421 = vmatpush.bf16.msra.mxu0 %v1952
    %2422 = vmatpush.bf16.msra.mxu0 %v1949
    %2423 = vmatpush.bf16.msra.mxu0 %v1946
    %2424 = vmatpush.bf16.msra.mxu0 %v1943
    %2425 = vmatpush.bf16.msra.mxu0 %v1940
    %2426 = vmatpush.bf16.msra.mxu0 %v1937
    %2427 = vmatmul.bf16.gmra.mxu0 %v769
    %v2428 = vpop.f32.mrf.mxu0
    %v2429 = vadd.f32 %v2416, %v2428
    %v2430 = vpop.f32.mrf.mxu0
    %2431 = vdwg.mxu0
    %2432 = vmatpush.bf16.msra.mxu0 %v1982
    %2433 = vmatpush.bf16.msra.mxu0 %v1979
    %2434 = vmatpush.bf16.msra.mxu0 %v1976
    %2435 = vmatpush.bf16.msra.mxu0 %v1973
    %2436 = vmatpush.bf16.msra.mxu0 %v1970
    %2437 = vmatpush.bf16.msra.mxu0 %v1967
    %2438 = vmatpush.bf16.msra.mxu0 %v1964
    %2439 = vmatpush.bf16.msra.mxu0 %v1961
    %2440 = vmatmul.bf16.gmra.mxu0 %v770
    %v2441 = vpop.f32.mrf.mxu0
    %v2442 = vadd.f32 %v2429, %v2441
    %v2443 = vpop.f32.mrf.mxu0
    %2444 = vdwg.mxu0
    %2445 = vmatpush.bf16.msra.mxu0 %v2006
    %2446 = vmatpush.bf16.msra.mxu0 %v2003
    %2447 = vmatpush.bf16.msra.mxu0 %v2000
    %2448 = vmatpush.bf16.msra.mxu0 %v1997
    %2449 = vmatpush.bf16.msra.mxu0 %v1994
    %2450 = vmatpush.bf16.msra.mxu0 %v1991
    %2451 = vmatpush.bf16.msra.mxu0 %v1988
    %2452 = vmatpush.bf16.msra.mxu0 %v1985
    %2453 = vmatmul.bf16.gmra.mxu0 %v771
    %v2454 = vpop.f32.mrf.mxu0
    %v2455 = vadd.f32 %v2442, %v2454
    %v2456 = vpop.f32.mrf.mxu0
    %2457 = vdwg.mxu0
    %2458 = vmatpush.bf16.msra.mxu0 %v1815
    %2459 = vmatpush.bf16.msra.mxu0 %v1812
    %2460 = vmatpush.bf16.msra.mxu0 %v1809
    %2461 = vmatpush.bf16.msra.mxu0 %v1806
    %2462 = vmatpush.bf16.msra.mxu0 %v1803
    %2463 = vmatpush.bf16.msra.mxu0 %v1800
    %2464 = vmatpush.bf16.msra.mxu0 %v1797
    %2465 = vmatpush.bf16.msra.mxu0 %v1794
    %2466 = vmatmul.bf16.gmra.mxu0 %v763
    %v2467 = vpop.f32.mrf.mxu0
    %v2468 = vadd.f32 %v1068, %v2467
    %v2469 = vpop.f32.mrf.mxu0
    %2470 = vdwg.mxu0
    %2471 = vmatpush.bf16.msra.mxu0 %v1839
    %2472 = vmatpush.bf16.msra.mxu0 %v1836
    %2473 = vmatpush.bf16.msra.mxu0 %v1833
    %2474 = vmatpush.bf16.msra.mxu0 %v1830
    %2475 = vmatpush.bf16.msra.mxu0 %v1827
    %2476 = vmatpush.bf16.msra.mxu0 %v1824
    %2477 = vmatpush.bf16.msra.mxu0 %v1821
    %2478 = vmatpush.bf16.msra.mxu0 %v1818
    %2479 = vmatmul.bf16.gmra.mxu0 %v764
    %v2480 = vpop.f32.mrf.mxu0
    %v2481 = vadd.f32 %v2468, %v2480
    %v2482 = vpop.f32.mrf.mxu0
    %2483 = vdwg.mxu0
    %2484 = vmatpush.bf16.msra.mxu0 %v1863
    %2485 = vmatpush.bf16.msra.mxu0 %v1860
    %2486 = vmatpush.bf16.msra.mxu0 %v1857
    %2487 = vmatpush.bf16.msra.mxu0 %v1854
    %2488 = vmatpush.bf16.msra.mxu0 %v1851
    %2489 = vmatpush.bf16.msra.mxu0 %v1848
    %2490 = vmatpush.bf16.msra.mxu0 %v1845
    %2491 = vmatpush.bf16.msra.mxu0 %v1842
    %2492 = vmatmul.bf16.gmra.mxu0 %v765
    %v2493 = vpop.f32.mrf.mxu0
    %v2494 = vadd.f32 %v2481, %v2493
    %v2495 = vpop.f32.mrf.mxu0
    %2496 = vdwg.mxu0
    %2497 = vmatpush.bf16.msra.mxu0 %v1887
    %2498 = vmatpush.bf16.msra.mxu0 %v1884
    %2499 = vmatpush.bf16.msra.mxu0 %v1881
    %2500 = vmatpush.bf16.msra.mxu0 %v1878
    %2501 = vmatpush.bf16.msra.mxu0 %v1875
    %2502 = vmatpush.bf16.msra.mxu0 %v1872
    %2503 = vmatpush.bf16.msra.mxu0 %v1869
    %2504 = vmatpush.bf16.msra.mxu0 %v1866
    %2505 = vmatmul.bf16.gmra.mxu0 %v766
    %v2506 = vpop.f32.mrf.mxu0
    %v2507 = vadd.f32 %v2494, %v2506
    %v2508 = vpop.f32.mrf.mxu0
    %2509 = vdwg.mxu0
    %2510 = vmatpush.bf16.msra.mxu0 %v1911
    %2511 = vmatpush.bf16.msra.mxu0 %v1908
    %2512 = vmatpush.bf16.msra.mxu0 %v1905
    %2513 = vmatpush.bf16.msra.mxu0 %v1902
    %2514 = vmatpush.bf16.msra.mxu0 %v1899
    %2515 = vmatpush.bf16.msra.mxu0 %v1896
    %2516 = vmatpush.bf16.msra.mxu0 %v1893
    %2517 = vmatpush.bf16.msra.mxu0 %v1890
    %2518 = vmatmul.bf16.gmra.mxu0 %v767
    %v2519 = vpop.f32.mrf.mxu0
    %v2520 = vadd.f32 %v2507, %v2519
    %v2521 = vpop.f32.mrf.mxu0
    %2522 = vdwg.mxu0
    %2523 = vmatpush.bf16.msra.mxu0 %v1935
    %2524 = vmatpush.bf16.msra.mxu0 %v1932
    %2525 = vmatpush.bf16.msra.mxu0 %v1929
    %2526 = vmatpush.bf16.msra.mxu0 %v1926
    %2527 = vmatpush.bf16.msra.mxu0 %v1923
    %2528 = vmatpush.bf16.msra.mxu0 %v1920
    %2529 = vmatpush.bf16.msra.mxu0 %v1917
    %2530 = vmatpush.bf16.msra.mxu0 %v1914
    %2531 = vmatmul.bf16.gmra.mxu0 %v768
    %v2532 = vpop.f32.mrf.mxu0
    %v2533 = vadd.f32 %v2520, %v2532
    %v2534 = vpop.f32.mrf.mxu0
    %2535 = vdwg.mxu0
    %2536 = vmatpush.bf16.msra.mxu0 %v1959
    %2537 = vmatpush.bf16.msra.mxu0 %v1956
    %2538 = vmatpush.bf16.msra.mxu0 %v1953
    %2539 = vmatpush.bf16.msra.mxu0 %v1950
    %2540 = vmatpush.bf16.msra.mxu0 %v1947
    %2541 = vmatpush.bf16.msra.mxu0 %v1944
    %2542 = vmatpush.bf16.msra.mxu0 %v1941
    %2543 = vmatpush.bf16.msra.mxu0 %v1938
    %2544 = vmatmul.bf16.gmra.mxu0 %v769
    %v2545 = vpop.f32.mrf.mxu0
    %v2546 = vadd.f32 %v2533, %v2545
    %v2547 = vpop.f32.mrf.mxu0
    %2548 = vdwg.mxu0
    %2549 = vmatpush.bf16.msra.mxu0 %v1983
    %2550 = vmatpush.bf16.msra.mxu0 %v1980
    %2551 = vmatpush.bf16.msra.mxu0 %v1977
    %2552 = vmatpush.bf16.msra.mxu0 %v1974
    %2553 = vmatpush.bf16.msra.mxu0 %v1971
    %2554 = vmatpush.bf16.msra.mxu0 %v1968
    %2555 = vmatpush.bf16.msra.mxu0 %v1965
    %2556 = vmatpush.bf16.msra.mxu0 %v1962
    %2557 = vmatmul.bf16.gmra.mxu0 %v770
    %v2558 = vpop.f32.mrf.mxu0
    %v2559 = vadd.f32 %v2546, %v2558
    %v2560 = vpop.f32.mrf.mxu0
    %2561 = vdwg.mxu0
    %2562 = vmatpush.bf16.msra.mxu0 %v2007
    %2563 = vmatpush.bf16.msra.mxu0 %v2004
    %2564 = vmatpush.bf16.msra.mxu0 %v2001
    %2565 = vmatpush.bf16.msra.mxu0 %v1998
    %2566 = vmatpush.bf16.msra.mxu0 %v1995
    %2567 = vmatpush.bf16.msra.mxu0 %v1992
    %2568 = vmatpush.bf16.msra.mxu0 %v1989
    %2569 = vmatpush.bf16.msra.mxu0 %v1986
    %2570 = vmatmul.bf16.gmra.mxu0 %v771
    %v2571 = vpop.f32.mrf.mxu0
    %v2572 = vadd.f32 %v2559, %v2571
    %v2573 = vpop.f32.mrf.mxu0
    %2574 = vdwg.mxu0
    %v2575 = vxor.u32 %v2338, 2147483648
    %v2576 = vxor.u32 %v2455, 2147483648
    %v2577 = vxor.u32 %v2572, 2147483648
    %v2578 = vmul.f32 %v2575, 1.442695
    %v2579 = vpow.pop %v2578
    %v2580 = vmul.f32 %v2576, 1.442695
    %v2581 = vpow.pop %v2580
    %v2582 = vmul.f32 %v2577, 1.442695
    %v2583 = vpow.pop %v2582
    %v2584 = vadd.f32 %v2579, 1.0
    %v2585 = vadd.f32 %v2581, 1.0
    %v2586 = vadd.f32 %v2583, 1.0
    %v2587 = vrcp.pop %v2584
    %v2588 = vmul.f32 %v2584, %v2587
    %v2589 = vsub.f32 1.0, %v2588
    %v2590 = vmul.f32 %v2587, %v2589
    %v2591 = vadd.f32 %v2587, %v2590
    %vm2592 = vweird.f32 %v2584
    %vm2593 = vweird.f32 %v2587
    %vm2594 = vmor %vm2592, %vm2593
    %v2595 = vsel %vm2594, %v2587, %v2591
    %v2596 = vand.u32 2147483647, %v2584
    %vm2597 = vcmp.eq.f32.partialorder %v2596, 8.507059e+37
    %v2598 = vand.u32 %v2584, 2147483648
    %v2599 = vor.u32 1.1754944e-38, %v2598
    %v2600 = vsel %vm2597, %v2599, %v2595
    %v2601 = vmul.f32 1.0, %v2600
    %v2602 = vrcp.pop %v2585
    %v2603 = vmul.f32 %v2585, %v2602
    %v2604 = vsub.f32 1.0, %v2603
    %v2605 = vmul.f32 %v2602, %v2604
    %v2606 = vadd.f32 %v2602, %v2605
    %vm2607 = vweird.f32 %v2585
    %vm2608 = vweird.f32 %v2602
    %vm2609 = vmor %vm2607, %vm2608
    %v2610 = vsel %vm2609, %v2602, %v2606
    %v2611 = vand.u32 2147483647, %v2585
    %vm2612 = vcmp.eq.f32.partialorder %v2611, 8.507059e+37
    %v2613 = vand.u32 %v2585, 2147483648
    %v2614 = vor.u32 1.1754944e-38, %v2613
    %v2615 = vsel %vm2612, %v2614, %v2610
    %v2616 = vmul.f32 1.0, %v2615
    %v2617 = vrcp.pop %v2586
    %v2618 = vmul.f32 %v2586, %v2617
    %v2619 = vsub.f32 1.0, %v2618
    %v2620 = vmul.f32 %v2617, %v2619
    %v2621 = vadd.f32 %v2617, %v2620
    %vm2622 = vweird.f32 %v2586
    %vm2623 = vweird.f32 %v2617
    %vm2624 = vmor %vm2622, %vm2623
    %v2625 = vsel %vm2624, %v2617, %v2621
    %v2626 = vand.u32 2147483647, %v2586
    %vm2627 = vcmp.eq.f32.partialorder %v2626, 8.507059e+37
    %v2628 = vand.u32 %v2586, 2147483648
    %v2629 = vor.u32 1.1754944e-38, %v2628
    %v2630 = vsel %vm2627, %v2629, %v2625
    %v2631 = vmul.f32 1.0, %v2630
    %v2632 = vsel %vm139, %v2601, 0.0
    %v2633 = vrot.slane %v2632, 4
    %v2634 = vadd.f32 %v2632, %v2633
    %v2635 = vrot.slane %v2634, 2
    %v2636 = vadd.f32 %v2634, %v2635
    %v2637 = vrot.slane %v2636, 1
    %v2638 = vadd.f32 %v2636, %v2637
    %v2639 = vsel %vm139, %v2616, 0.0
    %v2640 = vrot.slane %v2639, 4
    %v2641 = vadd.f32 %v2639, %v2640
    %v2642 = vrot.slane %v2641, 2
    %v2643 = vadd.f32 %v2641, %v2642
    %v2644 = vrot.slane %v2643, 1
    %v2645 = vadd.f32 %v2643, %v2644
    %v2646 = vsel %vm139, %v2631, 0.0
    %v2647 = vrot.slane %v2646, 4
    %v2648 = vadd.f32 %v2646, %v2647
    %v2649 = vrot.slane %v2648, 2
    %v2650 = vadd.f32 %v2648, %v2649
    %v2651 = vrot.slane %v2650, 1
    %v2652 = vadd.f32 %v2650, %v2651
    %v2653 = vrcp.pop 2.0
    %v2654 = vmul.f32 2.0, %v2653
    %v2655 = vsub.f32 1.0, %v2654
    %v2656 = vmul.f32 %v2653, %v2655
    %v2657 = vadd.f32 %v2653, %v2656
    %vm2658 = vweird.f32 %v2653
    %v2659 = vsel %vm2658, %v2653, %v2657
    %v2660 = vmul.f32 %v2638, %v2659
    %v2661 = vmul.f32 %v2645, %v2659
    %v2662 = vmul.f32 %v2652, %v2659
    %v2663 = vmul.f32 %v2601, %v2601
    %v2664 = vmul.f32 %v2616, %v2616
    %v2665 = vmul.f32 %v2631, %v2631
    %v2666 = vsel %vm139, %v2663, 0.0
    %v2667 = vrot.slane %v2666, 4
    %v2668 = vadd.f32 %v2666, %v2667
    %v2669 = vrot.slane %v2668, 2
    %v2670 = vadd.f32 %v2668, %v2669
    %v2671 = vrot.slane %v2670, 1
    %v2672 = vadd.f32 %v2670, %v2671
    %v2673 = vsel %vm139, %v2664, 0.0
    %v2674 = vrot.slane %v2673, 4
    %v2675 = vadd.f32 %v2673, %v2674
    %v2676 = vrot.slane %v2675, 2
    %v2677 = vadd.f32 %v2675, %v2676
    %v2678 = vrot.slane %v2677, 1
    %v2679 = vadd.f32 %v2677, %v2678
    %v2680 = vsel %vm139, %v2665, 0.0
    %v2681 = vrot.slane %v2680, 4
    %v2682 = vadd.f32 %v2680, %v2681
    %v2683 = vrot.slane %v2682, 2
    %v2684 = vadd.f32 %v2682, %v2683
    %v2685 = vrot.slane %v2684, 1
    %v2686 = vadd.f32 %v2684, %v2685
    %v2687 = vmul.f32 %v2672, %v2659
    %v2688 = vmul.f32 %v2679, %v2659
    %v2689 = vmul.f32 %v2686, %v2659
    %v2690 = vmul.f32 %v2660, %v2660
    %v2691 = vmul.f32 %v2661, %v2661
    %v2692 = vmul.f32 %v2662, %v2662
    %v2693 = vsub.f32 %v2687, %v2690
    %v2694 = vsub.f32 %v2688, %v2691
    %v2695 = vsub.f32 %v2689, %v2692
    %v2696 = vmax.f32 %v2693, 0.0
    %v2697 = vmax.f32 %v2694, 0.0
    %v2698 = vmax.f32 %v2695, 0.0
    %v2699 = vsub.f32 %v2601, %v2660
    %v2700 = vsub.f32 %v2616, %v2661
    %v2701 = vsub.f32 %v2631, %v2662
    %v2702 = vadd.f32 %v2696, 1e-05
    %v2703 = vadd.f32 %v2697, 1e-05
    %v2704 = vadd.f32 %v2698, 1e-05
    %v2705 = vrsqrt.pop %v2702
    %v2706 = vmul.f32 %v2705, %v2702
    %v2707 = vmul.f32 %v2706, %v2705
    %v2708 = vmul.f32 0.5, %v2707
    %v2709 = vsub.f32 1.5, %v2708
    %v2710 = vmul.f32 %v2705, %v2709
    %vm2711 = vweird.f32 %v2702
    %vm2712 = vweird.f32 %v2705
    %vm2713 = vmor %vm2711, %vm2712
    %v2714 = vsel %vm2713, %v2705, %v2710
    %v2715 = vrsqrt.pop %v2703
    %v2716 = vmul.f32 %v2715, %v2703
    %v2717 = vmul.f32 %v2716, %v2715
    %v2718 = vmul.f32 0.5, %v2717
    %v2719 = vsub.f32 1.5, %v2718
    %v2720 = vmul.f32 %v2715, %v2719
    %vm2721 = vweird.f32 %v2703
    %vm2722 = vweird.f32 %v2715
    %vm2723 = vmor %vm2721, %vm2722
    %v2724 = vsel %vm2723, %v2715, %v2720
    %v2725 = vrsqrt.pop %v2704
    %v2726 = vmul.f32 %v2725, %v2704
    %v2727 = vmul.f32 %v2726, %v2725
    %v2728 = vmul.f32 0.5, %v2727
    %v2729 = vsub.f32 1.5, %v2728
    %v2730 = vmul.f32 %v2725, %v2729
    %vm2731 = vweird.f32 %v2704
    %vm2732 = vweird.f32 %v2725
    %vm2733 = vmor %vm2731, %vm2732
    %v2734 = vsel %vm2733, %v2725, %v2730
    %v2735 = vmul.f32 %v2699, %v2714
    %v2736 = vmul.f32 %v2700, %v2724
    %v2737 = vmul.f32 %v2701, %v2734
    %s2738 = smul.u32 4, 48
    %s2739 = smul.u32 %s2738, 1
    %s2740 = sshll.u32 %s2739, 4
    %2741 = dma.done [#allocation5], %s2740
    %v2742 = vpack.c.bf16 %v2735, %v2735
    %v2743 = vpack.c.bf16 %v2736, %v2736
    %v2744 = vpack.c.bf16 %v2737, %v2737
    %v2745 = vld [vmem:[#allocation4] sm:$0xf]
    %v2746 = vld [vmem:[#allocation4 + $0x4] sm:$0xf]
    %v2747 = vld [vmem:[#allocation4 + $0x8] sm:$0xf]
    %v2748 = vld [vmem:[#allocation4 + $0xc] sm:$0xf]
    %v2749 = vld [vmem:[#allocation4 + $0x10] sm:$0xf]
    %v2750 = vld [vmem:[#allocation4 + $0x14] sm:$0xf]
    %v2751 = vld [vmem:[#allocation4 + $0x18] sm:$0xf]
    %v2752 = vld [vmem:[#allocation4 + $0x1c] sm:$0xf]
    %v2753 = vld [vmem:[#allocation4 + $0x20] sm:$0xf]
    %v2754 = vld [vmem:[#allocation4 + $0x24] sm:$0xf]
    %v2755 = vld [vmem:[#allocation4 + $0x28] sm:$0xf]
    %v2756 = vld [vmem:[#allocation4 + $0x2c] sm:$0xf]
    %v2757 = vld [vmem:[#allocation4 + $0x30] sm:$0xf]
    %v2758 = vld [vmem:[#allocation4 + $0x34] sm:$0xf]
    %v2759 = vld [vmem:[#allocation4 + $0x38] sm:$0xf]
    %v2760 = vld [vmem:[#allocation4 + $0x3c] sm:$0xf]
    %v2761 = vld [vmem:[#allocation4 + $0x40] sm:$0xf]
    %v2762 = vld [vmem:[#allocation4 + $0x44] sm:$0xf]
    %v2763 = vld [vmem:[#allocation4 + $0x48] sm:$0xf]
    %v2764 = vld [vmem:[#allocation4 + $0x4c] sm:$0xf]
    %v2765 = vld [vmem:[#allocation4 + $0x50] sm:$0xf]
    %v2766 = vld [vmem:[#allocation4 + $0x54] sm:$0xf]
    %v2767 = vld [vmem:[#allocation4 + $0x58] sm:$0xf]
    %v2768 = vld [vmem:[#allocation4 + $0x5c] sm:$0xf]
    %v2769 = vld [vmem:[#allocation4 + $0x60] sm:$0xf]
    %v2770 = vld [vmem:[#allocation4 + $0x64] sm:$0xf]
    %v2771 = vld [vmem:[#allocation4 + $0x68] sm:$0xf]
    %v2772 = vld [vmem:[#allocation4 + $0x6c] sm:$0xf]
    %v2773 = vld [vmem:[#allocation4 + $0x70] sm:$0xf]
    %v2774 = vld [vmem:[#allocation4 + $0x74] sm:$0xf]
    %v2775 = vld [vmem:[#allocation4 + $0x78] sm:$0xf]
    %v2776 = vld [vmem:[#allocation4 + $0x7c] sm:$0xf]
    %v2777 = vld [vmem:[#allocation4 + $0x80] sm:$0xf]
    %v2778 = vld [vmem:[#allocation4 + $0x84] sm:$0xf]
    %v2779 = vld [vmem:[#allocation4 + $0x88] sm:$0xf]
    %v2780 = vld [vmem:[#allocation4 + $0x8c] sm:$0xf]
    %v2781 = vld [vmem:[#allocation4 + $0x90] sm:$0xf]
    %v2782 = vld [vmem:[#allocation4 + $0x94] sm:$0xf]
    %v2783 = vld [vmem:[#allocation4 + $0x98] sm:$0xf]
    %v2784 = vld [vmem:[#allocation4 + $0x9c] sm:$0xf]
    %v2785 = vld [vmem:[#allocation4 + $0xa0] sm:$0xf]
    %v2786 = vld [vmem:[#allocation4 + $0xa4] sm:$0xf]
    %v2787 = vld [vmem:[#allocation4 + $0xa8] sm:$0xf]
    %v2788 = vld [vmem:[#allocation4 + $0xac] sm:$0xf]
    %v2789 = vld [vmem:[#allocation4 + $0xb0] sm:$0xf]
    %v2790 = vld [vmem:[#allocation4 + $0xb4] sm:$0xf]
    %v2791 = vld [vmem:[#allocation4 + $0xb8] sm:$0xf]
    %v2792 = vld [vmem:[#allocation4 + $0xbc] sm:$0xf]
    %v2793 = vld [vmem:[%s10] sm:$0x1]
    %v2795 = vperm.slane %v2793, 0
    %v2845 = vunpack.c.l.b16 %v2745
    %v2846 = vunpack.c.l.b16 %v2746
    %v2847 = vunpack.c.l.b16 %v2747
    %v2848 = vunpack.c.l.b16 %v2748
    %v2849 = vunpack.c.l.b16 %v2749
    %v2850 = vunpack.c.l.b16 %v2750
    %v2851 = vunpack.c.l.b16 %v2751
    %v2852 = vunpack.c.l.b16 %v2752
    %v2853 = vunpack.c.l.b16 %v2753
    %v2854 = vunpack.c.l.b16 %v2754
    %v2855 = vunpack.c.l.b16 %v2755
    %v2856 = vunpack.c.l.b16 %v2756
    %v2857 = vunpack.c.l.b16 %v2757
    %v2858 = vunpack.c.l.b16 %v2758
    %v2859 = vunpack.c.l.b16 %v2759
    %v2860 = vunpack.c.l.b16 %v2760
    %v2861 = vunpack.c.l.b16 %v2761
    %v2862 = vunpack.c.l.b16 %v2762
    %v2863 = vunpack.c.l.b16 %v2763
    %v2864 = vunpack.c.l.b16 %v2764
    %v2865 = vunpack.c.l.b16 %v2765
    %v2866 = vunpack.c.l.b16 %v2766
    %v2867 = vunpack.c.l.b16 %v2767
    %v2868 = vunpack.c.l.b16 %v2768
    %v2869 = vunpack.c.l.b16 %v2769
    %v2870 = vunpack.c.l.b16 %v2770
    %v2871 = vunpack.c.l.b16 %v2771
    %v2872 = vunpack.c.l.b16 %v2772
    %v2873 = vunpack.c.l.b16 %v2773
    %v2874 = vunpack.c.l.b16 %v2774
    %v2875 = vunpack.c.l.b16 %v2775
    %v2876 = vunpack.c.l.b16 %v2776
    %v2877 = vunpack.c.l.b16 %v2777
    %v2878 = vunpack.c.l.b16 %v2778
    %v2879 = vunpack.c.l.b16 %v2779
    %v2880 = vunpack.c.l.b16 %v2780
    %v2881 = vunpack.c.l.b16 %v2781
    %v2882 = vunpack.c.l.b16 %v2782
    %v2883 = vunpack.c.l.b16 %v2783
    %v2884 = vunpack.c.l.b16 %v2784
    %v2885 = vunpack.c.l.b16 %v2785
    %v2886 = vunpack.c.l.b16 %v2786
    %v2887 = vunpack.c.l.b16 %v2787
    %v2888 = vunpack.c.l.b16 %v2788
    %v2889 = vunpack.c.l.b16 %v2789
    %v2890 = vunpack.c.l.b16 %v2790
    %v2891 = vunpack.c.l.b16 %v2791
    %v2892 = vunpack.c.l.b16 %v2792
    %v2893 = vpack.c.b16 %v2846, %v2845
    %v2894 = vpack.c.b16 %v2848, %v2847
    %v2895 = vpack.c.b16 %v2850, %v2849
    %v2896 = vpack.c.b16 %v2852, %v2851
    %v2897 = vpack.c.b16 %v2854, %v2853
    %v2898 = vpack.c.b16 %v2856, %v2855
    %v2899 = vpack.c.b16 %v2858, %v2857
    %v2900 = vpack.c.b16 %v2860, %v2859
    %v2901 = vpack.c.b16 %v2862, %v2861
    %v2902 = vpack.c.b16 %v2864, %v2863
    %v2903 = vpack.c.b16 %v2866, %v2865
    %v2904 = vpack.c.b16 %v2868, %v2867
    %v2905 = vpack.c.b16 %v2870, %v2869
    %v2906 = vpack.c.b16 %v2872, %v2871
    %v2907 = vpack.c.b16 %v2874, %v2873
    %v2908 = vpack.c.b16 %v2876, %v2875
    %v2909 = vpack.c.b16 %v2878, %v2877
    %v2910 = vpack.c.b16 %v2880, %v2879
    %v2911 = vpack.c.b16 %v2882, %v2881
    %v2912 = vpack.c.b16 %v2884, %v2883
    %v2913 = vpack.c.b16 %v2886, %v2885
    %v2914 = vpack.c.b16 %v2888, %v2887
    %v2915 = vpack.c.b16 %v2890, %v2889
    %v2916 = vpack.c.b16 %v2892, %v2891
    %2941 = vmatpush.bf16.msra.mxu0 %v2900
    %2942 = vmatpush.bf16.msra.mxu0 %v2899
    %2943 = vmatpush.bf16.msra.mxu0 %v2898
    %2944 = vmatpush.bf16.msra.mxu0 %v2897
    %2945 = vmatpush.bf16.msra.mxu0 %v2896
    %2946 = vmatpush.bf16.msra.mxu0 %v2895
    %2947 = vmatpush.bf16.msra.mxu0 %v2894
    %2948 = vmatpush.bf16.msra.mxu0 %v2893
    %2949 = vmatmul.bf16.gmra.mxu0 %v2742
    %v2950 = vpop.f32.mrf.mxu0
    %v2951 = vadd.f32 %v2795, %v2950
    %v2952 = vpop.f32.mrf.mxu0
    %2953 = vdwg.mxu0
    %2954 = vmatpush.bf16.msra.mxu0 %v2908
    %2955 = vmatpush.bf16.msra.mxu0 %v2907
    %2956 = vmatpush.bf16.msra.mxu0 %v2906
    %2957 = vmatpush.bf16.msra.mxu0 %v2905
    %2958 = vmatpush.bf16.msra.mxu0 %v2904
    %2959 = vmatpush.bf16.msra.mxu0 %v2903
    %2960 = vmatpush.bf16.msra.mxu0 %v2902
    %2961 = vmatpush.bf16.msra.mxu0 %v2901
    %2962 = vmatmul.bf16.gmra.mxu0 %v2743
    %v2963 = vpop.f32.mrf.mxu0
    %v2964 = vadd.f32 %v2951, %v2963
    %v2965 = vpop.f32.mrf.mxu0
    %2966 = vdwg.mxu0
    %2967 = vmatpush.bf16.msra.mxu0 %v2916
    %2968 = vmatpush.bf16.msra.mxu0 %v2915
    %2969 = vmatpush.bf16.msra.mxu0 %v2914
    %2970 = vmatpush.bf16.msra.mxu0 %v2913
    %2971 = vmatpush.bf16.msra.mxu0 %v2912
    %2972 = vmatpush.bf16.msra.mxu0 %v2911
    %2973 = vmatpush.bf16.msra.mxu0 %v2910
    %2974 = vmatpush.bf16.msra.mxu0 %v2909
    %2975 = vmatmul.bf16.gmra.mxu0 %v2744
    %v2976 = vpop.f32.mrf.mxu0
    %v2977 = vadd.f32 %v2964, %v2976
    %v2978 = vpop.f32.mrf.mxu0
    %2979 = vdwg.mxu0
    %v2980 = vxor.u32 %v2977, 2147483648
    %v2981 = vmul.f32 %v2980, 1.442695
    %v2982 = vpow.pop %v2981
    %v2983 = vadd.f32 %v2982, 1.0
    %v2984 = vrcp.pop %v2983
    %v2985 = vmul.f32 %v2983, %v2984
    %v2986 = vsub.f32 1.0, %v2985
    %v2987 = vmul.f32 %v2984, %v2986
    %v2988 = vadd.f32 %v2984, %v2987
    %vm2989 = vweird.f32 %v2983
    %vm2990 = vweird.f32 %v2984
    %vm2991 = vmor %vm2989, %vm2990
    %v2992 = vsel %vm2991, %v2984, %v2988
    %v2993 = vand.u32 2147483647, %v2983
    %vm2994 = vcmp.eq.f32.partialorder %v2993, 8.507059e+37
    %v2995 = vand.u32 %v2983, 2147483648
    %v2996 = vor.u32 1.1754944e-38, %v2995
    %v2997 = vsel %vm2994, %v2996, %v2992
    %v2998 = vmul.f32 1.0, %v2997
    %v2999 = vld [vmem:[%s11] sm:$0xff]
    %v3000 = vld [vmem:[%s11 + $0x8] sm:$0xff]
    %v3001 = vld [vmem:[%s11 + $0x10] sm:$0xff]
    %v3002 = vld [vmem:[%s11 + $0x18] sm:$0xff]
    %v3003 = vld [vmem:[%s11 + $0x20] sm:$0xff]
    %v3004 = vld [vmem:[%s11 + $0x28] sm:$0xff]
    %v3005 = vld [vmem:[%s11 + $0x30] sm:$0xff]
    %v3006 = vld [vmem:[%s11 + $0x38] sm:$0xff]
    %v3007 = vld [vmem:[%s11 + $0x40] sm:$0xff]
    %v3008 = vld [vmem:[%s11 + $0x48] sm:$0xff]
    %v3009 = vld [vmem:[%s11 + $0x50] sm:$0xff]
    %v3010 = vld [vmem:[%s11 + $0x58] sm:$0xff]
    %v3011 = vld [vmem:[%s11 + $0x60] sm:$0xff]
    %v3012 = vld [vmem:[%s11 + $0x68] sm:$0xff]
    %v3013 = vld [vmem:[%s11 + $0x70] sm:$0xff]
    %v3014 = vld [vmem:[%s11 + $0x78] sm:$0xff]
    %v3015 = vld [vmem:[%s12] sm:$0x1]
    %v3017 = vperm.slane %v3015, 0
    %3019 = vmatpush.msra.mxu0 %v3014
    %3020 = vmatpush.msra.mxu0 %v3013
    %3021 = vmatpush.msra.mxu0 %v3012
    %3022 = vmatpush.msra.mxu0 %v3011
    %3023 = vmatpush.msra.mxu0 %v3010
    %3024 = vmatpush.msra.mxu0 %v3009
    %3025 = vmatpush.msra.mxu0 %v3008
    %3026 = vmatpush.msra.mxu0 %v3007
    %3027 = vmatpush.msra.mxu0 %v3006
    %3028 = vmatpush.msra.mxu0 %v3005
    %3029 = vmatpush.msra.mxu0 %v3004
    %3030 = vmatpush.msra.mxu0 %v3003
    %3031 = vmatpush.msra.mxu0 %v3002
    %3032 = vmatpush.msra.mxu0 %v3001
    %3033 = vmatpush.msra.mxu0 %v3000
    %3034 = vmatpush.msra.mxu0 %v2999
    %3035 = vmatmul.f32.gmra.mxu0 %v2998
    %v3036 = vpop.f32.mrf.mxu0
    %v3037 = vadd.f32 %v3017, %v3036
    %3038 = vdwg.mxu0
    %vm3039 = vcmask 25600
    %3040 = vst.msk [vmem:[#allocation9] sm:$0x3] %vm3039, %v3037
    // Predicated region
    $region58: #{tpu_custom_call.1} parent=1 // pred_check
      _
    $region59: #{tpu_custom_call.1} parent=1 // pred_check_branch
      %3042 = sbr.rel (0) target = $region61
    $region60: #{tpu_custom_call.1} parent=1 // pred_region
      %3044 = vsyncadd [#allocation7], 0
      %s3046 = sshll.u32 [#allocation9], 4
      %s3047 = int_to_ptr.vmem [resolvable:$true] %s3046
      %s3048 = sshll.u32 %s13, 4
      %s3049 = int_to_ptr.hbm [resolvable:$true] %s3048
      %3051 = dma.vmem_to_hbm [thread:$0]  %s3047, 32, %s3049, [#allocation7]
    $region61: #{tpu_custom_call.1} parent=1 // pred_fallthru
      _
    // Predicated region
    $region62: #{tpu_custom_call.1} parent=1 // pred_check
      _
    $region63: #{tpu_custom_call.1} parent=1 // pred_check_branch
      %3053 = sbr.rel (0) target = $region65
    $region64: #{tpu_custom_call.1} parent=1 // pred_region
      %3055 = dma.done [#allocation7], 32
    $region65: #{tpu_custom_call.1} parent=1 // pred_fallthru
      _
    %3056 = vsyncpa [#allocation7], 1
    %3057 = vsyncpa [#allocation8], 1
  %3058 = vsyncmov [#allocation3]
  %s3059 = vpop.sfrf %3058
  %p3060 = scmp.eq.s32.totalorder %s3059, 0
  %p3061 = pneg %p3060
  %3063 = shalt.err (%p3061)
  %3064 = vsyncmov [#allocation5]
  %s3065 = vpop.sfrf %3064
  %p3066 = scmp.eq.s32.totalorder %s3065, 0
  %p3067 = pneg %p3066
  %3069 = shalt.err (%p3067)

</llo_original>
